<compile_context>
chip_gen: v7x
topology: tpu7x:2x2x1
jax: 0.10.0
libtpu: 0.0.40
codegen_flags: <defaults>
</compile_context>

<pallas_src>
import jax
import jax.numpy as jnp
from jax.experimental import pallas as pl
from jax.experimental.pallas import tpu as pltpu


def _round_up(x, m):
    return ((x + m - 1) // m) * m


# ----------------------------------------------------------------------------
# Pallas kernels
# ----------------------------------------------------------------------------
def make_dense_kernel(h, w, c, out_pad, k_pad):
    """Fused neko_dense_calc core (eval): channel L2 norm + 5x5 valid conv
    (+bias) + sigmoid, one batch element per grid step.

    x_ref : (1, C, HWpad)   NCHW flattened, zero padded along lanes
    w_ref : (2, Kpad)       weights laid out as (Cout, tap*C + ci); column
                            25*C holds the bias, remaining pad columns are 0
    o_ref : (1, 2, out_pad) lane-dense; cols >= (H-4)*W and cols whose
                            (p % W) >= W-4 are garbage, dropped by the wrapper
    xi_ref: (Kpad, out_pad) VMEM scratch for the in-VMEM im2col
    """
    n_taps = 25

    def dense_kernel(x_ref, w_ref, o_ref, xi_ref):
        x = x_ref[0]                                        # (C, HWpad)
        ss = jnp.sum(x * x, axis=0, keepdims=True)          # (1, HWpad)
        # feat/(norm+9e-8)*(norm>0.09) == feat*rsqrt(ss)*(ss>0.09^2) to ~1e-6
        inv = jnp.where(ss > 0.09 * 0.09, jax.lax.rsqrt(ss), 0.0)
        xn = x * inv                                        # normalized feat
        # In-VMEM im2col: 25 shifted tap slices stacked along sublanes ...
        for ky in range(5):
            for kx in range(5):
                t = ky * 5 + kx
                off = ky * w + kx                           # static offsets
                xi_ref[pl.ds(t * c, c), :] = xn[:, off:off + out_pad]
        # ... plus a block of ones: row 25*C carries the bias; any remaining
        # pad rows hit zero weight columns.
        xi_ref[pl.ds(n_taps * c, k_pad - n_taps * c), :] = jnp.ones(
            (k_pad - n_taps * c, out_pad), jnp.float32)
        # ONE K=25*C+1 matmul instead of 25 K=C matmuls: no per-tap MXU
        # push/pop and no 24 accumulator adds.
        y = jnp.dot(w_ref[...], xi_ref[...],
                    preferred_element_type=jnp.float32)     # (2, out_pad)
        o_ref[0] = pl.reciprocal(1.0 + jnp.exp(-y), approx=True)   # sigmoid

    return dense_kernel


def make_sample_pool_kernel(lh, lw, hlo, wlo):
    """Fused: bilinear grid_sample (align_corners=False, zeros padding) of
    hifeat AND lofeat on the same grid, summed, + adaptive_avg_pool2d — all as
    MXU matmuls against a one-hot sampling matrix built in-kernel from iota.
    Grid axis 1 tiles the P grid points; the pooled output block is revisited
    and accumulated across tiles (axis marked "arbitrary")."""

    def kern(g_ref, fhi_ref, flo_ref, pool_ref, o_ref):
        j = pl.program_id(1)
        g = g_ref[0]                                        # (2, p_tile)
        gx = g[0:1, :]
        gy = g[1:2, :]

        def sample(f_ref, h_in, w_in):
            f = f_ref[0]                                    # (C, h_in*w_in)
            ix = ((gx + 1.0) * w_in - 1.0) * 0.5
            iy = ((gy + 1.0) * h_in - 1.0) * 0.5
            x0 = jnp.floor(ix)
            y0 = jnp.floor(iy)
            x1 = x0 + 1.0
            y1 = y0 + 1.0
            wx1 = ix - x0
            wx0 = 1.0 - wx1
            wy1 = iy - y0
            wy0 = 1.0 - wy1
            lin = jax.lax.broadcasted_iota(
                jnp.int32, (h_in * w_in, 1), 0).astype(jnp.float32)

            def tap(yn, xn, wgt):
                # Out-of-range neighbours get zero weight (padding_mode=zeros).
                # Masking the weight BEFORE the select keeps wrapped/aliased
                # flat indices harmless.
                valid = ((xn >= 0.0) & (xn <= w_in - 1.0)
                         & (yn >= 0.0) & (yn <= h_in - 1.0))
                wv = jnp.where(valid, wgt, 0.0)             # (1, p_tile)
                flat = yn * w_in + xn                       # exact ints in f32
                # single select per tap: no astype + multiply pass
                return jnp.where(lin == flat, wv, 0.0)      # (HW, p_tile)

            s = (tap(y0, x0, wy0 * wx0) + tap(y0, x1, wy0 * wx1)
                 + tap(y1, x0, wy1 * wx0) + tap(y1, x1, wy1 * wx1))
            # bf16 MXU operands, f32 accumulate (weights are in [0,1]).
            return jnp.dot(f.astype(jnp.bfloat16), s.astype(jnp.bfloat16),
                           preferred_element_type=jnp.float32)

        acc = sample(fhi_ref, lh, lw) + sample(flo_ref, hlo, wlo)  # (C, p_tile)
        contrib = jnp.dot(acc.astype(jnp.bfloat16),
                          pool_ref[...].astype(jnp.bfloat16),
                          preferred_element_type=jnp.float32)      # (C, dp_pad)

        @pl.when(j == 0)
        def _():
            o_ref[...] = jnp.zeros_like(o_ref)
        o_ref[0] = o_ref[0] + contrib

    return kern


# ----------------------------------------------------------------------------
# Pallas-call wrappers
# ----------------------------------------------------------------------------
def dense_calc(feat, w, b):
    """neko_dense_calc (eval) minus the trailing interpolate.
    feat: (N, C, H, W); w: (2, C, 5, 5) PyTorch layout; b: (2,)
    returns (N, 2, H-4, W-4)."""
    n, c, h, wd = feat.shape
    ho, wo = h - 4, wd - 4
    out_pad = _round_up(ho * wd, 128)          # lane-dense output
    k_pad = _round_up(25 * c + 1, 8)           # 25 taps * C + bias row
    hw_pad = _round_up(4 * wd + 4 + out_pad, 128)
    hw = h * wd
    x = jnp.pad(feat.reshape(n, c, hw), ((0, 0), (0, 0), (0, hw_pad - hw)))
    # (Cout,Cin,kh,kw) -> columns ordered (tap*C + ci); bias in column 25*C.
    wt = jnp.transpose(w, (2, 3, 1, 0)).reshape(25 * c, 2).T      # (2, 25*C)
    wt = jnp.concatenate(
        [wt, b.reshape(2, 1),
         jnp.zeros((2, k_pad - 25 * c - 1), jnp.float32)], axis=1)
    out = pl.pallas_call(
        make_dense_kernel(h, wd, c, out_pad, k_pad),
        out_shape=jax.ShapeDtypeStruct((n, 2, out_pad), jnp.float32),
        grid=(n,),
        in_specs=[
            pl.BlockSpec((1, c, hw_pad), lambda i: (i, 0, 0)),
            pl.BlockSpec((2, k_pad), lambda i: (0, 0)),
        ],
        out_specs=pl.BlockSpec((1, 2, out_pad), lambda i: (i, 0, 0)),
        scratch_shapes=[pltpu.VMEM((k_pad, out_pad), jnp.float32)],
        compiler_params=pltpu.CompilerParams(
            dimension_semantics=("parallel",),
            vmem_limit_bytes=32 * 1024 * 1024),
    )(x, wt)
    # Drop the lane padding and the wrap-around columns of the flattened conv.
    return out[:, :, :ho * wd].reshape(n, 2, ho, wd)[:, :, :, :wo]


def adaptive_pool_matrix(in_size, out_size):
    """PyTorch adaptive_avg_pool1d as an (out, in) averaging matrix."""
    i = jnp.arange(out_size)
    start = jnp.floor(i * in_size / out_size).astype(jnp.int32)
    end = jnp.ceil((i + 1) * in_size / out_size).astype(jnp.int32)
    r = jnp.arange(in_size)
    m = (r[None, :] >= start[:, None]) & (r[None, :] < end[:, None])
    cnt = (end - start).astype(jnp.float32)
    return m.astype(jnp.float32) / cnt[:, None]


def sample_fuse_pool(hifeat, lofeat, grid, p_tile=128):
    """pool(grid_sample(hifeat)) + pool(grid_sample(lofeat)) in one kernel,
    P-tiled so the (HW, P) sampling matrix never has to be fully resident."""
    n, c, lh, lw = hifeat.shape
    _, _, hlo, wlo = lofeat.shape
    p = lh * lw
    dp = hlo * wlo
    dp_pad = _round_up(dp, 128)                       # lane-dense output
    p_tile = max(128, min(_round_up(p, 128), (p_tile // 128) * 128))
    p_pad = _round_up(p, p_tile)

    fhi = hifeat.reshape(n, c, p)
    flo = lofeat.reshape(n, c, dp)
    g = jnp.pad(grid.reshape(n, 2, p), ((0, 0), (0, 0), (0, p_pad - p)))
    ph = adaptive_pool_matrix(lh, hlo)                # (dh, lh)
    pw = adaptive_pool_matrix(lw, wlo)                # (dw, lw)
    pool_t = (ph[:, None, :, None] * pw[None, :, None, :]).reshape(dp, p).T
    pool_t = jnp.pad(pool_t, ((0, p_pad - p), (0, dp_pad - dp)))

    out = pl.pallas_call(
        make_sample_pool_kernel(lh, lw, hlo, wlo),
        out_shape=jax.ShapeDtypeStruct((n, c, dp_pad), jnp.float32),
        grid=(n, p_pad // p_tile),
        in_specs=[
            pl.BlockSpec((1, 2, p_tile), lambda i, j: (i, 0, j)),
            pl.BlockSpec((1, c, p), lambda i, j: (i, 0, 0)),
            pl.BlockSpec((1, c, dp), lambda i, j: (i, 0, 0)),
            pl.BlockSpec((p_tile, dp_pad), lambda i, j: (j, 0)),
        ],
        out_specs=pl.BlockSpec((1, c, dp_pad), lambda i, j: (i, 0, 0)),
        compiler_params=pltpu.CompilerParams(
            dimension_semantics=("parallel", "arbitrary"),
            vmem_limit_bytes=32 * 1024 * 1024),
    )(g, fhi, flo, pool_t)
    return out[:, :, :dp].reshape(n, c, hlo, wlo)


# ----------------------------------------------------------------------------
# Tiny JAX glue
# ----------------------------------------------------------------------------
def nearest_resize_nchw(x, out_h, out_w):
    """PyTorch F.interpolate(..., mode='nearest') with an explicit output size."""
    _, _, hin, win = x.shape
    hi = jnp.minimum(
        jnp.floor(jnp.arange(out_h) * (hin / out_h)).astype(jnp.int32), hin - 1)
    wi = jnp.minimum(
        jnp.floor(jnp.arange(out_w) * (win / out_w)).astype(jnp.int32), win - 1)
    return x[:, :, hi[:, None], wi[None, :]]


def neko_dense_norm(dmap):
    """(N,2,lh+2,lw+2) -> (N,2,lh,lw) grid; channel 0 = x, channel 1 = y."""
    h__ = dmap[:, 0:1]
    w__ = dmap[:, 1:2]
    sumh = jnp.sum(h__, axis=2, keepdims=True)
    sumw = jnp.sum(w__, axis=3, keepdims=True)
    h = jnp.cumsum(h__ / sumh, axis=2)
    w = jnp.cumsum(w__ / sumw, axis=3)
    return jnp.concatenate(
        [w[:, :, 1:-1, 1:-1], h[:, :, 1:-1, 1:-1]], axis=1) * 2.0 - 1.0


# ----------------------------------------------------------------------------
# Full forward pass (eval semantics of neko_lens_fuse)
# ----------------------------------------------------------------------------
def neko_lens_fuse_forward(hifeat, lofeat, params, hardness=0.5):
    _, _, lh, lw = hifeat.shape

    # hidense / lodense: fused norm + conv5x5 + sigmoid kernels
    hid = dense_calc(hifeat, params["w_hi"], params["b_hi"])   # (N,2,lh-4,lw-4)
    lod = dense_calc(lofeat, params["w_lo"], params["b_lo"])   # (N,2,dh-4,dw-4)

    # F.interpolate(..., [lh+2, lw+2]) (default mode='nearest') + dmap glue
    hidmap = nearest_resize_nchw(hid, lh + 2, lw + 2)
    lodmap = nearest_resize_nchw(lod, lh + 2, lw + 2)
    dmap = (hidmap + lodmap) * 0.5 + 0.0009
    dmap = dmap.at[:, :, 1:-1, 1:-1].add(hardness)

    grid = neko_dense_norm(dmap)                               # (N, 2, lh, lw)

    # his + los = pooled bilinear samples of both features (one fused kernel)
    fused = sample_fuse_pool(hifeat, lofeat, grid)             # (N, C, dh, dw)
    return fused, dmap


# ----------------------------------------------------------------------------
# Main
# ----------------------------------------------------------------------------
if __name__ == "__main__":
    key = jax.random.PRNGKey(0)
    ks = jax.random.split(key, 6)

    N, CH = 2, 8
    LH = LW = 16          # hifeat spatial
    DH = DW = 8           # lofeat spatial (>= 5 for the 5x5 valid conv)

    hifeat = jax.random.normal(ks[0], (N, CH, LH, LW), jnp.float32)
    lofeat = jax.random.normal(ks[1], (N, CH, DH, DW), jnp.float32)

    params = {
        # hidense / lodense: Conv2d(CH, 2, 5, 1) weights in PyTorch layout
        "w_hi": jax.random.normal(ks[2], (2, CH, 5, 5), jnp.float32)
                / jnp.sqrt(25.0 * CH),
        "b_hi": 0.1 * jax.random.normal(ks[3], (2,), jnp.float32),
        "w_lo": jax.random.normal(ks[4], (2, CH, 5, 5), jnp.float32)
                / jnp.sqrt(25.0 * CH),
        "b_lo": 0.1 * jax.random.normal(ks[5], (2,), jnp.float32),
    }

    fwd = jax.jit(neko_lens_fuse_forward)
    out, dmap = fwd(hifeat, lofeat, params, 0.5)
    out, dmap = jax.block_until_ready((out, dmap))

    assert out.shape == (N, CH, DH, DW), out.shape
    assert dmap.shape == (N, 2, LH + 2, LW + 2), dmap.shape
    assert bool(jnp.all(jnp.isfinite(out))) and bool(jnp.all(jnp.isfinite(dmap)))

    print("KERNEL_OK")
</pallas_src>

<mosaic_0001>
module attributes {stable_mosaic.version = 11 : i64} {
  func.func @dense_kernel(%arg0: i32, %arg1: memref<1x8x256xf32, #tpu.memory_space<vmem>>, %arg2: memref<2x208xf32, #tpu.memory_space<vmem>>, %arg3: memref<1x2x128xf32, #tpu.memory_space<vmem>>, %arg4: memref<208x128xf32, #tpu.memory_space<vmem>>) attributes {dimension_semantics = [#tpu.dimension_semantics<parallel>], iteration_bounds = array<i64: 2>, scalar_prefetch = 0 : i64, scratch_operands = 1 : i64, tpu.core_type = #tpu.core_type<tc>, window_params = [{transform_indices = @transform_0, window_bounds = array<i64: 1, 8, 256>}, {pipeline_mode = #tpu.pipeline_mode<synchronous>, transform_indices = @transform_1, window_bounds = array<i64: 2, 208>}, {transform_indices = @transform_2, window_bounds = array<i64: 1, 2, 128>}]} {
    %c0 = arith.constant 0 : index
    %c0_0 = arith.constant 0 : index
    %c0_1 = arith.constant 0 : index
    %0 = vector.load %arg1[%c0, %c0_0, %c0_1] : memref<1x8x256xf32, #tpu.memory_space<vmem>>, vector<1x8x256xf32>
    %1 = vector.shape_cast %0 : vector<1x8x256xf32> to vector<8x256xf32>
    %2 = arith.mulf %1, %1 : vector<8x256xf32>
    %cst = arith.constant dense<0.000000e+00> : vector<256xf32>
    %3 = vector.multi_reduction <add>, %2, %cst [0] : vector<8x256xf32> to vector<256xf32>
    %4 = vector.shape_cast %3 : vector<256xf32> to vector<1x256xf32>
    %cst_2 = arith.constant 8.100000e-03 : f32
    %5 = vector.broadcast %cst_2 : f32 to vector<1x256xf32>
    %6 = arith.cmpf ogt, %4, %5 : vector<1x256xf32>
    %7 = math.rsqrt %4 : vector<1x256xf32>
    %cst_3 = arith.constant 0.000000e+00 : f32
    %8 = vector.broadcast %cst_3 : f32 to vector<1x256xf32>
    %9 = arith.select %6, %7, %8 : vector<1x256xi1>, vector<1x256xf32>
    %10 = vector.broadcast %9 : vector<1x256xf32> to vector<8x256xf32>
    %11 = arith.mulf %1, %10 : vector<8x256xf32>
    %12 = vector.extract_strided_slice %11 {offsets = [0, 0], sizes = [8, 128], strides = [1, 1]} : vector<8x256xf32> to vector<8x128xf32>
    %c0_4 = arith.constant 0 : index
    %c0_5 = arith.constant 0 : index
    %13 = vector.load %arg4[%c0_4, %c0_5] : memref<208x128xf32, #tpu.memory_space<vmem>>, vector<8x128xf32>
    tpu.vector_store %arg4[%c0_4, %c0_5], %12 {strides = array<i32>} : memref<208x128xf32, #tpu.memory_space<vmem>>, vector<8x128xf32>,
    %14 = vector.extract_strided_slice %11 {offsets = [0, 1], sizes = [8, 128], strides = [1, 1]} : vector<8x256xf32> to vector<8x128xf32>
    %c8 = arith.constant 8 : index
    %c0_6 = arith.constant 0 : index
    %15 = vector.load %arg4[%c8, %c0_6] : memref<208x128xf32, #tpu.memory_space<vmem>>, vector<8x128xf32>
    tpu.vector_store %arg4[%c8, %c0_6], %14 {strides = array<i32>} : memref<208x128xf32, #tpu.memory_space<vmem>>, vector<8x128xf32>,
    %16 = vector.extract_strided_slice %11 {offsets = [0, 2], sizes = [8, 128], strides = [1, 1]} : vector<8x256xf32> to vector<8x128xf32>
    %c16 = arith.constant 16 : index
    %c0_7 = arith.constant 0 : index
    %17 = vector.load %arg4[%c16, %c0_7] : memref<208x128xf32, #tpu.memory_space<vmem>>, vector<8x128xf32>
    tpu.vector_store %arg4[%c16, %c0_7], %16 {strides = array<i32>} : memref<208x128xf32, #tpu.memory_space<vmem>>, vector<8x128xf32>,
    %18 = vector.extract_strided_slice %11 {offsets = [0, 3], sizes = [8, 128], strides = [1, 1]} : vector<8x256xf32> to vector<8x128xf32>
    %c24 = arith.constant 24 : index
    %c0_8 = arith.constant 0 : index
    %19 = vector.load %arg4[%c24, %c0_8] : memref<208x128xf32, #tpu.memory_space<vmem>>, vector<8x128xf32>
    tpu.vector_store %arg4[%c24, %c0_8], %18 {strides = array<i32>} : memref<208x128xf32, #tpu.memory_space<vmem>>, vector<8x128xf32>,
    %20 = vector.extract_strided_slice %11 {offsets = [0, 4], sizes = [8, 128], strides = [1, 1]} : vector<8x256xf32> to vector<8x128xf32>
    %c32 = arith.constant 32 : index
    %c0_9 = arith.constant 0 : index
    %21 = vector.load %arg4[%c32, %c0_9] : memref<208x128xf32, #tpu.memory_space<vmem>>, vector<8x128xf32>
    tpu.vector_store %arg4[%c32, %c0_9], %20 {strides = array<i32>} : memref<208x128xf32, #tpu.memory_space<vmem>>, vector<8x128xf32>,
    %22 = vector.extract_strided_slice %11 {offsets = [0, 8], sizes = [8, 128], strides = [1, 1]} : vector<8x256xf32> to vector<8x128xf32>
    %c40 = arith.constant 40 : index
    %c0_10 = arith.constant 0 : index
    %23 = vector.load %arg4[%c40, %c0_10] : memref<208x128xf32, #tpu.memory_space<vmem>>, vector<8x128xf32>
    tpu.vector_store %arg4[%c40, %c0_10], %22 {strides = array<i32>} : memref<208x128xf32, #tpu.memory_space<vmem>>, vector<8x128xf32>,
    %24 = vector.extract_strided_slice %11 {offsets = [0, 9], sizes = [8, 128], strides = [1, 1]} : vector<8x256xf32> to vector<8x128xf32>
    %c48 = arith.constant 48 : index
    %c0_11 = arith.constant 0 : index
    %25 = vector.load %arg4[%c48, %c0_11] : memref<208x128xf32, #tpu.memory_space<vmem>>, vector<8x128xf32>
    tpu.vector_store %arg4[%c48, %c0_11], %24 {strides = array<i32>} : memref<208x128xf32, #tpu.memory_space<vmem>>, vector<8x128xf32>,
    %26 = vector.extract_strided_slice %11 {offsets = [0, 10], sizes = [8, 128], strides = [1, 1]} : vector<8x256xf32> to vector<8x128xf32>
    %c56 = arith.constant 56 : index
    %c0_12 = arith.constant 0 : index
    %27 = vector.load %arg4[%c56, %c0_12] : memref<208x128xf32, #tpu.memory_space<vmem>>, vector<8x128xf32>
    tpu.vector_store %arg4[%c56, %c0_12], %26 {strides = array<i32>} : memref<208x128xf32, #tpu.memory_space<vmem>>, vector<8x128xf32>,
    %28 = vector.extract_strided_slice %11 {offsets = [0, 11], sizes = [8, 128], strides = [1, 1]} : vector<8x256xf32> to vector<8x128xf32>
    %c64 = arith.constant 64 : index
    %c0_13 = arith.constant 0 : index
    %29 = vector.load %arg4[%c64, %c0_13] : memref<208x128xf32, #tpu.memory_space<vmem>>, vector<8x128xf32>
    tpu.vector_store %arg4[%c64, %c0_13], %28 {strides = array<i32>} : memref<208x128xf32, #tpu.memory_space<vmem>>, vector<8x128xf32>,
    %30 = vector.extract_strided_slice %11 {offsets = [0, 12], sizes = [8, 128], strides = [1, 1]} : vector<8x256xf32> to vector<8x128xf32>
    %c72 = arith.constant 72 : index
    %c0_14 = arith.constant 0 : index
    %31 = vector.load %arg4[%c72, %c0_14] : memref<208x128xf32, #tpu.memory_space<vmem>>, vector<8x128xf32>
    tpu.vector_store %arg4[%c72, %c0_14], %30 {strides = array<i32>} : memref<208x128xf32, #tpu.memory_space<vmem>>, vector<8x128xf32>,
    %32 = vector.extract_strided_slice %11 {offsets = [0, 16], sizes = [8, 128], strides = [1, 1]} : vector<8x256xf32> to vector<8x128xf32>
    %c80 = arith.constant 80 : index
    %c0_15 = arith.constant 0 : index
    %33 = vector.load %arg4[%c80, %c0_15] : memref<208x128xf32, #tpu.memory_space<vmem>>, vector<8x128xf32>
    tpu.vector_store %arg4[%c80, %c0_15], %32 {strides = array<i32>} : memref<208x128xf32, #tpu.memory_space<vmem>>, vector<8x128xf32>,
    %34 = vector.extract_strided_slice %11 {offsets = [0, 17], sizes = [8, 128], strides = [1, 1]} : vector<8x256xf32> to vector<8x128xf32>
    %c88 = arith.constant 88 : index
    %c0_16 = arith.constant 0 : index
    %35 = vector.load %arg4[%c88, %c0_16] : memref<208x128xf32, #tpu.memory_space<vmem>>, vector<8x128xf32>
    tpu.vector_store %arg4[%c88, %c0_16], %34 {strides = array<i32>} : memref<208x128xf32, #tpu.memory_space<vmem>>, vector<8x128xf32>,
    %36 = vector.extract_strided_slice %11 {offsets = [0, 18], sizes = [8, 128], strides = [1, 1]} : vector<8x256xf32> to vector<8x128xf32>
    %c96 = arith.constant 96 : index
    %c0_17 = arith.constant 0 : index
    %37 = vector.load %arg4[%c96, %c0_17] : memref<208x128xf32, #tpu.memory_space<vmem>>, vector<8x128xf32>
    tpu.vector_store %arg4[%c96, %c0_17], %36 {strides = array<i32>} : memref<208x128xf32, #tpu.memory_space<vmem>>, vector<8x128xf32>,
    %38 = vector.extract_strided_slice %11 {offsets = [0, 19], sizes = [8, 128], strides = [1, 1]} : vector<8x256xf32> to vector<8x128xf32>
    %c104 = arith.constant 104 : index
    %c0_18 = arith.constant 0 : index
    %39 = vector.load %arg4[%c104, %c0_18] : memref<208x128xf32, #tpu.memory_space<vmem>>, vector<8x128xf32>
    tpu.vector_store %arg4[%c104, %c0_18], %38 {strides = array<i32>} : memref<208x128xf32, #tpu.memory_space<vmem>>, vector<8x128xf32>,
    %40 = vector.extract_strided_slice %11 {offsets = [0, 20], sizes = [8, 128], strides = [1, 1]} : vector<8x256xf32> to vector<8x128xf32>
    %c112 = arith.constant 112 : index
    %c0_19 = arith.constant 0 : index
    %41 = vector.load %arg4[%c112, %c0_19] : memref<208x128xf32, #tpu.memory_space<vmem>>, vector<8x128xf32>
    tpu.vector_store %arg4[%c112, %c0_19], %40 {strides = array<i32>} : memref<208x128xf32, #tpu.memory_space<vmem>>, vector<8x128xf32>,
    %42 = vector.extract_strided_slice %11 {offsets = [0, 24], sizes = [8, 128], strides = [1, 1]} : vector<8x256xf32> to vector<8x128xf32>
    %c120 = arith.constant 120 : index
    %c0_20 = arith.constant 0 : index
    %43 = vector.load %arg4[%c120, %c0_20] : memref<208x128xf32, #tpu.memory_space<vmem>>, vector<8x128xf32>
    tpu.vector_store %arg4[%c120, %c0_20], %42 {strides = array<i32>} : memref<208x128xf32, #tpu.memory_space<vmem>>, vector<8x128xf32>,
    %44 = vector.extract_strided_slice %11 {offsets = [0, 25], sizes = [8, 128], strides = [1, 1]} : vector<8x256xf32> to vector<8x128xf32>
    %c128 = arith.constant 128 : index
    %c0_21 = arith.constant 0 : index
    %45 = vector.load %arg4[%c128, %c0_21] : memref<208x128xf32, #tpu.memory_space<vmem>>, vector<8x128xf32>
    tpu.vector_store %arg4[%c128, %c0_21], %44 {strides = array<i32>} : memref<208x128xf32, #tpu.memory_space<vmem>>, vector<8x128xf32>,
    %46 = vector.extract_strided_slice %11 {offsets = [0, 26], sizes = [8, 128], strides = [1, 1]} : vector<8x256xf32> to vector<8x128xf32>
    %c136 = arith.constant 136 : index
    %c0_22 = arith.constant 0 : index
    %47 = vector.load %arg4[%c136, %c0_22] : memref<208x128xf32, #tpu.memory_space<vmem>>, vector<8x128xf32>
    tpu.vector_store %arg4[%c136, %c0_22], %46 {strides = array<i32>} : memref<208x128xf32, #tpu.memory_space<vmem>>, vector<8x128xf32>,
    %48 = vector.extract_strided_slice %11 {offsets = [0, 27], sizes = [8, 128], strides = [1, 1]} : vector<8x256xf32> to vector<8x128xf32>
    %c144 = arith.constant 144 : index
    %c0_23 = arith.constant 0 : index
    %49 = vector.load %arg4[%c144, %c0_23] : memref<208x128xf32, #tpu.memory_space<vmem>>, vector<8x128xf32>
    tpu.vector_store %arg4[%c144, %c0_23], %48 {strides = array<i32>} : memref<208x128xf32, #tpu.memory_space<vmem>>, vector<8x128xf32>,
    %50 = vector.extract_strided_slice %11 {offsets = [0, 28], sizes = [8, 128], strides = [1, 1]} : vector<8x256xf32> to vector<8x128xf32>
    %c152 = arith.constant 152 : index
    %c0_24 = arith.constant 0 : index
    %51 = vector.load %arg4[%c152, %c0_24] : memref<208x128xf32, #tpu.memory_space<vmem>>, vector<8x128xf32>
    tpu.vector_store %arg4[%c152, %c0_24], %50 {strides = array<i32>} : memref<208x128xf32, #tpu.memory_space<vmem>>, vector<8x128xf32>,
    %52 = vector.extract_strided_slice %11 {offsets = [0, 32], sizes = [8, 128], strides = [1, 1]} : vector<8x256xf32> to vector<8x128xf32>
    %c160 = arith.constant 160 : index
    %c0_25 = arith.constant 0 : index
    %53 = vector.load %arg4[%c160, %c0_25] : memref<208x128xf32, #tpu.memory_space<vmem>>, vector<8x128xf32>
    tpu.vector_store %arg4[%c160, %c0_25], %52 {strides = array<i32>} : memref<208x128xf32, #tpu.memory_space<vmem>>, vector<8x128xf32>,
    %54 = vector.extract_strided_slice %11 {offsets = [0, 33], sizes = [8, 128], strides = [1, 1]} : vector<8x256xf32> to vector<8x128xf32>
    %c168 = arith.constant 168 : index
    %c0_26 = arith.constant 0 : index
    %55 = vector.load %arg4[%c168, %c0_26] : memref<208x128xf32, #tpu.memory_space<vmem>>, vector<8x128xf32>
    tpu.vector_store %arg4[%c168, %c0_26], %54 {strides = array<i32>} : memref<208x128xf32, #tpu.memory_space<vmem>>, vector<8x128xf32>,
    %56 = vector.extract_strided_slice %11 {offsets = [0, 34], sizes = [8, 128], strides = [1, 1]} : vector<8x256xf32> to vector<8x128xf32>
    %c176 = arith.constant 176 : index
    %c0_27 = arith.constant 0 : index
    %57 = vector.load %arg4[%c176, %c0_27] : memref<208x128xf32, #tpu.memory_space<vmem>>, vector<8x128xf32>
    tpu.vector_store %arg4[%c176, %c0_27], %56 {strides = array<i32>} : memref<208x128xf32, #tpu.memory_space<vmem>>, vector<8x128xf32>,
    %58 = vector.extract_strided_slice %11 {offsets = [0, 35], sizes = [8, 128], strides = [1, 1]} : vector<8x256xf32> to vector<8x128xf32>
    %c184 = arith.constant 184 : index
    %c0_28 = arith.constant 0 : index
    %59 = vector.load %arg4[%c184, %c0_28] : memref<208x128xf32, #tpu.memory_space<vmem>>, vector<8x128xf32>
    tpu.vector_store %arg4[%c184, %c0_28], %58 {strides = array<i32>} : memref<208x128xf32, #tpu.memory_space<vmem>>, vector<8x128xf32>,
    %60 = vector.extract_strided_slice %11 {offsets = [0, 36], sizes = [8, 128], strides = [1, 1]} : vector<8x256xf32> to vector<8x128xf32>
    %c192 = arith.constant 192 : index
    %c0_29 = arith.constant 0 : index
    %61 = vector.load %arg4[%c192, %c0_29] : memref<208x128xf32, #tpu.memory_space<vmem>>, vector<8x128xf32>
    tpu.vector_store %arg4[%c192, %c0_29], %60 {strides = array<i32>} : memref<208x128xf32, #tpu.memory_space<vmem>>, vector<8x128xf32>,
    %cst_30 = arith.constant 1.000000e+00 : f32
    %62 = vector.broadcast %cst_30 : f32 to vector<8x128xf32>
    %c200 = arith.constant 200 : index
    %c0_31 = arith.constant 0 : index
    %63 = vector.load %arg4[%c200, %c0_31] : memref<208x128xf32, #tpu.memory_space<vmem>>, vector<8x128xf32>
    tpu.vector_store %arg4[%c200, %c0_31], %62 {strides = array<i32>} : memref<208x128xf32, #tpu.memory_space<vmem>>, vector<8x128xf32>,
    %c0_32 = arith.constant 0 : index
    %c0_33 = arith.constant 0 : index
    %64 = vector.load %arg2[%c0_32, %c0_33] : memref<2x208xf32, #tpu.memory_space<vmem>>, vector<2x208xf32>
    %c0_34 = arith.constant 0 : index
    %c0_35 = arith.constant 0 : index
    %65 = vector.load %arg4[%c0_34, %c0_35] : memref<208x128xf32, #tpu.memory_space<vmem>>, vector<208x128xf32>
    %cst_36 = arith.constant dense<0.000000e+00> : vector<2x128xf32>
    %66 = tpu.matmul %64, %65, %cst_36 {dimension_numbers = #tpu.dot_dimension_numbers<[1], [0], [0], [1], [0, 0, 1, 1], [], []>} : vector<2x208xf32>, vector<208x128xf32>, vector<2x128xf32> -> vector<2x128xf32>
    %cst_37 = arith.constant 0.000000e+00 : f32
    %67 = vector.broadcast %cst_37 : f32 to vector<2x128xf32>
    %68 = arith.subf %67, %66 : vector<2x128xf32>
    %69 = math.exp %68 : vector<2x128xf32>
    %cst_38 = arith.constant 1.000000e+00 : f32
    %70 = vector.broadcast %cst_38 : f32 to vector<2x128xf32>
    %71 = arith.addf %70, %69 : vector<2x128xf32>
    %72 = tpu.reciprocal %71 {approx = true} : vector<2x128xf32> -> vector<2x128xf32>
    %c0_39 = arith.constant 0 : index
    %c0_40 = arith.constant 0 : index
    %c0_41 = arith.constant 0 : index
    %73 = vector.load %arg3[%c0_39, %c0_40, %c0_41] : memref<1x2x128xf32, #tpu.memory_space<vmem>>, vector<1x2x128xf32>
    %74 = vector.shape_cast %73 : vector<1x2x128xf32> to vector<2x128xf32>
    %75 = vector.shape_cast %72 : vector<2x128xf32> to vector<1x2x128xf32>
    tpu.vector_store %arg3[%c0_39, %c0_40, %c0_41], %75 {strides = array<i32>} : memref<1x2x128xf32, #tpu.memory_space<vmem>>, vector<1x2x128xf32>,
    return
  }
  func.func @transform_0(%arg0: i32) -> (i32, i32, i32) {
    %c0_i32 = arith.constant 0 : i32
    %c0_i32_0 = arith.constant 0 : i32
    %c0_i32_1 = arith.constant 0 : i32
    return %arg0, %c0_i32, %c0_i32_0 : i32, i32, i32
  }
  func.func @transform_1(%arg0: i32) -> (i32, i32) {
    %c0_i32 = arith.constant 0 : i32
    %c0_i32_0 = arith.constant 0 : i32
    %c0_i32_1 = arith.constant 0 : i32
    return %c0_i32, %c0_i32_0 : i32, i32
  }
  func.func @transform_2(%arg0: i32) -> (i32, i32, i32) {
    %c0_i32 = arith.constant 0 : i32
    %c0_i32_0 = arith.constant 0 : i32
    %c0_i32_1 = arith.constant 0 : i32
    return %arg0, %c0_i32, %c0_i32_0 : i32, i32, i32
  }
}

module attributes {stable_mosaic.version = 11 : i64} {
  func.func @dense_kernel(%arg0: i32, %arg1: memref<1x8x384xf32, #tpu.memory_space<vmem>>, %arg2: memref<2x208xf32, #tpu.memory_space<vmem>>, %arg3: memref<1x2x256xf32, #tpu.memory_space<vmem>>, %arg4: memref<208x256xf32, #tpu.memory_space<vmem>>) attributes {dimension_semantics = [#tpu.dimension_semantics<parallel>], iteration_bounds = array<i64: 2>, scalar_prefetch = 0 : i64, scratch_operands = 1 : i64, tpu.core_type = #tpu.core_type<tc>, window_params = [{transform_indices = @transform_0, window_bounds = array<i64: 1, 8, 384>}, {pipeline_mode = #tpu.pipeline_mode<synchronous>, transform_indices = @transform_1, window_bounds = array<i64: 2, 208>}, {transform_indices = @transform_2, window_bounds = array<i64: 1, 2, 256>}]} {
    %c0 = arith.constant 0 : index
    %c0_0 = arith.constant 0 : index
    %c0_1 = arith.constant 0 : index
    %0 = vector.load %arg1[%c0, %c0_0, %c0_1] : memref<1x8x384xf32, #tpu.memory_space<vmem>>, vector<1x8x384xf32>
    %1 = vector.shape_cast %0 : vector<1x8x384xf32> to vector<8x384xf32>
    %2 = arith.mulf %1, %1 : vector<8x384xf32>
    %cst = arith.constant dense<0.000000e+00> : vector<384xf32>
    %3 = vector.multi_reduction <add>, %2, %cst [0] : vector<8x384xf32> to vector<384xf32>
    %4 = vector.shape_cast %3 : vector<384xf32> to vector<1x384xf32>
    %cst_2 = arith.constant 8.100000e-03 : f32
    %5 = vector.broadcast %cst_2 : f32 to vector<1x384xf32>
    %6 = arith.cmpf ogt, %4, %5 : vector<1x384xf32>
    %7 = math.rsqrt %4 : vector<1x384xf32>
    %cst_3 = arith.constant 0.000000e+00 : f32
    %8 = vector.broadcast %cst_3 : f32 to vector<1x384xf32>
    %9 = arith.select %6, %7, %8 : vector<1x384xi1>, vector<1x384xf32>
    %10 = vector.broadcast %9 : vector<1x384xf32> to vector<8x384xf32>
    %11 = arith.mulf %1, %10 : vector<8x384xf32>
    %12 = vector.extract_strided_slice %11 {offsets = [0, 0], sizes = [8, 256], strides = [1, 1]} : vector<8x384xf32> to vector<8x256xf32>
    %c0_4 = arith.constant 0 : index
    %c0_5 = arith.constant 0 : index
    %13 = vector.load %arg4[%c0_4, %c0_5] : memref<208x256xf32, #tpu.memory_space<vmem>>, vector<8x256xf32>
    tpu.vector_store %arg4[%c0_4, %c0_5], %12 {strides = array<i32>} : memref<208x256xf32, #tpu.memory_space<vmem>>, vector<8x256xf32>,
    %14 = vector.extract_strided_slice %11 {offsets = [0, 1], sizes = [8, 256], strides = [1, 1]} : vector<8x384xf32> to vector<8x256xf32>
    %c8 = arith.constant 8 : index
    %c0_6 = arith.constant 0 : index
    %15 = vector.load %arg4[%c8, %c0_6] : memref<208x256xf32, #tpu.memory_space<vmem>>, vector<8x256xf32>
    tpu.vector_store %arg4[%c8, %c0_6], %14 {strides = array<i32>} : memref<208x256xf32, #tpu.memory_space<vmem>>, vector<8x256xf32>,
    %16 = vector.extract_strided_slice %11 {offsets = [0, 2], sizes = [8, 256], strides = [1, 1]} : vector<8x384xf32> to vector<8x256xf32>
    %c16 = arith.constant 16 : index
    %c0_7 = arith.constant 0 : index
    %17 = vector.load %arg4[%c16, %c0_7] : memref<208x256xf32, #tpu.memory_space<vmem>>, vector<8x256xf32>
    tpu.vector_store %arg4[%c16, %c0_7], %16 {strides = array<i32>} : memref<208x256xf32, #tpu.memory_space<vmem>>, vector<8x256xf32>,
    %18 = vector.extract_strided_slice %11 {offsets = [0, 3], sizes = [8, 256], strides = [1, 1]} : vector<8x384xf32> to vector<8x256xf32>
    %c24 = arith.constant 24 : index
    %c0_8 = arith.constant 0 : index
    %19 = vector.load %arg4[%c24, %c0_8] : memref<208x256xf32, #tpu.memory_space<vmem>>, vector<8x256xf32>
    tpu.vector_store %arg4[%c24, %c0_8], %18 {strides = array<i32>} : memref<208x256xf32, #tpu.memory_space<vmem>>, vector<8x256xf32>,
    %20 = vector.extract_strided_slice %11 {offsets = [0, 4], sizes = [8, 256], strides = [1, 1]} : vector<8x384xf32> to vector<8x256xf32>
    %c32 = arith.constant 32 : index
    %c0_9 = arith.constant 0 : index
    %21 = vector.load %arg4[%c32, %c0_9] : memref<208x256xf32, #tpu.memory_space<vmem>>, vector<8x256xf32>
    tpu.vector_store %arg4[%c32, %c0_9], %20 {strides = array<i32>} : memref<208x256xf32, #tpu.memory_space<vmem>>, vector<8x256xf32>,
    %22 = vector.extract_strided_slice %11 {offsets = [0, 16], sizes = [8, 256], strides = [1, 1]} : vector<8x384xf32> to vector<8x256xf32>
    %c40 = arith.constant 40 : index
    %c0_10 = arith.constant 0 : index
    %23 = vector.load %arg4[%c40, %c0_10] : memref<208x256xf32, #tpu.memory_space<vmem>>, vector<8x256xf32>
    tpu.vector_store %arg4[%c40, %c0_10], %22 {strides = array<i32>} : memref<208x256xf32, #tpu.memory_space<vmem>>, vector<8x256xf32>,
    %24 = vector.extract_strided_slice %11 {offsets = [0, 17], sizes = [8, 256], strides = [1, 1]} : vector<8x384xf32> to vector<8x256xf32>
    %c48 = arith.constant 48 : index
    %c0_11 = arith.constant 0 : index
    %25 = vector.load %arg4[%c48, %c0_11] : memref<208x256xf32, #tpu.memory_space<vmem>>, vector<8x256xf32>
    tpu.vector_store %arg4[%c48, %c0_11], %24 {strides = array<i32>} : memref<208x256xf32, #tpu.memory_space<vmem>>, vector<8x256xf32>,
    %26 = vector.extract_strided_slice %11 {offsets = [0, 18], sizes = [8, 256], strides = [1, 1]} : vector<8x384xf32> to vector<8x256xf32>
    %c56 = arith.constant 56 : index
    %c0_12 = arith.constant 0 : index
    %27 = vector.load %arg4[%c56, %c0_12] : memref<208x256xf32, #tpu.memory_space<vmem>>, vector<8x256xf32>
    tpu.vector_store %arg4[%c56, %c0_12], %26 {strides = array<i32>} : memref<208x256xf32, #tpu.memory_space<vmem>>, vector<8x256xf32>,
    %28 = vector.extract_strided_slice %11 {offsets = [0, 19], sizes = [8, 256], strides = [1, 1]} : vector<8x384xf32> to vector<8x256xf32>
    %c64 = arith.constant 64 : index
    %c0_13 = arith.constant 0 : index
    %29 = vector.load %arg4[%c64, %c0_13] : memref<208x256xf32, #tpu.memory_space<vmem>>, vector<8x256xf32>
    tpu.vector_store %arg4[%c64, %c0_13], %28 {strides = array<i32>} : memref<208x256xf32, #tpu.memory_space<vmem>>, vector<8x256xf32>,
    %30 = vector.extract_strided_slice %11 {offsets = [0, 20], sizes = [8, 256], strides = [1, 1]} : vector<8x384xf32> to vector<8x256xf32>
    %c72 = arith.constant 72 : index
    %c0_14 = arith.constant 0 : index
    %31 = vector.load %arg4[%c72, %c0_14] : memref<208x256xf32, #tpu.memory_space<vmem>>, vector<8x256xf32>
    tpu.vector_store %arg4[%c72, %c0_14], %30 {strides = array<i32>} : memref<208x256xf32, #tpu.memory_space<vmem>>, vector<8x256xf32>,
    %32 = vector.extract_strided_slice %11 {offsets = [0, 32], sizes = [8, 256], strides = [1, 1]} : vector<8x384xf32> to vector<8x256xf32>
    %c80 = arith.constant 80 : index
    %c0_15 = arith.constant 0 : index
    %33 = vector.load %arg4[%c80, %c0_15] : memref<208x256xf32, #tpu.memory_space<vmem>>, vector<8x256xf32>
    tpu.vector_store %arg4[%c80, %c0_15], %32 {strides = array<i32>} : memref<208x256xf32, #tpu.memory_space<vmem>>, vector<8x256xf32>,
    %34 = vector.extract_strided_slice %11 {offsets = [0, 33], sizes = [8, 256], strides = [1, 1]} : vector<8x384xf32> to vector<8x256xf32>
    %c88 = arith.constant 88 : index
    %c0_16 = arith.constant 0 : index
    %35 = vector.load %arg4[%c88, %c0_16] : memref<208x256xf32, #tpu.memory_space<vmem>>, vector<8x256xf32>
    tpu.vector_store %arg4[%c88, %c0_16], %34 {strides = array<i32>} : memref<208x256xf32, #tpu.memory_space<vmem>>, vector<8x256xf32>,
    %36 = vector.extract_strided_slice %11 {offsets = [0, 34], sizes = [8, 256], strides = [1, 1]} : vector<8x384xf32> to vector<8x256xf32>
    %c96 = arith.constant 96 : index
    %c0_17 = arith.constant 0 : index
    %37 = vector.load %arg4[%c96, %c0_17] : memref<208x256xf32, #tpu.memory_space<vmem>>, vector<8x256xf32>
    tpu.vector_store %arg4[%c96, %c0_17], %36 {strides = array<i32>} : memref<208x256xf32, #tpu.memory_space<vmem>>, vector<8x256xf32>,
    %38 = vector.extract_strided_slice %11 {offsets = [0, 35], sizes = [8, 256], strides = [1, 1]} : vector<8x384xf32> to vector<8x256xf32>
    %c104 = arith.constant 104 : index
    %c0_18 = arith.constant 0 : index
    %39 = vector.load %arg4[%c104, %c0_18] : memref<208x256xf32, #tpu.memory_space<vmem>>, vector<8x256xf32>
    tpu.vector_store %arg4[%c104, %c0_18], %38 {strides = array<i32>} : memref<208x256xf32, #tpu.memory_space<vmem>>, vector<8x256xf32>,
    %40 = vector.extract_strided_slice %11 {offsets = [0, 36], sizes = [8, 256], strides = [1, 1]} : vector<8x384xf32> to vector<8x256xf32>
    %c112 = arith.constant 112 : index
    %c0_19 = arith.constant 0 : index
    %41 = vector.load %arg4[%c112, %c0_19] : memref<208x256xf32, #tpu.memory_space<vmem>>, vector<8x256xf32>
    tpu.vector_store %arg4[%c112, %c0_19], %40 {strides = array<i32>} : memref<208x256xf32, #tpu.memory_space<vmem>>, vector<8x256xf32>,
    %42 = vector.extract_strided_slice %11 {offsets = [0, 48], sizes = [8, 256], strides = [1, 1]} : vector<8x384xf32> to vector<8x256xf32>
    %c120 = arith.constant 120 : index
    %c0_20 = arith.constant 0 : index
    %43 = vector.load %arg4[%c120, %c0_20] : memref<208x256xf32, #tpu.memory_space<vmem>>, vector<8x256xf32>
    tpu.vector_store %arg4[%c120, %c0_20], %42 {strides = array<i32>} : memref<208x256xf32, #tpu.memory_space<vmem>>, vector<8x256xf32>,
    %44 = vector.extract_strided_slice %11 {offsets = [0, 49], sizes = [8, 256], strides = [1, 1]} : vector<8x384xf32> to vector<8x256xf32>
    %c128 = arith.constant 128 : index
    %c0_21 = arith.constant 0 : index
    %45 = vector.load %arg4[%c128, %c0_21] : memref<208x256xf32, #tpu.memory_space<vmem>>, vector<8x256xf32>
    tpu.vector_store %arg4[%c128, %c0_21], %44 {strides = array<i32>} : memref<208x256xf32, #tpu.memory_space<vmem>>, vector<8x256xf32>,
    %46 = vector.extract_strided_slice %11 {offsets = [0, 50], sizes = [8, 256], strides = [1, 1]} : vector<8x384xf32> to vector<8x256xf32>
    %c136 = arith.constant 136 : index
    %c0_22 = arith.constant 0 : index
    %47 = vector.load %arg4[%c136, %c0_22] : memref<208x256xf32, #tpu.memory_space<vmem>>, vector<8x256xf32>
    tpu.vector_store %arg4[%c136, %c0_22], %46 {strides = array<i32>} : memref<208x256xf32, #tpu.memory_space<vmem>>, vector<8x256xf32>,
    %48 = vector.extract_strided_slice %11 {offsets = [0, 51], sizes = [8, 256], strides = [1, 1]} : vector<8x384xf32> to vector<8x256xf32>
    %c144 = arith.constant 144 : index
    %c0_23 = arith.constant 0 : index
    %49 = vector.load %arg4[%c144, %c0_23] : memref<208x256xf32, #tpu.memory_space<vmem>>, vector<8x256xf32>
    tpu.vector_store %arg4[%c144, %c0_23], %48 {strides = array<i32>} : memref<208x256xf32, #tpu.memory_space<vmem>>, vector<8x256xf32>,
    %50 = vector.extract_strided_slice %11 {offsets = [0, 52], sizes = [8, 256], strides = [1, 1]} : vector<8x384xf32> to vector<8x256xf32>
    %c152 = arith.constant 152 : index
    %c0_24 = arith.constant 0 : index
    %51 = vector.load %arg4[%c152, %c0_24] : memref<208x256xf32, #tpu.memory_space<vmem>>, vector<8x256xf32>
    tpu.vector_store %arg4[%c152, %c0_24], %50 {strides = array<i32>} : memref<208x256xf32, #tpu.memory_space<vmem>>, vector<8x256xf32>,
    %52 = vector.extract_strided_slice %11 {offsets = [0, 64], sizes = [8, 256], strides = [1, 1]} : vector<8x384xf32> to vector<8x256xf32>
    %c160 = arith.constant 160 : index
    %c0_25 = arith.constant 0 : index
    %53 = vector.load %arg4[%c160, %c0_25] : memref<208x256xf32, #tpu.memory_space<vmem>>, vector<8x256xf32>
    tpu.vector_store %arg4[%c160, %c0_25], %52 {strides = array<i32>} : memref<208x256xf32, #tpu.memory_space<vmem>>, vector<8x256xf32>,
    %54 = vector.extract_strided_slice %11 {offsets = [0, 65], sizes = [8, 256], strides = [1, 1]} : vector<8x384xf32> to vector<8x256xf32>
    %c168 = arith.constant 168 : index
    %c0_26 = arith.constant 0 : index
    %55 = vector.load %arg4[%c168, %c0_26] : memref<208x256xf32, #tpu.memory_space<vmem>>, vector<8x256xf32>
    tpu.vector_store %arg4[%c168, %c0_26], %54 {strides = array<i32>} : memref<208x256xf32, #tpu.memory_space<vmem>>, vector<8x256xf32>,
    %56 = vector.extract_strided_slice %11 {offsets = [0, 66], sizes = [8, 256], strides = [1, 1]} : vector<8x384xf32> to vector<8x256xf32>
    %c176 = arith.constant 176 : index
    %c0_27 = arith.constant 0 : index
    %57 = vector.load %arg4[%c176, %c0_27] : memref<208x256xf32, #tpu.memory_space<vmem>>, vector<8x256xf32>
    tpu.vector_store %arg4[%c176, %c0_27], %56 {strides = array<i32>} : memref<208x256xf32, #tpu.memory_space<vmem>>, vector<8x256xf32>,
    %58 = vector.extract_strided_slice %11 {offsets = [0, 67], sizes = [8, 256], strides = [1, 1]} : vector<8x384xf32> to vector<8x256xf32>
    %c184 = arith.constant 184 : index
    %c0_28 = arith.constant 0 : index
    %59 = vector.load %arg4[%c184, %c0_28] : memref<208x256xf32, #tpu.memory_space<vmem>>, vector<8x256xf32>
    tpu.vector_store %arg4[%c184, %c0_28], %58 {strides = array<i32>} : memref<208x256xf32, #tpu.memory_space<vmem>>, vector<8x256xf32>,
    %60 = vector.extract_strided_slice %11 {offsets = [0, 68], sizes = [8, 256], strides = [1, 1]} : vector<8x384xf32> to vector<8x256xf32>
    %c192 = arith.constant 192 : index
    %c0_29 = arith.constant 0 : index
    %61 = vector.load %arg4[%c192, %c0_29] : memref<208x256xf32, #tpu.memory_space<vmem>>, vector<8x256xf32>
    tpu.vector_store %arg4[%c192, %c0_29], %60 {strides = array<i32>} : memref<208x256xf32, #tpu.memory_space<vmem>>, vector<8x256xf32>,
    %cst_30 = arith.constant 1.000000e+00 : f32
    %62 = vector.broadcast %cst_30 : f32 to vector<8x256xf32>
    %c200 = arith.constant 200 : index
    %c0_31 = arith.constant 0 : index
    %63 = vector.load %arg4[%c200, %c0_31] : memref<208x256xf32, #tpu.memory_space<vmem>>, vector<8x256xf32>
    tpu.vector_store %arg4[%c200, %c0_31], %62 {strides = array<i32>} : memref<208x256xf32, #tpu.memory_space<vmem>>, vector<8x256xf32>,
    %c0_32 = arith.constant 0 : index
    %c0_33 = arith.constant 0 : index
    %64 = vector.load %arg2[%c0_32, %c0_33] : memref<2x208xf32, #tpu.memory_space<vmem>>, vector<2x208xf32>
    %c0_34 = arith.constant 0 : index
    %c0_35 = arith.constant 0 : index
    %65 = vector.load %arg4[%c0_34, %c0_35] : memref<208x256xf32, #tpu.memory_space<vmem>>, vector<208x256xf32>
    %cst_36 = arith.constant dense<0.000000e+00> : vector<2x256xf32>
    %66 = tpu.matmul %64, %65, %cst_36 {dimension_numbers = #tpu.dot_dimension_numbers<[1], [0], [0], [1], [0, 0, 1, 1], [], []>} : vector<2x208xf32>, vector<208x256xf32>, vector<2x256xf32> -> vector<2x256xf32>
    %cst_37 = arith.constant 0.000000e+00 : f32
    %67 = vector.broadcast %cst_37 : f32 to vector<2x256xf32>
    %68 = arith.subf %67, %66 : vector<2x256xf32>
    %69 = math.exp %68 : vector<2x256xf32>
    %cst_38 = arith.constant 1.000000e+00 : f32
    %70 = vector.broadcast %cst_38 : f32 to vector<2x256xf32>
    %71 = arith.addf %70, %69 : vector<2x256xf32>
    %72 = tpu.reciprocal %71 {approx = true} : vector<2x256xf32> -> vector<2x256xf32>
    %c0_39 = arith.constant 0 : index
    %c0_40 = arith.constant 0 : index
    %c0_41 = arith.constant 0 : index
    %73 = vector.load %arg3[%c0_39, %c0_40, %c0_41] : memref<1x2x256xf32, #tpu.memory_space<vmem>>, vector<1x2x256xf32>
    %74 = vector.shape_cast %73 : vector<1x2x256xf32> to vector<2x256xf32>
    %75 = vector.shape_cast %72 : vector<2x256xf32> to vector<1x2x256xf32>
    tpu.vector_store %arg3[%c0_39, %c0_40, %c0_41], %75 {strides = array<i32>} : memref<1x2x256xf32, #tpu.memory_space<vmem>>, vector<1x2x256xf32>,
    return
  }
  func.func @transform_0(%arg0: i32) -> (i32, i32, i32) {
    %c0_i32 = arith.constant 0 : i32
    %c0_i32_0 = arith.constant 0 : i32
    %c0_i32_1 = arith.constant 0 : i32
    return %arg0, %c0_i32, %c0_i32_0 : i32, i32, i32
  }
  func.func @transform_1(%arg0: i32) -> (i32, i32) {
    %c0_i32 = arith.constant 0 : i32
    %c0_i32_0 = arith.constant 0 : i32
    %c0_i32_1 = arith.constant 0 : i32
    return %c0_i32, %c0_i32_0 : i32, i32
  }
  func.func @transform_2(%arg0: i32) -> (i32, i32, i32) {
    %c0_i32 = arith.constant 0 : i32
    %c0_i32_0 = arith.constant 0 : i32
    %c0_i32_1 = arith.constant 0 : i32
    return %arg0, %c0_i32, %c0_i32_0 : i32, i32, i32
  }
}

module attributes {stable_mosaic.version = 11 : i64} {
  func.func @kern(%arg0: i32, %arg1: i32, %arg2: memref<1x2x128xf32, #tpu.memory_space<vmem>>, %arg3: memref<1x8x256xf32, #tpu.memory_space<vmem>>, %arg4: memref<1x8x64xf32, #tpu.memory_space<vmem>>, %arg5: memref<128x128xf32, #tpu.memory_space<vmem>>, %arg6: memref<1x8x128xf32, #tpu.memory_space<vmem>>) attributes {dimension_semantics = [#tpu.dimension_semantics<parallel>, #tpu.dimension_semantics<arbitrary>], iteration_bounds = array<i64: 2, 2>, scalar_prefetch = 0 : i64, scratch_operands = 0 : i64, tpu.core_type = #tpu.core_type<tc>, window_params = [{transform_indices = @transform_0, window_bounds = array<i64: 1, 2, 128>}, {transform_indices = @transform_1, window_bounds = array<i64: 1, 8, 256>}, {transform_indices = @transform_2, window_bounds = array<i64: 1, 8, 64>}, {transform_indices = @transform_3, window_bounds = array<i64: 128, 128>}, {transform_indices = @transform_4, window_bounds = array<i64: 1, 8, 128>}]} {
    %c0 = arith.constant 0 : index
    %c0_0 = arith.constant 0 : index
    %c0_1 = arith.constant 0 : index
    %0 = vector.load %arg2[%c0, %c0_0, %c0_1] : memref<1x2x128xf32, #tpu.memory_space<vmem>>, vector<1x2x128xf32>
    %1 = vector.shape_cast %0 : vector<1x2x128xf32> to vector<2x128xf32>
    %2 = vector.extract_strided_slice %1 {offsets = [0, 0], sizes = [1, 128], strides = [1, 1]} : vector<2x128xf32> to vector<1x128xf32>
    %3 = vector.extract_strided_slice %1 {offsets = [1, 0], sizes = [1, 128], strides = [1, 1]} : vector<2x128xf32> to vector<1x128xf32>
    %c0_2 = arith.constant 0 : index
    %c0_3 = arith.constant 0 : index
    %c0_4 = arith.constant 0 : index
    %4 = vector.load %arg3[%c0_2, %c0_3, %c0_4] : memref<1x8x256xf32, #tpu.memory_space<vmem>>, vector<1x8x256xf32>
    %5 = vector.shape_cast %4 : vector<1x8x256xf32> to vector<8x256xf32>
    %cst = arith.constant 1.000000e+00 : f32
    %6 = vector.broadcast %cst : f32 to vector<1x128xf32>
    %7 = arith.addf %2, %6 : vector<1x128xf32>
    %cst_5 = arith.constant 1.600000e+01 : f32
    %8 = vector.broadcast %cst_5 : f32 to vector<1x128xf32>
    %9 = arith.mulf %7, %8 : vector<1x128xf32>
    %cst_6 = arith.constant 1.000000e+00 : f32
    %10 = vector.broadcast %cst_6 : f32 to vector<1x128xf32>
    %11 = arith.subf %9, %10 : vector<1x128xf32>
    %cst_7 = arith.constant 5.000000e-01 : f32
    %12 = vector.broadcast %cst_7 : f32 to vector<1x128xf32>
    %13 = arith.mulf %11, %12 : vector<1x128xf32>
    %cst_8 = arith.constant 1.000000e+00 : f32
    %14 = vector.broadcast %cst_8 : f32 to vector<1x128xf32>
    %15 = arith.addf %3, %14 : vector<1x128xf32>
    %cst_9 = arith.constant 1.600000e+01 : f32
    %16 = vector.broadcast %cst_9 : f32 to vector<1x128xf32>
    %17 = arith.mulf %15, %16 : vector<1x128xf32>
    %cst_10 = arith.constant 1.000000e+00 : f32
    %18 = vector.broadcast %cst_10 : f32 to vector<1x128xf32>
    %19 = arith.subf %17, %18 : vector<1x128xf32>
    %cst_11 = arith.constant 5.000000e-01 : f32
    %20 = vector.broadcast %cst_11 : f32 to vector<1x128xf32>
    %21 = arith.mulf %19, %20 : vector<1x128xf32>
    %22 = math.floor %13 : vector<1x128xf32>
    %23 = math.floor %21 : vector<1x128xf32>
    %cst_12 = arith.constant 1.000000e+00 : f32
    %24 = vector.broadcast %cst_12 : f32 to vector<1x128xf32>
    %25 = arith.addf %22, %24 : vector<1x128xf32>
    %cst_13 = arith.constant 1.000000e+00 : f32
    %26 = vector.broadcast %cst_13 : f32 to vector<1x128xf32>
    %27 = arith.addf %23, %26 : vector<1x128xf32>
    %28 = arith.subf %13, %22 : vector<1x128xf32>
    %cst_14 = arith.constant 1.000000e+00 : f32
    %29 = vector.broadcast %cst_14 : f32 to vector<1x128xf32>
    %30 = arith.subf %29, %28 : vector<1x128xf32>
    %31 = arith.subf %21, %23 : vector<1x128xf32>
    %cst_15 = arith.constant 1.000000e+00 : f32
    %32 = vector.broadcast %cst_15 : f32 to vector<1x128xf32>
    %33 = arith.subf %32, %31 : vector<1x128xf32>
    %34 = tpu.iota {dimensions = array<i32: 0>} : vector<256x1xi32>
    %35 = arith.sitofp %34 : vector<256x1xi32> to vector<256x1xf32>
    %36 = arith.mulf %33, %30 : vector<1x128xf32>
    %cst_16 = arith.constant 0.000000e+00 : f32
    %37 = vector.broadcast %cst_16 : f32 to vector<1x128xf32>
    %38 = arith.cmpf oge, %22, %37 : vector<1x128xf32>
    %cst_17 = arith.constant 1.500000e+01 : f32
    %39 = vector.broadcast %cst_17 : f32 to vector<1x128xf32>
    %40 = arith.cmpf ole, %22, %39 : vector<1x128xf32>
    %41 = arith.andi %38, %40 : vector<1x128xi1>
    %cst_18 = arith.constant 0.000000e+00 : f32
    %42 = vector.broadcast %cst_18 : f32 to vector<1x128xf32>
    %43 = arith.cmpf oge, %23, %42 : vector<1x128xf32>
    %44 = arith.andi %41, %43 : vector<1x128xi1>
    %cst_19 = arith.constant 1.500000e+01 : f32
    %45 = vector.broadcast %cst_19 : f32 to vector<1x128xf32>
    %46 = arith.cmpf ole, %23, %45 : vector<1x128xf32>
    %47 = arith.andi %44, %46 : vector<1x128xi1>
    %cst_20 = arith.constant 0.000000e+00 : f32
    %48 = vector.broadcast %cst_20 : f32 to vector<1x128xf32>
    %49 = arith.select %47, %36, %48 : vector<1x128xi1>, vector<1x128xf32>
    %cst_21 = arith.constant 1.600000e+01 : f32
    %50 = vector.broadcast %cst_21 : f32 to vector<1x128xf32>
    %51 = arith.mulf %23, %50 : vector<1x128xf32>
    %52 = arith.addf %51, %22 : vector<1x128xf32>
    %53 = vector.broadcast %35 : vector<256x1xf32> to vector<256x128xf32>
    %54 = vector.broadcast %52 : vector<1x128xf32> to vector<256x128xf32>
    %55 = arith.cmpf oeq, %53, %54 : vector<256x128xf32>
    %cst_22 = arith.constant 0.000000e+00 : f32
    %56 = vector.shape_cast %49 : vector<1x128xf32> to vector<1x128xf32>
    %57 = vector.broadcast %56 : vector<1x128xf32> to vector<256x128xf32>
    %58 = vector.broadcast %cst_22 : f32 to vector<256x128xf32>
    %59 = arith.select %55, %57, %58 : vector<256x128xi1>, vector<256x128xf32>
    %60 = arith.mulf %33, %28 : vector<1x128xf32>
    %cst_23 = arith.constant 0.000000e+00 : f32
    %61 = vector.broadcast %cst_23 : f32 to vector<1x128xf32>
    %62 = arith.cmpf oge, %25, %61 : vector<1x128xf32>
    %cst_24 = arith.constant 1.500000e+01 : f32
    %63 = vector.broadcast %cst_24 : f32 to vector<1x128xf32>
    %64 = arith.cmpf ole, %25, %63 : vector<1x128xf32>
    %65 = arith.andi %62, %64 : vector<1x128xi1>
    %cst_25 = arith.constant 0.000000e+00 : f32
    %66 = vector.broadcast %cst_25 : f32 to vector<1x128xf32>
    %67 = arith.cmpf oge, %23, %66 : vector<1x128xf32>
    %68 = arith.andi %65, %67 : vector<1x128xi1>
    %cst_26 = arith.constant 1.500000e+01 : f32
    %69 = vector.broadcast %cst_26 : f32 to vector<1x128xf32>
    %70 = arith.cmpf ole, %23, %69 : vector<1x128xf32>
    %71 = arith.andi %68, %70 : vector<1x128xi1>
    %cst_27 = arith.constant 0.000000e+00 : f32
    %72 = vector.broadcast %cst_27 : f32 to vector<1x128xf32>
    %73 = arith.select %71, %60, %72 : vector<1x128xi1>, vector<1x128xf32>
    %cst_28 = arith.constant 1.600000e+01 : f32
    %74 = vector.broadcast %cst_28 : f32 to vector<1x128xf32>
    %75 = arith.mulf %23, %74 : vector<1x128xf32>
    %76 = arith.addf %75, %25 : vector<1x128xf32>
    %77 = vector.broadcast %35 : vector<256x1xf32> to vector<256x128xf32>
    %78 = vector.broadcast %76 : vector<1x128xf32> to vector<256x128xf32>
    %79 = arith.cmpf oeq, %77, %78 : vector<256x128xf32>
    %cst_29 = arith.constant 0.000000e+00 : f32
    %80 = vector.shape_cast %73 : vector<1x128xf32> to vector<1x128xf32>
    %81 = vector.broadcast %80 : vector<1x128xf32> to vector<256x128xf32>
    %82 = vector.broadcast %cst_29 : f32 to vector<256x128xf32>
    %83 = arith.select %79, %81, %82 : vector<256x128xi1>, vector<256x128xf32>
    %84 = arith.addf %59, %83 : vector<256x128xf32>
    %85 = arith.mulf %31, %30 : vector<1x128xf32>
    %cst_30 = arith.constant 0.000000e+00 : f32
    %86 = vector.broadcast %cst_30 : f32 to vector<1x128xf32>
    %87 = arith.cmpf oge, %22, %86 : vector<1x128xf32>
    %cst_31 = arith.constant 1.500000e+01 : f32
    %88 = vector.broadcast %cst_31 : f32 to vector<1x128xf32>
    %89 = arith.cmpf ole, %22, %88 : vector<1x128xf32>
    %90 = arith.andi %87, %89 : vector<1x128xi1>
    %cst_32 = arith.constant 0.000000e+00 : f32
    %91 = vector.broadcast %cst_32 : f32 to vector<1x128xf32>
    %92 = arith.cmpf oge, %27, %91 : vector<1x128xf32>
    %93 = arith.andi %90, %92 : vector<1x128xi1>
    %cst_33 = arith.constant 1.500000e+01 : f32
    %94 = vector.broadcast %cst_33 : f32 to vector<1x128xf32>
    %95 = arith.cmpf ole, %27, %94 : vector<1x128xf32>
    %96 = arith.andi %93, %95 : vector<1x128xi1>
    %cst_34 = arith.constant 0.000000e+00 : f32
    %97 = vector.broadcast %cst_34 : f32 to vector<1x128xf32>
    %98 = arith.select %96, %85, %97 : vector<1x128xi1>, vector<1x128xf32>
    %cst_35 = arith.constant 1.600000e+01 : f32
    %99 = vector.broadcast %cst_35 : f32 to vector<1x128xf32>
    %100 = arith.mulf %27, %99 : vector<1x128xf32>
    %101 = arith.addf %100, %22 : vector<1x128xf32>
    %102 = vector.broadcast %35 : vector<256x1xf32> to vector<256x128xf32>
    %103 = vector.broadcast %101 : vector<1x128xf32> to vector<256x128xf32>
    %104 = arith.cmpf oeq, %102, %103 : vector<256x128xf32>
    %cst_36 = arith.constant 0.000000e+00 : f32
    %105 = vector.shape_cast %98 : vector<1x128xf32> to vector<1x128xf32>
    %106 = vector.broadcast %105 : vector<1x128xf32> to vector<256x128xf32>
    %107 = vector.broadcast %cst_36 : f32 to vector<256x128xf32>
    %108 = arith.select %104, %106, %107 : vector<256x128xi1>, vector<256x128xf32>
    %109 = arith.addf %84, %108 : vector<256x128xf32>
    %110 = arith.mulf %31, %28 : vector<1x128xf32>
    %cst_37 = arith.constant 0.000000e+00 : f32
    %111 = vector.broadcast %cst_37 : f32 to vector<1x128xf32>
    %112 = arith.cmpf oge, %25, %111 : vector<1x128xf32>
    %cst_38 = arith.constant 1.500000e+01 : f32
    %113 = vector.broadcast %cst_38 : f32 to vector<1x128xf32>
    %114 = arith.cmpf ole, %25, %113 : vector<1x128xf32>
    %115 = arith.andi %112, %114 : vector<1x128xi1>
    %cst_39 = arith.constant 0.000000e+00 : f32
    %116 = vector.broadcast %cst_39 : f32 to vector<1x128xf32>
    %117 = arith.cmpf oge, %27, %116 : vector<1x128xf32>
    %118 = arith.andi %115, %117 : vector<1x128xi1>
    %cst_40 = arith.constant 1.500000e+01 : f32
    %119 = vector.broadcast %cst_40 : f32 to vector<1x128xf32>
    %120 = arith.cmpf ole, %27, %119 : vector<1x128xf32>
    %121 = arith.andi %118, %120 : vector<1x128xi1>
    %cst_41 = arith.constant 0.000000e+00 : f32
    %122 = vector.broadcast %cst_41 : f32 to vector<1x128xf32>
    %123 = arith.select %121, %110, %122 : vector<1x128xi1>, vector<1x128xf32>
    %cst_42 = arith.constant 1.600000e+01 : f32
    %124 = vector.broadcast %cst_42 : f32 to vector<1x128xf32>
    %125 = arith.mulf %27, %124 : vector<1x128xf32>
    %126 = arith.addf %125, %25 : vector<1x128xf32>
    %127 = vector.broadcast %35 : vector<256x1xf32> to vector<256x128xf32>
    %128 = vector.broadcast %126 : vector<1x128xf32> to vector<256x128xf32>
    %129 = arith.cmpf oeq, %127, %128 : vector<256x128xf32>
    %cst_43 = arith.constant 0.000000e+00 : f32
    %130 = vector.shape_cast %123 : vector<1x128xf32> to vector<1x128xf32>
    %131 = vector.broadcast %130 : vector<1x128xf32> to vector<256x128xf32>
    %132 = vector.broadcast %cst_43 : f32 to vector<256x128xf32>
    %133 = arith.select %129, %131, %132 : vector<256x128xi1>, vector<256x128xf32>
    %134 = arith.addf %109, %133 : vector<256x128xf32>
    %135 = arith.truncf %5 : vector<8x256xf32> to vector<8x256xbf16>
    %136 = arith.truncf %134 : vector<256x128xf32> to vector<256x128xbf16>
    %cst_44 = arith.constant dense<0.000000e+00> : vector<8x128xf32>
    %137 = tpu.matmul %135, %136, %cst_44 {dimension_numbers = #tpu.dot_dimension_numbers<[1], [0], [0], [1], [0, 0, 1, 1], [], []>} : vector<8x256xbf16>, vector<256x128xbf16>, vector<8x128xf32> -> vector<8x128xf32>
    %c0_45 = arith.constant 0 : index
    %c0_46 = arith.constant 0 : index
    %c0_47 = arith.constant 0 : index
    %138 = vector.load %arg4[%c0_45, %c0_46, %c0_47] : memref<1x8x64xf32, #tpu.memory_space<vmem>>, vector<1x8x64xf32>
    %139 = vector.shape_cast %138 : vector<1x8x64xf32> to vector<8x64xf32>
    %cst_48 = arith.constant 1.000000e+00 : f32
    %140 = vector.broadcast %cst_48 : f32 to vector<1x128xf32>
    %141 = arith.addf %2, %140 : vector<1x128xf32>
    %cst_49 = arith.constant 8.000000e+00 : f32
    %142 = vector.broadcast %cst_49 : f32 to vector<1x128xf32>
    %143 = arith.mulf %141, %142 : vector<1x128xf32>
    %cst_50 = arith.constant 1.000000e+00 : f32
    %144 = vector.broadcast %cst_50 : f32 to vector<1x128xf32>
    %145 = arith.subf %143, %144 : vector<1x128xf32>
    %cst_51 = arith.constant 5.000000e-01 : f32
    %146 = vector.broadcast %cst_51 : f32 to vector<1x128xf32>
    %147 = arith.mulf %145, %146 : vector<1x128xf32>
    %cst_52 = arith.constant 1.000000e+00 : f32
    %148 = vector.broadcast %cst_52 : f32 to vector<1x128xf32>
    %149 = arith.addf %3, %148 : vector<1x128xf32>
    %cst_53 = arith.constant 8.000000e+00 : f32
    %150 = vector.broadcast %cst_53 : f32 to vector<1x128xf32>
    %151 = arith.mulf %149, %150 : vector<1x128xf32>
    %cst_54 = arith.constant 1.000000e+00 : f32
    %152 = vector.broadcast %cst_54 : f32 to vector<1x128xf32>
    %153 = arith.subf %151, %152 : vector<1x128xf32>
    %cst_55 = arith.constant 5.000000e-01 : f32
    %154 = vector.broadcast %cst_55 : f32 to vector<1x128xf32>
    %155 = arith.mulf %153, %154 : vector<1x128xf32>
    %156 = math.floor %147 : vector<1x128xf32>
    %157 = math.floor %155 : vector<1x128xf32>
    %cst_56 = arith.constant 1.000000e+00 : f32
    %158 = vector.broadcast %cst_56 : f32 to vector<1x128xf32>
    %159 = arith.addf %156, %158 : vector<1x128xf32>
    %cst_57 = arith.constant 1.000000e+00 : f32
    %160 = vector.broadcast %cst_57 : f32 to vector<1x128xf32>
    %161 = arith.addf %157, %160 : vector<1x128xf32>
    %162 = arith.subf %147, %156 : vector<1x128xf32>
    %cst_58 = arith.constant 1.000000e+00 : f32
    %163 = vector.broadcast %cst_58 : f32 to vector<1x128xf32>
    %164 = arith.subf %163, %162 : vector<1x128xf32>
    %165 = arith.subf %155, %157 : vector<1x128xf32>
    %cst_59 = arith.constant 1.000000e+00 : f32
    %166 = vector.broadcast %cst_59 : f32 to vector<1x128xf32>
    %167 = arith.subf %166, %165 : vector<1x128xf32>
    %168 = tpu.iota {dimensions = array<i32: 0>} : vector<64x1xi32>
    %169 = arith.sitofp %168 : vector<64x1xi32> to vector<64x1xf32>
    %170 = arith.mulf %167, %164 : vector<1x128xf32>
    %cst_60 = arith.constant 0.000000e+00 : f32
    %171 = vector.broadcast %cst_60 : f32 to vector<1x128xf32>
    %172 = arith.cmpf oge, %156, %171 : vector<1x128xf32>
    %cst_61 = arith.constant 7.000000e+00 : f32
    %173 = vector.broadcast %cst_61 : f32 to vector<1x128xf32>
    %174 = arith.cmpf ole, %156, %173 : vector<1x128xf32>
    %175 = arith.andi %172, %174 : vector<1x128xi1>
    %cst_62 = arith.constant 0.000000e+00 : f32
    %176 = vector.broadcast %cst_62 : f32 to vector<1x128xf32>
    %177 = arith.cmpf oge, %157, %176 : vector<1x128xf32>
    %178 = arith.andi %175, %177 : vector<1x128xi1>
    %cst_63 = arith.constant 7.000000e+00 : f32
    %179 = vector.broadcast %cst_63 : f32 to vector<1x128xf32>
    %180 = arith.cmpf ole, %157, %179 : vector<1x128xf32>
    %181 = arith.andi %178, %180 : vector<1x128xi1>
    %cst_64 = arith.constant 0.000000e+00 : f32
    %182 = vector.broadcast %cst_64 : f32 to vector<1x128xf32>
    %183 = arith.select %181, %170, %182 : vector<1x128xi1>, vector<1x128xf32>
    %cst_65 = arith.constant 8.000000e+00 : f32
    %184 = vector.broadcast %cst_65 : f32 to vector<1x128xf32>
    %185 = arith.mulf %157, %184 : vector<1x128xf32>
    %186 = arith.addf %185, %156 : vector<1x128xf32>
    %187 = vector.broadcast %169 : vector<64x1xf32> to vector<64x128xf32>
    %188 = vector.broadcast %186 : vector<1x128xf32> to vector<64x128xf32>
    %189 = arith.cmpf oeq, %187, %188 : vector<64x128xf32>
    %cst_66 = arith.constant 0.000000e+00 : f32
    %190 = vector.shape_cast %183 : vector<1x128xf32> to vector<1x128xf32>
    %191 = vector.broadcast %190 : vector<1x128xf32> to vector<64x128xf32>
    %192 = vector.broadcast %cst_66 : f32 to vector<64x128xf32>
    %193 = arith.select %189, %191, %192 : vector<64x128xi1>, vector<64x128xf32>
    %194 = arith.mulf %167, %162 : vector<1x128xf32>
    %cst_67 = arith.constant 0.000000e+00 : f32
    %195 = vector.broadcast %cst_67 : f32 to vector<1x128xf32>
    %196 = arith.cmpf oge, %159, %195 : vector<1x128xf32>
    %cst_68 = arith.constant 7.000000e+00 : f32
    %197 = vector.broadcast %cst_68 : f32 to vector<1x128xf32>
    %198 = arith.cmpf ole, %159, %197 : vector<1x128xf32>
    %199 = arith.andi %196, %198 : vector<1x128xi1>
    %cst_69 = arith.constant 0.000000e+00 : f32
    %200 = vector.broadcast %cst_69 : f32 to vector<1x128xf32>
    %201 = arith.cmpf oge, %157, %200 : vector<1x128xf32>
    %202 = arith.andi %199, %201 : vector<1x128xi1>
    %cst_70 = arith.constant 7.000000e+00 : f32
    %203 = vector.broadcast %cst_70 : f32 to vector<1x128xf32>
    %204 = arith.cmpf ole, %157, %203 : vector<1x128xf32>
    %205 = arith.andi %202, %204 : vector<1x128xi1>
    %cst_71 = arith.constant 0.000000e+00 : f32
    %206 = vector.broadcast %cst_71 : f32 to vector<1x128xf32>
    %207 = arith.select %205, %194, %206 : vector<1x128xi1>, vector<1x128xf32>
    %cst_72 = arith.constant 8.000000e+00 : f32
    %208 = vector.broadcast %cst_72 : f32 to vector<1x128xf32>
    %209 = arith.mulf %157, %208 : vector<1x128xf32>
    %210 = arith.addf %209, %159 : vector<1x128xf32>
    %211 = vector.broadcast %169 : vector<64x1xf32> to vector<64x128xf32>
    %212 = vector.broadcast %210 : vector<1x128xf32> to vector<64x128xf32>
    %213 = arith.cmpf oeq, %211, %212 : vector<64x128xf32>
    %cst_73 = arith.constant 0.000000e+00 : f32
    %214 = vector.shape_cast %207 : vector<1x128xf32> to vector<1x128xf32>
    %215 = vector.broadcast %214 : vector<1x128xf32> to vector<64x128xf32>
    %216 = vector.broadcast %cst_73 : f32 to vector<64x128xf32>
    %217 = arith.select %213, %215, %216 : vector<64x128xi1>, vector<64x128xf32>
    %218 = arith.addf %193, %217 : vector<64x128xf32>
    %219 = arith.mulf %165, %164 : vector<1x128xf32>
    %cst_74 = arith.constant 0.000000e+00 : f32
    %220 = vector.broadcast %cst_74 : f32 to vector<1x128xf32>
    %221 = arith.cmpf oge, %156, %220 : vector<1x128xf32>
    %cst_75 = arith.constant 7.000000e+00 : f32
    %222 = vector.broadcast %cst_75 : f32 to vector<1x128xf32>
    %223 = arith.cmpf ole, %156, %222 : vector<1x128xf32>
    %224 = arith.andi %221, %223 : vector<1x128xi1>
    %cst_76 = arith.constant 0.000000e+00 : f32
    %225 = vector.broadcast %cst_76 : f32 to vector<1x128xf32>
    %226 = arith.cmpf oge, %161, %225 : vector<1x128xf32>
    %227 = arith.andi %224, %226 : vector<1x128xi1>
    %cst_77 = arith.constant 7.000000e+00 : f32
    %228 = vector.broadcast %cst_77 : f32 to vector<1x128xf32>
    %229 = arith.cmpf ole, %161, %228 : vector<1x128xf32>
    %230 = arith.andi %227, %229 : vector<1x128xi1>
    %cst_78 = arith.constant 0.000000e+00 : f32
    %231 = vector.broadcast %cst_78 : f32 to vector<1x128xf32>
    %232 = arith.select %230, %219, %231 : vector<1x128xi1>, vector<1x128xf32>
    %cst_79 = arith.constant 8.000000e+00 : f32
    %233 = vector.broadcast %cst_79 : f32 to vector<1x128xf32>
    %234 = arith.mulf %161, %233 : vector<1x128xf32>
    %235 = arith.addf %234, %156 : vector<1x128xf32>
    %236 = vector.broadcast %169 : vector<64x1xf32> to vector<64x128xf32>
    %237 = vector.broadcast %235 : vector<1x128xf32> to vector<64x128xf32>
    %238 = arith.cmpf oeq, %236, %237 : vector<64x128xf32>
    %cst_80 = arith.constant 0.000000e+00 : f32
    %239 = vector.shape_cast %232 : vector<1x128xf32> to vector<1x128xf32>
    %240 = vector.broadcast %239 : vector<1x128xf32> to vector<64x128xf32>
    %241 = vector.broadcast %cst_80 : f32 to vector<64x128xf32>
    %242 = arith.select %238, %240, %241 : vector<64x128xi1>, vector<64x128xf32>
    %243 = arith.addf %218, %242 : vector<64x128xf32>
    %244 = arith.mulf %165, %162 : vector<1x128xf32>
    %cst_81 = arith.constant 0.000000e+00 : f32
    %245 = vector.broadcast %cst_81 : f32 to vector<1x128xf32>
    %246 = arith.cmpf oge, %159, %245 : vector<1x128xf32>
    %cst_82 = arith.constant 7.000000e+00 : f32
    %247 = vector.broadcast %cst_82 : f32 to vector<1x128xf32>
    %248 = arith.cmpf ole, %159, %247 : vector<1x128xf32>
    %249 = arith.andi %246, %248 : vector<1x128xi1>
    %cst_83 = arith.constant 0.000000e+00 : f32
    %250 = vector.broadcast %cst_83 : f32 to vector<1x128xf32>
    %251 = arith.cmpf oge, %161, %250 : vector<1x128xf32>
    %252 = arith.andi %249, %251 : vector<1x128xi1>
    %cst_84 = arith.constant 7.000000e+00 : f32
    %253 = vector.broadcast %cst_84 : f32 to vector<1x128xf32>
    %254 = arith.cmpf ole, %161, %253 : vector<1x128xf32>
    %255 = arith.andi %252, %254 : vector<1x128xi1>
    %cst_85 = arith.constant 0.000000e+00 : f32
    %256 = vector.broadcast %cst_85 : f32 to vector<1x128xf32>
    %257 = arith.select %255, %244, %256 : vector<1x128xi1>, vector<1x128xf32>
    %cst_86 = arith.constant 8.000000e+00 : f32
    %258 = vector.broadcast %cst_86 : f32 to vector<1x128xf32>
    %259 = arith.mulf %161, %258 : vector<1x128xf32>
    %260 = arith.addf %259, %159 : vector<1x128xf32>
    %261 = vector.broadcast %169 : vector<64x1xf32> to vector<64x128xf32>
    %262 = vector.broadcast %260 : vector<1x128xf32> to vector<64x128xf32>
    %263 = arith.cmpf oeq, %261, %262 : vector<64x128xf32>
    %cst_87 = arith.constant 0.000000e+00 : f32
    %264 = vector.shape_cast %257 : vector<1x128xf32> to vector<1x128xf32>
    %265 = vector.broadcast %264 : vector<1x128xf32> to vector<64x128xf32>
    %266 = vector.broadcast %cst_87 : f32 to vector<64x128xf32>
    %267 = arith.select %263, %265, %266 : vector<64x128xi1>, vector<64x128xf32>
    %268 = arith.addf %243, %267 : vector<64x128xf32>
    %269 = arith.truncf %139 : vector<8x64xf32> to vector<8x64xbf16>
    %270 = arith.truncf %268 : vector<64x128xf32> to vector<64x128xbf16>
    %cst_88 = arith.constant dense<0.000000e+00> : vector<8x128xf32>
    %271 = tpu.matmul %269, %270, %cst_88 {dimension_numbers = #tpu.dot_dimension_numbers<[1], [0], [0], [1], [0, 0, 1, 1], [], []>} : vector<8x64xbf16>, vector<64x128xbf16>, vector<8x128xf32> -> vector<8x128xf32>
    %272 = arith.addf %137, %271 : vector<8x128xf32>
    %273 = arith.truncf %272 : vector<8x128xf32> to vector<8x128xbf16>
    %c0_89 = arith.constant 0 : index
    %c0_90 = arith.constant 0 : index
    %274 = vector.load %arg5[%c0_89, %c0_90] : memref<128x128xf32, #tpu.memory_space<vmem>>, vector<128x128xf32>
    %275 = arith.truncf %274 : vector<128x128xf32> to vector<128x128xbf16>
    %cst_91 = arith.constant dense<0.000000e+00> : vector<8x128xf32>
    %276 = tpu.matmul %273, %275, %cst_91 {dimension_numbers = #tpu.dot_dimension_numbers<[1], [0], [0], [1], [0, 0, 1, 1], [], []>} : vector<8x128xbf16>, vector<128x128xbf16>, vector<8x128xf32> -> vector<8x128xf32>
    %c0_i32 = arith.constant 0 : i32
    %277 = arith.cmpi eq, %arg1, %c0_i32 : i32
    %278 = arith.extui %277 : i1 to i32
    %c0_i32_92 = arith.constant 0 : i32
    %279 = arith.cmpi ne, %278, %c0_i32_92 : i32
    scf.if %279 {
      %cst_99 = arith.constant 0.000000e+00 : f32
      %286 = vector.broadcast %cst_99 : f32 to vector<1x8x128xf32>
      %c0_100 = arith.constant 0 : index
      %c0_101 = arith.constant 0 : index
      %c0_102 = arith.constant 0 : index
      %287 = vector.load %arg6[%c0_100, %c0_101, %c0_102] : memref<1x8x128xf32, #tpu.memory_space<vmem>>, vector<1x8x128xf32>
      tpu.vector_store %arg6[%c0_100, %c0_101, %c0_102], %286 {strides = array<i32>} : memref<1x8x128xf32, #tpu.memory_space<vmem>>, vector<1x8x128xf32>,
    } else {
    }
    %c0_93 = arith.constant 0 : index
    %c0_94 = arith.constant 0 : index
    %c0_95 = arith.constant 0 : index
    %280 = vector.load %arg6[%c0_93, %c0_94, %c0_95] : memref<1x8x128xf32, #tpu.memory_space<vmem>>, vector<1x8x128xf32>
    %281 = vector.shape_cast %280 : vector<1x8x128xf32> to vector<8x128xf32>
    %282 = arith.addf %281, %276 : vector<8x128xf32>
    %c0_96 = arith.constant 0 : index
    %c0_97 = arith.constant 0 : index
    %c0_98 = arith.constant 0 : index
    %283 = vector.load %arg6[%c0_96, %c0_97, %c0_98] : memref<1x8x128xf32, #tpu.memory_space<vmem>>, vector<1x8x128xf32>
    %284 = vector.shape_cast %283 : vector<1x8x128xf32> to vector<8x128xf32>
    %285 = vector.shape_cast %282 : vector<8x128xf32> to vector<1x8x128xf32>
    tpu.vector_store %arg6[%c0_96, %c0_97, %c0_98], %285 {strides = array<i32>} : memref<1x8x128xf32, #tpu.memory_space<vmem>>, vector<1x8x128xf32>,
    return
  }
  func.func @transform_0(%arg0: i32, %arg1: i32) -> (i32, i32, i32) {
    %c0_i32 = arith.constant 0 : i32
    %c0_i32_0 = arith.constant 0 : i32
    return %arg0, %c0_i32, %arg1 : i32, i32, i32
  }
  func.func @transform_1(%arg0: i32, %arg1: i32) -> (i32, i32, i32) {
    %c0_i32 = arith.constant 0 : i32
    %c0_i32_0 = arith.constant 0 : i32
    %c0_i32_1 = arith.constant 0 : i32
    return %arg0, %c0_i32, %c0_i32_0 : i32, i32, i32
  }
  func.func @transform_2(%arg0: i32, %arg1: i32) -> (i32, i32, i32) {
    %c0_i32 = arith.constant 0 : i32
    %c0_i32_0 = arith.constant 0 : i32
    %c0_i32_1 = arith.constant 0 : i32
    return %arg0, %c0_i32, %c0_i32_0 : i32, i32, i32
  }
  func.func @transform_3(%arg0: i32, %arg1: i32) -> (i32, i32) {
    %c0_i32 = arith.constant 0 : i32
    %c0_i32_0 = arith.constant 0 : i32
    return %arg1, %c0_i32 : i32, i32
  }
  func.func @transform_4(%arg0: i32, %arg1: i32) -> (i32, i32, i32) {
    %c0_i32 = arith.constant 0 : i32
    %c0_i32_0 = arith.constant 0 : i32
    %c0_i32_1 = arith.constant 0 : i32
    return %arg0, %c0_i32, %c0_i32_0 : i32, i32, i32
  }
}

</mosaic_0001>

<llo_original>
// kernel: neko_lens_fuse_forward.4
$region0: #{neko_lens_fuse_forward.4}
  #allocation0 [shape = 'u32[]', space=smem, size = 0x4, offset = 0x4, fixed_abs, tag = 'smem constant byte address 0x4 - core index']
  #allocation1 [shape = 'u32[144,128]{1,0:T(1,128)}', space=vmem, size = 0x12000, scoped, tag = 'internal scratch']
  #allocation2 [shape = 'f32[208,128]{1,0:T(8,128)}', space=vmem, size = 0x1a000, scoped, tag = 'scratch operand']
  %s0 = inlined_call_operand.vmem [shape: f32[2,8,256], index: 0, kind: input, shape index: {}]
  %s1 = inlined_call_operand.vmem [shape: f32[2,208], index: 1, kind: input, shape index: {}]
  %s2 = inlined_call_operand.vmem [shape: f32[2,2,128], index: 2, kind: output, shape index: {}]
  %s3 = sld [smem:[#allocation0]]
  $region41: #{neko_lens_fuse_forward.4} parent=0
    _
  %s5 = ssub.s32 1, %s3
  %s6 = scalar_select 0, %s5, %s3
  loop: start=0, step=1, limit=4
  $region2: #{neko_lens_fuse_forward.4} parent=0 // loop_pre_header
    _
  $region3: #{neko_lens_fuse_forward.4} parent=0 // loop_header
    %s8 = sphi 0, %s12
    %p9 = scmp.ge.s32.totalorder %s8, 4
    %s18 = sphi 0, %s20
    %s21 = sphi 0, %s18
    %s22 = sphi 0, %s21
    %s38 = sphi 0, %s22
    %s42 = sphi 0, %s42
    %s44 = sphi 0, %s42
    %s45 = sphi 0, %s44
    %s59 = sphi 0, %s45
    %s65 = sphi 0, %s67
    %s68 = sphi 0, %s65
    %s69 = sphi 0, %s68
    %s85 = sphi 0, %s69
  $region4: #{neko_lens_fuse_forward.4} parent=0 // loop_header_branch
    %11 = sbr.rel (%p9) target = $region8
  $region5: #{neko_lens_fuse_forward.4} parent=0 // loop_body
    %s13 = ssub.s32 %s8, 1
    %s14 = ssub.s32 %s8, 2
    %s15 = sadd.s32 %s8, 1
    %s16 = ssub.s32 %s8, %s15
    %p17 = scmp.eq.s32.totalorder %s16, 0
    %s19 = sadd.s32 %s18, 1
    %s20 = scalar_select %p17, %s18, %s19
    %p23 = pneg %p17
    %p24 = scmp.eq.s32.totalorder %s8, 1
    %p25 = por %p23, %p24
    %p26 = scmp.ne.s32.totalorder %s18, %s21
    %p27 = scmp.eq.s32.totalorder %s8, 0
    %p28 = por %p26, %p27
    %p29 = scmp.ne.s32.totalorder %s18, %s21
    %p30 = scmp.eq.s32.totalorder %s13, 1
    %p31 = por %p29, %p30
    %p32 = scmp.ne.s32.totalorder %s21, %s22
    %p33 = scmp.eq.s32.totalorder %s13, 0
    %p34 = por %p32, %p33
    %p35 = scmp.ne.s32.totalorder %s21, %s22
    %p36 = scmp.eq.s32.totalorder %s14, 1
    %p37 = por %p35, %p36
    %p39 = scmp.ne.s32.totalorder %s22, %s38
    %p40 = scmp.eq.s32.totalorder %s14, 0
    %p41 = por %p39, %p40
    %s43 = sadd.s32 %s42, 1
    %p46 = scmp.eq.s32.totalorder %s8, 1
    %p47 = scmp.ne.s32.totalorder %s42, %s44
    %p48 = scmp.eq.s32.totalorder %s8, 0
    %p49 = por %p47, %p48
    %p50 = scmp.ne.s32.totalorder %s42, %s44
    %p51 = scmp.eq.s32.totalorder %s13, 1
    %p52 = por %p50, %p51
    %p53 = scmp.ne.s32.totalorder %s44, %s45
    %p54 = scmp.eq.s32.totalorder %s13, 0
    %p55 = por %p53, %p54
    %p56 = scmp.ne.s32.totalorder %s44, %s45
    %p57 = scmp.eq.s32.totalorder %s14, 1
    %p58 = por %p56, %p57
    %p60 = scmp.ne.s32.totalorder %s45, %s59
    %p61 = scmp.eq.s32.totalorder %s14, 0
    %p62 = por %p60, %p61
    %s63 = ssub.s32 %s8, %s15
    %p64 = scmp.eq.s32.totalorder %s63, 0
    %s66 = sadd.s32 %s65, 1
    %s67 = scalar_select %p64, %s65, %s66
    %p70 = pneg %p64
    %p71 = scmp.eq.s32.totalorder %s8, 1
    %p72 = por %p70, %p71
    %p73 = scmp.ne.s32.totalorder %s65, %s68
    %p74 = scmp.eq.s32.totalorder %s8, 0
    %p75 = por %p73, %p74
    %p76 = scmp.ne.s32.totalorder %s65, %s68
    %p77 = scmp.eq.s32.totalorder %s13, 1
    %p78 = por %p76, %p77
    %p79 = scmp.ne.s32.totalorder %s68, %s69
    %p80 = scmp.eq.s32.totalorder %s13, 0
    %p81 = por %p79, %p80
    %p82 = scmp.ne.s32.totalorder %s68, %s69
    %p83 = scmp.eq.s32.totalorder %s14, 1
    %p84 = por %p82, %p83
    %p86 = scmp.ne.s32.totalorder %s69, %s85
    %p87 = scmp.eq.s32.totalorder %s14, 0
    %p88 = por %p86, %p87
    %p89 = scmp.le.s32.totalorder 1, %s8
    %p90 = scmp.lt.s32.totalorder %s8, 3
    %p91 = pnand %p89, %p90
    %p92 = pneg %p91
    // Predicated region
    $region9: #{neko_lens_fuse_forward.4} parent=5 // pred_check
      _
    $region10: #{neko_lens_fuse_forward.4} parent=5 // pred_check_branch
      %94 = sbr.rel (%p91) target = $region12
    $region11: #{neko_lens_fuse_forward.4} parent=5 // pred_region
      %s95 = ssub.s32 %s8, 1
      // Predicated region
      $region13: #{neko_lens_fuse_forward.4} parent=11 // pred_check
        %p96 = pneg %p55
      $region14: #{neko_lens_fuse_forward.4} parent=11 // pred_check_branch
        %98 = sbr.rel (%p96) target = $region16
      $region15: #{neko_lens_fuse_forward.4} parent=11 // pred_region
        _
      $region16: #{neko_lens_fuse_forward.4} parent=11 // pred_fallthru
        _
    $region12: #{neko_lens_fuse_forward.4} parent=5 // pred_fallthru
      _
    %p99 = scmp.lt.s32.totalorder %s8, 2
    // Predicated region
    $region17: #{neko_lens_fuse_forward.4} parent=5 // pred_check
      %p100 = pneg %p99
    $region18: #{neko_lens_fuse_forward.4} parent=5 // pred_check_branch
      %102 = sbr.rel (%p100) target = $region20
    $region19: #{neko_lens_fuse_forward.4} parent=5 // pred_region
      // Predicated region
      $region21: #{neko_lens_fuse_forward.4} parent=19 // pred_check
        %p103 = pneg %p28
      $region22: #{neko_lens_fuse_forward.4} parent=19 // pred_check_branch
        %105 = sbr.rel (%p103) target = $region24
      $region23: #{neko_lens_fuse_forward.4} parent=19 // pred_region
        %p106 = scmp.lt.s32.totalorder %s8, 1
        %s107 = scalar_select %p106, %s8, 1
        %s108 = smul.addr %s107, 2
        %s109 = smul.addr %s108, 8
        %s110 = scalar_lea.vmem %s0, %s109
      $region24: #{neko_lens_fuse_forward.4} parent=19 // pred_fallthru
        _
    $region20: #{neko_lens_fuse_forward.4} parent=5 // pred_fallthru
      _
    %p111 = scmp.le.s32.totalorder 1, %s8
    %p112 = scmp.lt.s32.totalorder %s8, 3
    %p113 = pnand %p111, %p112
    %p114 = pneg %p113
    // Predicated region
    $region25: #{neko_lens_fuse_forward.4} parent=5 // pred_check
      _
    $region26: #{neko_lens_fuse_forward.4} parent=5 // pred_check_branch
      %116 = sbr.rel (%p113) target = $region28
    $region27: #{neko_lens_fuse_forward.4} parent=5 // pred_region
      %s117 = ssub.s32 %s8, 1
      %p118 = scmp.lt.s32.totalorder %s13, 1
      %s119 = scalar_select %p118, %s13, 1
      %s120 = smul.addr %s119, 2
      %s121 = smul.addr %s120, 8
      %s122 = scalar_lea.vmem %s0, %s121
      %p123 = pneg %p34
      %p124 = pneg %p31
      %p125 = pneg %p55
      %p126 = pneg %p52
      %p127 = pneg %p81
      %p128 = pneg %p78
      %p129 = scmp.lt.s32.totalorder %s13, 1
      %s130 = scalar_select %p129, %s13, 1
      %s131 = smul.addr %s130, 2
      %s132 = scalar_lea.vmem %s2, %s131
      %p133 = scmp.lt.s32.totalorder %s13, 1
      %s134 = scalar_select %p133, %s13, 1
      %s135 = smul.addr %s134, 2
      %s136 = smul.addr %s135, 8
      %s137 = scalar_lea.vmem %s0, %s136
      %p138 = scmp.lt.s32.totalorder %s13, 1
      %s139 = scalar_select %p138, %s13, 1
      %s140 = smul.addr %s139, 2
      %s141 = scalar_lea.vmem %s2, %s140
      %v142 = vld [vmem:[%s137] sm:$0xff]
      %v143 = vld [vmem:[%s137 + $0x8] sm:$0xff]
      %v144 = vmul.f32 %v142, %v142
      %v145 = vmul.f32 %v143, %v143
      %v146 = vrot.slane %v144, 4
      %v147 = vadd.f32 %v144, %v146
      %v148 = vrot.slane %v147, 2
      %v149 = vadd.f32 %v147, %v148
      %v150 = vrot.slane %v149, 1
      %v151 = vadd.f32 %v149, %v150
      %v152 = vrot.slane %v145, 4
      %v153 = vadd.f32 %v145, %v152
      %v154 = vrot.slane %v153, 2
      %v155 = vadd.f32 %v153, %v154
      %v156 = vrot.slane %v155, 1
      %v157 = vadd.f32 %v155, %v156
      %vm158 = vcmp.gt.f32.partialorder %v151, 0.0081
      %vm159 = vcmp.gt.f32.partialorder %v157, 0.0081
      %v160 = vrsqrt.pop %v151
      %v161 = vrsqrt.pop %v157
      %v162 = vsel %vm158, %v160, 0.0
      %v163 = vsel %vm159, %v161, 0.0
      %v164 = vmul.f32 %v142, %v162
      %v165 = vmul.f32 %v143, %v163
      %166 = vst [vmem:[#allocation2] sm:$0xff] %v164
      %169 = vrot.lane.b32.xlu0 %v164, 127
      %v170 = vpop.permute.xlu0 %169
      %171 = vrot.lane.b32.xlu0 %v165, 127
      %v172 = vpop.permute.xlu0 %171
      %vm173 = vcmask 1039360
      %v174 = vsel %vm173, %v170, %v172
      %176 = vst [vmem:[#allocation2 + $0x8] sm:$0xff] %v174
      %177 = vrot.lane.b32.xlu0 %v164, 126
      %v178 = vpop.permute.xlu0 %177
      %179 = vrot.lane.b32.xlu0 %v165, 126
      %v180 = vpop.permute.xlu0 %179
      %vm181 = vcmask 1031168
      %v182 = vsel %vm181, %v178, %v180
      %184 = vst [vmem:[#allocation2 + $0x10] sm:$0xff] %v182
      %185 = vrot.lane.b32.xlu0 %v164, 125
      %v186 = vpop.permute.xlu0 %185
      %187 = vrot.lane.b32.xlu0 %v165, 125
      %v188 = vpop.permute.xlu0 %187
      %vm189 = vcmask 1022976
      %v190 = vsel %vm189, %v186, %v188
      %192 = vst [vmem:[#allocation2 + $0x18] sm:$0xff] %v190
      %193 = vrot.lane.b32.xlu0 %v164, 124
      %v194 = vpop.permute.xlu0 %193
      %195 = vrot.lane.b32.xlu0 %v165, 124
      %v196 = vpop.permute.xlu0 %195
      %vm197 = vcmask 1014784
      %v198 = vsel %vm197, %v194, %v196
      %200 = vst [vmem:[#allocation2 + $0x20] sm:$0xff] %v198
      %201 = vrot.lane.b32.xlu0 %v164, 120
      %v202 = vpop.permute.xlu0 %201
      %203 = vrot.lane.b32.xlu0 %v165, 120
      %v204 = vpop.permute.xlu0 %203
      %vm205 = vcmask 982016
      %v206 = vsel %vm205, %v202, %v204
      %208 = vst [vmem:[#allocation2 + $0x28] sm:$0xff] %v206
      %209 = vrot.lane.b32.xlu0 %v164, 119
      %v210 = vpop.permute.xlu0 %209
      %211 = vrot.lane.b32.xlu0 %v165, 119
      %v212 = vpop.permute.xlu0 %211
      %vm213 = vcmask 973824
      %v214 = vsel %vm213, %v210, %v212
      %216 = vst [vmem:[#allocation2 + $0x30] sm:$0xff] %v214
      %217 = vrot.lane.b32.xlu0 %v164, 118
      %v218 = vpop.permute.xlu0 %217
      %219 = vrot.lane.b32.xlu0 %v165, 118
      %v220 = vpop.permute.xlu0 %219
      %vm221 = vcmask 965632
      %v222 = vsel %vm221, %v218, %v220
      %224 = vst [vmem:[#allocation2 + $0x38] sm:$0xff] %v222
      %225 = vrot.lane.b32.xlu0 %v164, 117
      %v226 = vpop.permute.xlu0 %225
      %227 = vrot.lane.b32.xlu0 %v165, 117
      %v228 = vpop.permute.xlu0 %227
      %vm229 = vcmask 957440
      %v230 = vsel %vm229, %v226, %v228
      %232 = vst [vmem:[#allocation2 + $0x40] sm:$0xff] %v230
      %233 = vrot.lane.b32.xlu0 %v164, 116
      %v234 = vpop.permute.xlu0 %233
      %235 = vrot.lane.b32.xlu0 %v165, 116
      %v236 = vpop.permute.xlu0 %235
      %vm237 = vcmask 949248
      %v238 = vsel %vm237, %v234, %v236
      %240 = vst [vmem:[#allocation2 + $0x48] sm:$0xff] %v238
      %241 = vrot.lane.b32.xlu0 %v164, 112
      %v242 = vpop.permute.xlu0 %241
      %243 = vrot.lane.b32.xlu0 %v165, 112
      %v244 = vpop.permute.xlu0 %243
      %vm245 = vcmask 916480
      %v246 = vsel %vm245, %v242, %v244
      %248 = vst [vmem:[#allocation2 + $0x50] sm:$0xff] %v246
      %249 = vrot.lane.b32.xlu0 %v164, 111
      %v250 = vpop.permute.xlu0 %249
      %251 = vrot.lane.b32.xlu0 %v165, 111
      %v252 = vpop.permute.xlu0 %251
      %vm253 = vcmask 908288
      %v254 = vsel %vm253, %v250, %v252
      %256 = vst [vmem:[#allocation2 + $0x58] sm:$0xff] %v254
      %257 = vrot.lane.b32.xlu0 %v164, 110
      %v258 = vpop.permute.xlu0 %257
      %259 = vrot.lane.b32.xlu0 %v165, 110
      %v260 = vpop.permute.xlu0 %259
      %vm261 = vcmask 900096
      %v262 = vsel %vm261, %v258, %v260
      %264 = vst [vmem:[#allocation2 + $0x60] sm:$0xff] %v262
      %265 = vrot.lane.b32.xlu0 %v164, 109
      %v266 = vpop.permute.xlu0 %265
      %267 = vrot.lane.b32.xlu0 %v165, 109
      %v268 = vpop.permute.xlu0 %267
      %vm269 = vcmask 891904
      %v270 = vsel %vm269, %v266, %v268
      %272 = vst [vmem:[#allocation2 + $0x68] sm:$0xff] %v270
      %273 = vrot.lane.b32.xlu0 %v164, 108
      %v274 = vpop.permute.xlu0 %273
      %275 = vrot.lane.b32.xlu0 %v165, 108
      %v276 = vpop.permute.xlu0 %275
      %vm277 = vcmask 883712
      %v278 = vsel %vm277, %v274, %v276
      %280 = vst [vmem:[#allocation2 + $0x70] sm:$0xff] %v278
      %281 = vrot.lane.b32.xlu0 %v164, 104
      %v282 = vpop.permute.xlu0 %281
      %283 = vrot.lane.b32.xlu0 %v165, 104
      %v284 = vpop.permute.xlu0 %283
      %vm285 = vcmask 850944
      %v286 = vsel %vm285, %v282, %v284
      %288 = vst [vmem:[#allocation2 + $0x78] sm:$0xff] %v286
      %289 = vrot.lane.b32.xlu0 %v164, 103
      %v290 = vpop.permute.xlu0 %289
      %291 = vrot.lane.b32.xlu0 %v165, 103
      %v292 = vpop.permute.xlu0 %291
      %vm293 = vcmask 842752
      %v294 = vsel %vm293, %v290, %v292
      %296 = vst [vmem:[#allocation2 + $0x80] sm:$0xff] %v294
      %297 = vrot.lane.b32.xlu0 %v164, 102
      %v298 = vpop.permute.xlu0 %297
      %299 = vrot.lane.b32.xlu0 %v165, 102
      %v300 = vpop.permute.xlu0 %299
      %vm301 = vcmask 834560
      %v302 = vsel %vm301, %v298, %v300
      %304 = vst [vmem:[#allocation2 + $0x88] sm:$0xff] %v302
      %305 = vrot.lane.b32.xlu0 %v164, 101
      %v306 = vpop.permute.xlu0 %305
      %307 = vrot.lane.b32.xlu0 %v165, 101
      %v308 = vpop.permute.xlu0 %307
      %vm309 = vcmask 826368
      %v310 = vsel %vm309, %v306, %v308
      %312 = vst [vmem:[#allocation2 + $0x90] sm:$0xff] %v310
      %313 = vrot.lane.b32.xlu0 %v164, 100
      %v314 = vpop.permute.xlu0 %313
      %315 = vrot.lane.b32.xlu0 %v165, 100
      %v316 = vpop.permute.xlu0 %315
      %vm317 = vcmask 818176
      %v318 = vsel %vm317, %v314, %v316
      %320 = vst [vmem:[#allocation2 + $0x98] sm:$0xff] %v318
      %321 = vrot.lane.b32.xlu0 %v164, 96
      %v322 = vpop.permute.xlu0 %321
      %323 = vrot.lane.b32.xlu0 %v165, 96
      %v324 = vpop.permute.xlu0 %323
      %vm325 = vcmask 785408
      %v326 = vsel %vm325, %v322, %v324
      %328 = vst [vmem:[#allocation2 + $0xa0] sm:$0xff] %v326
      %329 = vrot.lane.b32.xlu0 %v164, 95
      %v330 = vpop.permute.xlu0 %329
      %331 = vrot.lane.b32.xlu0 %v165, 95
      %v332 = vpop.permute.xlu0 %331
      %vm333 = vcmask 777216
      %v334 = vsel %vm333, %v330, %v332
      %336 = vst [vmem:[#allocation2 + $0xa8] sm:$0xff] %v334
      %337 = vrot.lane.b32.xlu0 %v164, 94
      %v338 = vpop.permute.xlu0 %337
      %339 = vrot.lane.b32.xlu0 %v165, 94
      %v340 = vpop.permute.xlu0 %339
      %vm341 = vcmask 769024
      %v342 = vsel %vm341, %v338, %v340
      %344 = vst [vmem:[#allocation2 + $0xb0] sm:$0xff] %v342
      %345 = vrot.lane.b32.xlu0 %v164, 93
      %v346 = vpop.permute.xlu0 %345
      %347 = vrot.lane.b32.xlu0 %v165, 93
      %v348 = vpop.permute.xlu0 %347
      %vm349 = vcmask 760832
      %v350 = vsel %vm349, %v346, %v348
      %352 = vst [vmem:[#allocation2 + $0xb8] sm:$0xff] %v350
      %353 = vrot.lane.b32.xlu0 %v164, 92
      %v354 = vpop.permute.xlu0 %353
      %355 = vrot.lane.b32.xlu0 %v165, 92
      %v356 = vpop.permute.xlu0 %355
      %vm357 = vcmask 752640
      %v358 = vsel %vm357, %v354, %v356
      %360 = vst [vmem:[#allocation2 + $0xc0] sm:$0xff] %v358
      %361 = vst [vmem:[#allocation2 + $0xc8] sm:$0xff] 1.0
      %v362 = vld [vmem:[%s1] sm:$0xf]
      %v363 = vld [vmem:[#allocation2] sm:$0xff]
      %v364 = vld [vmem:[#allocation2 + $0x8] sm:$0xff]
      %v365 = vld [vmem:[#allocation2 + $0x10] sm:$0xff]
      %v366 = vld [vmem:[#allocation2 + $0x18] sm:$0xff]
      %v367 = vld [vmem:[#allocation2 + $0x20] sm:$0xff]
      %v368 = vld [vmem:[#allocation2 + $0x28] sm:$0xff]
      %v369 = vld [vmem:[#allocation2 + $0x30] sm:$0xff]
      %v370 = vld [vmem:[#allocation2 + $0x38] sm:$0xff]
      %v371 = vld [vmem:[#allocation2 + $0x40] sm:$0xff]
      %v372 = vld [vmem:[#allocation2 + $0x48] sm:$0xff]
      %v373 = vld [vmem:[#allocation2 + $0x50] sm:$0xff]
      %v374 = vld [vmem:[#allocation2 + $0x58] sm:$0xff]
      %v375 = vld [vmem:[#allocation2 + $0x60] sm:$0xff]
      %v376 = vld [vmem:[#allocation2 + $0x68] sm:$0xff]
      %v377 = vld [vmem:[#allocation2 + $0x70] sm:$0xff]
      %v378 = vld [vmem:[#allocation2 + $0x78] sm:$0xff]
      %v379 = vld [vmem:[#allocation2 + $0x80] sm:$0xff]
      %v380 = vld [vmem:[#allocation2 + $0x88] sm:$0xff]
      %v381 = vld [vmem:[#allocation2 + $0x90] sm:$0xff]
      %v382 = vld [vmem:[#allocation2 + $0x98] sm:$0xff]
      %v383 = vld [vmem:[#allocation2 + $0xa0] sm:$0xff]
      %v384 = vld [vmem:[#allocation2 + $0xa8] sm:$0xff]
      %v385 = vld [vmem:[#allocation2 + $0xb0] sm:$0xff]
      %v386 = vld [vmem:[#allocation2 + $0xb8] sm:$0xff]
      %v387 = vld [vmem:[#allocation2 + $0xc0] sm:$0xff]
      %v388 = vld [vmem:[#allocation2 + $0xc8] sm:$0xff]
      %v391 = vunpack.c.l.s4 1983009808
      %v392 = vunpack.c.0.s8 %v391
      %v393 = vlaneseq
      %v394 = vshrl.u32 %v393, 7
      %v395 = vsub.s32 %v392, %v394
      %v396 = vrot.slane %v362, %v395
      %v397 = vcombine.high %v396, %v396
      %vm399 = vcmask 654336
      %v400 = vsel %vm399, %v397, 0
      %402 = vmatprep.subr.mxu0 0.0
      %403 = vmatpush1.msra.mxu0 %v363
      %404 = vmatprep.subr.mxu0 0.0
      %405 = vmatpush1.msra.mxu0 %v364
      %406 = vmatprep.subr.mxu0 0.0
      %407 = vmatpush1.msra.mxu0 %v365
      %408 = vmatprep.subr.mxu0 0.0
      %409 = vmatpush1.msra.mxu0 %v366
      %410 = vmatprep.subr.mxu0 0.0
      %411 = vmatpush1.msra.mxu0 %v367
      %412 = vmatprep.subr.mxu0 0.0
      %413 = vmatpush1.msra.mxu0 %v368
      %414 = vmatprep.subr.mxu0 0.0
      %415 = vmatpush1.msra.mxu0 %v369
      %416 = vmatprep.subr.mxu0 0.0
      %417 = vmatpush1.msra.mxu0 %v370
      %418 = vmatprep.subr.mxu0 0.0
      %419 = vmatpush1.msra.mxu0 %v371
      %420 = vmatprep.subr.mxu0 0.0
      %421 = vmatpush1.msra.mxu0 %v372
      %422 = vmatprep.subr.mxu0 0.0
      %423 = vmatpush1.msra.mxu0 %v373
      %424 = vmatprep.subr.mxu0 0.0
      %425 = vmatpush1.msra.mxu0 %v374
      %426 = vmatprep.subr.mxu0 0.0
      %427 = vmatpush1.msra.mxu0 %v375
      %428 = vmatprep.subr.mxu0 0.0
      %429 = vmatpush1.msra.mxu0 %v376
      %430 = vmatprep.subr.mxu0 0.0
      %431 = vmatpush1.msra.mxu0 %v377
      %432 = vmatprep.subr.mxu0 0.0
      %433 = vmatpush1.msra.mxu0 %v378
      %434 = vmatprep.subr.mxu0 0.0
      %435 = vmatpush1.msra.mxu0 %v379
      %436 = vmatprep.subr.mxu0 0.0
      %437 = vmatpush1.msra.mxu0 %v380
      %438 = vmatprep.subr.mxu0 0.0
      %439 = vmatpush1.msra.mxu0 %v381
      %440 = vmatprep.subr.mxu0 0.0
      %441 = vmatpush1.msra.mxu0 %v382
      %442 = vmatprep.subr.mxu0 0.0
      %443 = vmatpush1.msra.mxu0 %v383
      %444 = vmatprep.subr.mxu0 0.0
      %445 = vmatpush1.msra.mxu0 %v384
      %446 = vmatprep.subr.mxu0 0.0
      %447 = vmatpush1.msra.mxu0 %v385
      %448 = vmatprep.subr.mxu0 0.0
      %449 = vmatpush1.msra.mxu0 %v386
      %450 = vmatprep.subr.mxu0 0.0
      %451 = vmatpush1.msra.mxu0 %v387
      %452 = vmatprep.subr.mxu0 0.0
      %453 = vmatpush1.msra.mxu0 %v388
      %454 = vmatprep.subr.mxu0 0.0
      %455 = vmatpush1.msra.mxu0 0.0
      %456 = vmatprep.subr.mxu0 0.0
      %457 = vmatpush1.msra.mxu0 0.0
      %458 = vmatprep.subr.mxu0 0.0
      %459 = vmatpush1.msra.mxu0 0.0
      %460 = vmatprep.subr.mxu0 0.0
      %461 = vmatpush1.msra.mxu0 0.0
      %462 = vmatprep.subr.mxu0 0.0
      %463 = vmatpush1.msra.mxu0 0.0
      %464 = vmatprep.subr.mxu0 0.0
      %465 = vmatpush1.msra.mxu0 0.0
      %466 = vmatprep.mubr.f32.mxu0 %v400
      %467 = vmatmul.mubr.f32.gmra.mrb[0].mxu0 %v396
      %v468 = vpop.f32.mrb[0].mxu0
      %v469 = vadd.f32 0.0, %v468
      %v470 = vpop.f32.mrb[0].mxu0
      %471 = vdwg.mxu0
      %v472 = vsub.f32 0.0, %v469
      %v473 = vmul.f32 %v472, 1.442695
      %v474 = vpow.pop %v473
      %v475 = vadd.f32 %v474, 1.0
      %v476 = vrcp.pop %v475
      %477 = vst [vmem:[%s141] sm:$0x3] %v476
      %p478 = scmp.lt.s32.totalorder %s13, 1
      %s479 = scalar_select %p478, %s13, 1
      %s480 = smul.addr %s479, 2
      %s481 = scalar_lea.vmem %s2, %s480
      // Predicated region
      $region29: #{neko_lens_fuse_forward.4} parent=27 // pred_check
        %p482 = pneg %p78
      $region30: #{neko_lens_fuse_forward.4} parent=27 // pred_check_branch
        %484 = sbr.rel (%p482) target = $region32
      $region31: #{neko_lens_fuse_forward.4} parent=27 // pred_region
        _
      $region32: #{neko_lens_fuse_forward.4} parent=27 // pred_fallthru
        _
    $region28: #{neko_lens_fuse_forward.4} parent=5 // pred_fallthru
      _
    %p485 = scmp.le.s32.totalorder 2, %s8
    // Predicated region
    $region33: #{neko_lens_fuse_forward.4} parent=5 // pred_check
      %p486 = pneg %p485
    $region34: #{neko_lens_fuse_forward.4} parent=5 // pred_check_branch
      %488 = sbr.rel (%p486) target = $region36
    $region35: #{neko_lens_fuse_forward.4} parent=5 // pred_region
      %s489 = ssub.s32 %s8, 2
      // Predicated region
      $region37: #{neko_lens_fuse_forward.4} parent=35 // pred_check
        %p490 = pneg %p84
      $region38: #{neko_lens_fuse_forward.4} parent=35 // pred_check_branch
        %492 = sbr.rel (%p490) target = $region40
      $region39: #{neko_lens_fuse_forward.4} parent=35 // pred_region
        %p493 = scmp.lt.s32.totalorder %s14, 1
        %s494 = scalar_select %p493, %s14, 1
        %s495 = smul.addr %s494, 2
        %s496 = scalar_lea.vmem %s2, %s495
      $region40: #{neko_lens_fuse_forward.4} parent=35 // pred_fallthru
        _
    $region36: #{neko_lens_fuse_forward.4} parent=5 // pred_fallthru
      _
  $region6: #{neko_lens_fuse_forward.4} parent=0 // loop_footer
    %s12 = sadd.s32 1, %s8
  $region7: #{neko_lens_fuse_forward.4} parent=0 // loop_footer_branch
    %7 = sbr.rel target = $region3
  $region8: #{neko_lens_fuse_forward.4} parent=0 // loop_exit
    _

// kernel: neko_lens_fuse_forward.3
$region0: #{neko_lens_fuse_forward.3}
  #allocation0 [shape = 'u32[]', space=smem, size = 0x4, offset = 0x4, fixed_abs, tag = 'smem constant byte address 0x4 - core index']
  #allocation1 [shape = 'u32[144,128]{1,0:T(1,128)}', space=vmem, size = 0x12000, scoped, tag = 'internal scratch']
  #allocation2 [shape = 'f32[208,256]{1,0:T(8,128)}', space=vmem, size = 0x34000, scoped, tag = 'scratch operand']
  %s0 = inlined_call_operand.vmem [shape: f32[2,8,384], index: 0, kind: input, shape index: {}]
  %s1 = inlined_call_operand.vmem [shape: f32[2,208], index: 1, kind: input, shape index: {}]
  %s2 = inlined_call_operand.vmem [shape: f32[2,2,256], index: 2, kind: output, shape index: {}]
  %s3 = sld [smem:[#allocation0]]
  $region41: #{neko_lens_fuse_forward.3} parent=0
    _
  %s5 = ssub.s32 1, %s3
  %s6 = scalar_select 0, %s5, %s3
  loop: start=0, step=1, limit=4
  $region2: #{neko_lens_fuse_forward.3} parent=0 // loop_pre_header
    _
  $region3: #{neko_lens_fuse_forward.3} parent=0 // loop_header
    %s8 = sphi 0, %s12
    %p9 = scmp.ge.s32.totalorder %s8, 4
    %s18 = sphi 0, %s20
    %s21 = sphi 0, %s18
    %s22 = sphi 0, %s21
    %s38 = sphi 0, %s22
    %s42 = sphi 0, %s42
    %s44 = sphi 0, %s42
    %s45 = sphi 0, %s44
    %s59 = sphi 0, %s45
    %s65 = sphi 0, %s67
    %s68 = sphi 0, %s65
    %s69 = sphi 0, %s68
    %s85 = sphi 0, %s69
  $region4: #{neko_lens_fuse_forward.3} parent=0 // loop_header_branch
    %11 = sbr.rel (%p9) target = $region8
  $region5: #{neko_lens_fuse_forward.3} parent=0 // loop_body
    %s13 = ssub.s32 %s8, 1
    %s14 = ssub.s32 %s8, 2
    %s15 = sadd.s32 %s8, 1
    %s16 = ssub.s32 %s8, %s15
    %p17 = scmp.eq.s32.totalorder %s16, 0
    %s19 = sadd.s32 %s18, 1
    %s20 = scalar_select %p17, %s18, %s19
    %p23 = pneg %p17
    %p24 = scmp.eq.s32.totalorder %s8, 1
    %p25 = por %p23, %p24
    %p26 = scmp.ne.s32.totalorder %s18, %s21
    %p27 = scmp.eq.s32.totalorder %s8, 0
    %p28 = por %p26, %p27
    %p29 = scmp.ne.s32.totalorder %s18, %s21
    %p30 = scmp.eq.s32.totalorder %s13, 1
    %p31 = por %p29, %p30
    %p32 = scmp.ne.s32.totalorder %s21, %s22
    %p33 = scmp.eq.s32.totalorder %s13, 0
    %p34 = por %p32, %p33
    %p35 = scmp.ne.s32.totalorder %s21, %s22
    %p36 = scmp.eq.s32.totalorder %s14, 1
    %p37 = por %p35, %p36
    %p39 = scmp.ne.s32.totalorder %s22, %s38
    %p40 = scmp.eq.s32.totalorder %s14, 0
    %p41 = por %p39, %p40
    %s43 = sadd.s32 %s42, 1
    %p46 = scmp.eq.s32.totalorder %s8, 1
    %p47 = scmp.ne.s32.totalorder %s42, %s44
    %p48 = scmp.eq.s32.totalorder %s8, 0
    %p49 = por %p47, %p48
    %p50 = scmp.ne.s32.totalorder %s42, %s44
    %p51 = scmp.eq.s32.totalorder %s13, 1
    %p52 = por %p50, %p51
    %p53 = scmp.ne.s32.totalorder %s44, %s45
    %p54 = scmp.eq.s32.totalorder %s13, 0
    %p55 = por %p53, %p54
    %p56 = scmp.ne.s32.totalorder %s44, %s45
    %p57 = scmp.eq.s32.totalorder %s14, 1
    %p58 = por %p56, %p57
    %p60 = scmp.ne.s32.totalorder %s45, %s59
    %p61 = scmp.eq.s32.totalorder %s14, 0
    %p62 = por %p60, %p61
    %s63 = ssub.s32 %s8, %s15
    %p64 = scmp.eq.s32.totalorder %s63, 0
    %s66 = sadd.s32 %s65, 1
    %s67 = scalar_select %p64, %s65, %s66
    %p70 = pneg %p64
    %p71 = scmp.eq.s32.totalorder %s8, 1
    %p72 = por %p70, %p71
    %p73 = scmp.ne.s32.totalorder %s65, %s68
    %p74 = scmp.eq.s32.totalorder %s8, 0
    %p75 = por %p73, %p74
    %p76 = scmp.ne.s32.totalorder %s65, %s68
    %p77 = scmp.eq.s32.totalorder %s13, 1
    %p78 = por %p76, %p77
    %p79 = scmp.ne.s32.totalorder %s68, %s69
    %p80 = scmp.eq.s32.totalorder %s13, 0
    %p81 = por %p79, %p80
    %p82 = scmp.ne.s32.totalorder %s68, %s69
    %p83 = scmp.eq.s32.totalorder %s14, 1
    %p84 = por %p82, %p83
    %p86 = scmp.ne.s32.totalorder %s69, %s85
    %p87 = scmp.eq.s32.totalorder %s14, 0
    %p88 = por %p86, %p87
    %p89 = scmp.le.s32.totalorder 1, %s8
    %p90 = scmp.lt.s32.totalorder %s8, 3
    %p91 = pnand %p89, %p90
    %p92 = pneg %p91
    // Predicated region
    $region9: #{neko_lens_fuse_forward.3} parent=5 // pred_check
      _
    $region10: #{neko_lens_fuse_forward.3} parent=5 // pred_check_branch
      %94 = sbr.rel (%p91) target = $region12
    $region11: #{neko_lens_fuse_forward.3} parent=5 // pred_region
      %s95 = ssub.s32 %s8, 1
      // Predicated region
      $region13: #{neko_lens_fuse_forward.3} parent=11 // pred_check
        %p96 = pneg %p55
      $region14: #{neko_lens_fuse_forward.3} parent=11 // pred_check_branch
        %98 = sbr.rel (%p96) target = $region16
      $region15: #{neko_lens_fuse_forward.3} parent=11 // pred_region
        _
      $region16: #{neko_lens_fuse_forward.3} parent=11 // pred_fallthru
        _
    $region12: #{neko_lens_fuse_forward.3} parent=5 // pred_fallthru
      _
    %p99 = scmp.lt.s32.totalorder %s8, 2
    // Predicated region
    $region17: #{neko_lens_fuse_forward.3} parent=5 // pred_check
      %p100 = pneg %p99
    $region18: #{neko_lens_fuse_forward.3} parent=5 // pred_check_branch
      %102 = sbr.rel (%p100) target = $region20
    $region19: #{neko_lens_fuse_forward.3} parent=5 // pred_region
      // Predicated region
      $region21: #{neko_lens_fuse_forward.3} parent=19 // pred_check
        %p103 = pneg %p28
      $region22: #{neko_lens_fuse_forward.3} parent=19 // pred_check_branch
        %105 = sbr.rel (%p103) target = $region24
      $region23: #{neko_lens_fuse_forward.3} parent=19 // pred_region
        %p106 = scmp.lt.s32.totalorder %s8, 1
        %s107 = scalar_select %p106, %s8, 1
        %s108 = smul.addr %s107, 3
        %s109 = smul.addr %s108, 8
        %s110 = scalar_lea.vmem %s0, %s109
      $region24: #{neko_lens_fuse_forward.3} parent=19 // pred_fallthru
        _
    $region20: #{neko_lens_fuse_forward.3} parent=5 // pred_fallthru
      _
    %p111 = scmp.le.s32.totalorder 1, %s8
    %p112 = scmp.lt.s32.totalorder %s8, 3
    %p113 = pnand %p111, %p112
    %p114 = pneg %p113
    // Predicated region
    $region25: #{neko_lens_fuse_forward.3} parent=5 // pred_check
      _
    $region26: #{neko_lens_fuse_forward.3} parent=5 // pred_check_branch
      %116 = sbr.rel (%p113) target = $region28
    $region27: #{neko_lens_fuse_forward.3} parent=5 // pred_region
      %s117 = ssub.s32 %s8, 1
      %p118 = scmp.lt.s32.totalorder %s13, 1
      %s119 = scalar_select %p118, %s13, 1
      %s120 = smul.addr %s119, 3
      %s121 = smul.addr %s120, 8
      %s122 = scalar_lea.vmem %s0, %s121
      %p123 = pneg %p34
      %p124 = pneg %p31
      %p125 = pneg %p55
      %p126 = pneg %p52
      %p127 = pneg %p81
      %p128 = pneg %p78
      %p129 = scmp.lt.s32.totalorder %s13, 1
      %s130 = scalar_select %p129, %s13, 1
      %s131 = smul.addr %s130, 2
      %s132 = smul.addr %s131, 2
      %s133 = scalar_lea.vmem %s2, %s132
      %p134 = scmp.lt.s32.totalorder %s13, 1
      %s135 = scalar_select %p134, %s13, 1
      %s136 = smul.addr %s135, 3
      %s137 = smul.addr %s136, 8
      %s138 = scalar_lea.vmem %s0, %s137
      %p139 = scmp.lt.s32.totalorder %s13, 1
      %s140 = scalar_select %p139, %s13, 1
      %s141 = smul.addr %s140, 2
      %s142 = smul.addr %s141, 2
      %s143 = scalar_lea.vmem %s2, %s142
      %v144 = vld [vmem:[%s138] sm:$0xff]
      %v145 = vld [vmem:[%s138 + $0x8] sm:$0xff]
      %v146 = vld [vmem:[%s138 + $0x10] sm:$0xff]
      %v147 = vmul.f32 %v144, %v144
      %v148 = vmul.f32 %v145, %v145
      %v149 = vmul.f32 %v146, %v146
      %v150 = vrot.slane %v147, 4
      %v151 = vadd.f32 %v147, %v150
      %v152 = vrot.slane %v151, 2
      %v153 = vadd.f32 %v151, %v152
      %v154 = vrot.slane %v153, 1
      %v155 = vadd.f32 %v153, %v154
      %v156 = vrot.slane %v148, 4
      %v157 = vadd.f32 %v148, %v156
      %v158 = vrot.slane %v157, 2
      %v159 = vadd.f32 %v157, %v158
      %v160 = vrot.slane %v159, 1
      %v161 = vadd.f32 %v159, %v160
      %v162 = vrot.slane %v149, 4
      %v163 = vadd.f32 %v149, %v162
      %v164 = vrot.slane %v163, 2
      %v165 = vadd.f32 %v163, %v164
      %v166 = vrot.slane %v165, 1
      %v167 = vadd.f32 %v165, %v166
      %vm168 = vcmp.gt.f32.partialorder %v155, 0.0081
      %vm169 = vcmp.gt.f32.partialorder %v161, 0.0081
      %vm170 = vcmp.gt.f32.partialorder %v167, 0.0081
      %v171 = vrsqrt.pop %v155
      %v172 = vrsqrt.pop %v161
      %v173 = vrsqrt.pop %v167
      %v174 = vsel %vm168, %v171, 0.0
      %v175 = vsel %vm169, %v172, 0.0
      %v176 = vsel %vm170, %v173, 0.0
      %v177 = vmul.f32 %v144, %v174
      %v178 = vmul.f32 %v145, %v175
      %v179 = vmul.f32 %v146, %v176
      %180 = vst [vmem:[#allocation2] sm:$0xff] %v177
      %181 = vst [vmem:[#allocation2 + $0x8] sm:$0xff] %v178
      %185 = vrot.lane.b32.xlu0 %v177, 127
      %v186 = vpop.permute.xlu0 %185
      %187 = vrot.lane.b32.xlu0 %v178, 127
      %v188 = vpop.permute.xlu0 %187
      %189 = vrot.lane.b32.xlu0 %v179, 127
      %v190 = vpop.permute.xlu0 %189
      %vm191 = vcmask 1039360
      %v192 = vsel %vm191, %v186, %v188
      %v193 = vsel %vm191, %v188, %v190
      %196 = vst [vmem:[#allocation2 + $0x10] sm:$0xff] %v192
      %197 = vst [vmem:[#allocation2 + $0x18] sm:$0xff] %v193
      %198 = vrot.lane.b32.xlu0 %v177, 126
      %v199 = vpop.permute.xlu0 %198
      %200 = vrot.lane.b32.xlu0 %v178, 126
      %v201 = vpop.permute.xlu0 %200
      %202 = vrot.lane.b32.xlu0 %v179, 126
      %v203 = vpop.permute.xlu0 %202
      %vm204 = vcmask 1031168
      %v205 = vsel %vm204, %v199, %v201
      %v206 = vsel %vm204, %v201, %v203
      %209 = vst [vmem:[#allocation2 + $0x20] sm:$0xff] %v205
      %210 = vst [vmem:[#allocation2 + $0x28] sm:$0xff] %v206
      %211 = vrot.lane.b32.xlu0 %v177, 125
      %v212 = vpop.permute.xlu0 %211
      %213 = vrot.lane.b32.xlu0 %v178, 125
      %v214 = vpop.permute.xlu0 %213
      %215 = vrot.lane.b32.xlu0 %v179, 125
      %v216 = vpop.permute.xlu0 %215
      %vm217 = vcmask 1022976
      %v218 = vsel %vm217, %v212, %v214
      %v219 = vsel %vm217, %v214, %v216
      %222 = vst [vmem:[#allocation2 + $0x30] sm:$0xff] %v218
      %223 = vst [vmem:[#allocation2 + $0x38] sm:$0xff] %v219
      %224 = vrot.lane.b32.xlu0 %v177, 124
      %v225 = vpop.permute.xlu0 %224
      %226 = vrot.lane.b32.xlu0 %v178, 124
      %v227 = vpop.permute.xlu0 %226
      %228 = vrot.lane.b32.xlu0 %v179, 124
      %v229 = vpop.permute.xlu0 %228
      %vm230 = vcmask 1014784
      %v231 = vsel %vm230, %v225, %v227
      %v232 = vsel %vm230, %v227, %v229
      %235 = vst [vmem:[#allocation2 + $0x40] sm:$0xff] %v231
      %236 = vst [vmem:[#allocation2 + $0x48] sm:$0xff] %v232
      %237 = vrot.lane.b32.xlu0 %v177, 112
      %v238 = vpop.permute.xlu0 %237
      %239 = vrot.lane.b32.xlu0 %v178, 112
      %v240 = vpop.permute.xlu0 %239
      %241 = vrot.lane.b32.xlu0 %v179, 112
      %v242 = vpop.permute.xlu0 %241
      %vm243 = vcmask 916480
      %v244 = vsel %vm243, %v238, %v240
      %v245 = vsel %vm243, %v240, %v242
      %248 = vst [vmem:[#allocation2 + $0x50] sm:$0xff] %v244
      %249 = vst [vmem:[#allocation2 + $0x58] sm:$0xff] %v245
      %250 = vrot.lane.b32.xlu0 %v177, 111
      %v251 = vpop.permute.xlu0 %250
      %252 = vrot.lane.b32.xlu0 %v178, 111
      %v253 = vpop.permute.xlu0 %252
      %254 = vrot.lane.b32.xlu0 %v179, 111
      %v255 = vpop.permute.xlu0 %254
      %vm256 = vcmask 908288
      %v257 = vsel %vm256, %v251, %v253
      %v258 = vsel %vm256, %v253, %v255
      %261 = vst [vmem:[#allocation2 + $0x60] sm:$0xff] %v257
      %262 = vst [vmem:[#allocation2 + $0x68] sm:$0xff] %v258
      %263 = vrot.lane.b32.xlu0 %v177, 110
      %v264 = vpop.permute.xlu0 %263
      %265 = vrot.lane.b32.xlu0 %v178, 110
      %v266 = vpop.permute.xlu0 %265
      %267 = vrot.lane.b32.xlu0 %v179, 110
      %v268 = vpop.permute.xlu0 %267
      %vm269 = vcmask 900096
      %v270 = vsel %vm269, %v264, %v266
      %v271 = vsel %vm269, %v266, %v268
      %274 = vst [vmem:[#allocation2 + $0x70] sm:$0xff] %v270
      %275 = vst [vmem:[#allocation2 + $0x78] sm:$0xff] %v271
      %276 = vrot.lane.b32.xlu0 %v177, 109
      %v277 = vpop.permute.xlu0 %276
      %278 = vrot.lane.b32.xlu0 %v178, 109
      %v279 = vpop.permute.xlu0 %278
      %280 = vrot.lane.b32.xlu0 %v179, 109
      %v281 = vpop.permute.xlu0 %280
      %vm282 = vcmask 891904
      %v283 = vsel %vm282, %v277, %v279
      %v284 = vsel %vm282, %v279, %v281
      %287 = vst [vmem:[#allocation2 + $0x80] sm:$0xff] %v283
      %288 = vst [vmem:[#allocation2 + $0x88] sm:$0xff] %v284
      %289 = vrot.lane.b32.xlu0 %v177, 108
      %v290 = vpop.permute.xlu0 %289
      %291 = vrot.lane.b32.xlu0 %v178, 108
      %v292 = vpop.permute.xlu0 %291
      %293 = vrot.lane.b32.xlu0 %v179, 108
      %v294 = vpop.permute.xlu0 %293
      %vm295 = vcmask 883712
      %v296 = vsel %vm295, %v290, %v292
      %v297 = vsel %vm295, %v292, %v294
      %300 = vst [vmem:[#allocation2 + $0x90] sm:$0xff] %v296
      %301 = vst [vmem:[#allocation2 + $0x98] sm:$0xff] %v297
      %302 = vrot.lane.b32.xlu0 %v177, 96
      %v303 = vpop.permute.xlu0 %302
      %304 = vrot.lane.b32.xlu0 %v178, 96
      %v305 = vpop.permute.xlu0 %304
      %306 = vrot.lane.b32.xlu0 %v179, 96
      %v307 = vpop.permute.xlu0 %306
      %vm308 = vcmask 785408
      %v309 = vsel %vm308, %v303, %v305
      %v310 = vsel %vm308, %v305, %v307
      %313 = vst [vmem:[#allocation2 + $0xa0] sm:$0xff] %v309
      %314 = vst [vmem:[#allocation2 + $0xa8] sm:$0xff] %v310
      %315 = vrot.lane.b32.xlu0 %v177, 95
      %v316 = vpop.permute.xlu0 %315
      %317 = vrot.lane.b32.xlu0 %v178, 95
      %v318 = vpop.permute.xlu0 %317
      %319 = vrot.lane.b32.xlu0 %v179, 95
      %v320 = vpop.permute.xlu0 %319
      %vm321 = vcmask 777216
      %v322 = vsel %vm321, %v316, %v318
      %v323 = vsel %vm321, %v318, %v320
      %326 = vst [vmem:[#allocation2 + $0xb0] sm:$0xff] %v322
      %327 = vst [vmem:[#allocation2 + $0xb8] sm:$0xff] %v323
      %328 = vrot.lane.b32.xlu0 %v177, 94
      %v329 = vpop.permute.xlu0 %328
      %330 = vrot.lane.b32.xlu0 %v178, 94
      %v331 = vpop.permute.xlu0 %330
      %332 = vrot.lane.b32.xlu0 %v179, 94
      %v333 = vpop.permute.xlu0 %332
      %vm334 = vcmask 769024
      %v335 = vsel %vm334, %v329, %v331
      %v336 = vsel %vm334, %v331, %v333
      %339 = vst [vmem:[#allocation2 + $0xc0] sm:$0xff] %v335
      %340 = vst [vmem:[#allocation2 + $0xc8] sm:$0xff] %v336
      %341 = vrot.lane.b32.xlu0 %v177, 93
      %v342 = vpop.permute.xlu0 %341
      %343 = vrot.lane.b32.xlu0 %v178, 93
      %v344 = vpop.permute.xlu0 %343
      %345 = vrot.lane.b32.xlu0 %v179, 93
      %v346 = vpop.permute.xlu0 %345
      %vm347 = vcmask 760832
      %v348 = vsel %vm347, %v342, %v344
      %v349 = vsel %vm347, %v344, %v346
      %352 = vst [vmem:[#allocation2 + $0xd0] sm:$0xff] %v348
      %353 = vst [vmem:[#allocation2 + $0xd8] sm:$0xff] %v349
      %354 = vrot.lane.b32.xlu0 %v177, 92
      %v355 = vpop.permute.xlu0 %354
      %356 = vrot.lane.b32.xlu0 %v178, 92
      %v357 = vpop.permute.xlu0 %356
      %358 = vrot.lane.b32.xlu0 %v179, 92
      %v359 = vpop.permute.xlu0 %358
      %vm360 = vcmask 752640
      %v361 = vsel %vm360, %v355, %v357
      %v362 = vsel %vm360, %v357, %v359
      %365 = vst [vmem:[#allocation2 + $0xe0] sm:$0xff] %v361
      %366 = vst [vmem:[#allocation2 + $0xe8] sm:$0xff] %v362
      %367 = vrot.lane.b32.xlu0 %v177, 80
      %v368 = vpop.permute.xlu0 %367
      %369 = vrot.lane.b32.xlu0 %v178, 80
      %v370 = vpop.permute.xlu0 %369
      %371 = vrot.lane.b32.xlu0 %v179, 80
      %v372 = vpop.permute.xlu0 %371
      %vm373 = vcmask 654336
      %v374 = vsel %vm373, %v368, %v370
      %v375 = vsel %vm373, %v370, %v372
      %378 = vst [vmem:[#allocation2 + $0xf0] sm:$0xff] %v374
      %379 = vst [vmem:[#allocation2 + $0xf8] sm:$0xff] %v375
      %380 = vrot.lane.b32.xlu0 %v177, 79
      %v381 = vpop.permute.xlu0 %380
      %382 = vrot.lane.b32.xlu0 %v178, 79
      %v383 = vpop.permute.xlu0 %382
      %384 = vrot.lane.b32.xlu0 %v179, 79
      %v385 = vpop.permute.xlu0 %384
      %vm386 = vcmask 646144
      %v387 = vsel %vm386, %v381, %v383
      %v388 = vsel %vm386, %v383, %v385
      %391 = vst [vmem:[#allocation2 + $0x100] sm:$0xff] %v387
      %392 = vst [vmem:[#allocation2 + $0x108] sm:$0xff] %v388
      %393 = vrot.lane.b32.xlu0 %v177, 78
      %v394 = vpop.permute.xlu0 %393
      %395 = vrot.lane.b32.xlu0 %v178, 78
      %v396 = vpop.permute.xlu0 %395
      %397 = vrot.lane.b32.xlu0 %v179, 78
      %v398 = vpop.permute.xlu0 %397
      %vm399 = vcmask 637952
      %v400 = vsel %vm399, %v394, %v396
      %v401 = vsel %vm399, %v396, %v398
      %404 = vst [vmem:[#allocation2 + $0x110] sm:$0xff] %v400
      %405 = vst [vmem:[#allocation2 + $0x118] sm:$0xff] %v401
      %406 = vrot.lane.b32.xlu0 %v177, 77
      %v407 = vpop.permute.xlu0 %406
      %408 = vrot.lane.b32.xlu0 %v178, 77
      %v409 = vpop.permute.xlu0 %408
      %410 = vrot.lane.b32.xlu0 %v179, 77
      %v411 = vpop.permute.xlu0 %410
      %vm412 = vcmask 629760
      %v413 = vsel %vm412, %v407, %v409
      %v414 = vsel %vm412, %v409, %v411
      %417 = vst [vmem:[#allocation2 + $0x120] sm:$0xff] %v413
      %418 = vst [vmem:[#allocation2 + $0x128] sm:$0xff] %v414
      %419 = vrot.lane.b32.xlu0 %v177, 76
      %v420 = vpop.permute.xlu0 %419
      %421 = vrot.lane.b32.xlu0 %v178, 76
      %v422 = vpop.permute.xlu0 %421
      %423 = vrot.lane.b32.xlu0 %v179, 76
      %v424 = vpop.permute.xlu0 %423
      %vm425 = vcmask 621568
      %v426 = vsel %vm425, %v420, %v422
      %v427 = vsel %vm425, %v422, %v424
      %430 = vst [vmem:[#allocation2 + $0x130] sm:$0xff] %v426
      %431 = vst [vmem:[#allocation2 + $0x138] sm:$0xff] %v427
      %432 = vrot.lane.b32.xlu0 %v177, 64
      %v433 = vpop.permute.xlu0 %432
      %434 = vrot.lane.b32.xlu0 %v178, 64
      %v435 = vpop.permute.xlu0 %434
      %436 = vrot.lane.b32.xlu0 %v179, 64
      %v437 = vpop.permute.xlu0 %436
      %vm438 = vcmask 523264
      %v439 = vsel %vm438, %v433, %v435
      %v440 = vsel %vm438, %v435, %v437
      %443 = vst [vmem:[#allocation2 + $0x140] sm:$0xff] %v439
      %444 = vst [vmem:[#allocation2 + $0x148] sm:$0xff] %v440
      %445 = vrot.lane.b32.xlu0 %v177, 63
      %v446 = vpop.permute.xlu0 %445
      %447 = vrot.lane.b32.xlu0 %v178, 63
      %v448 = vpop.permute.xlu0 %447
      %449 = vrot.lane.b32.xlu0 %v179, 63
      %v450 = vpop.permute.xlu0 %449
      %vm451 = vcmask 515072
      %v452 = vsel %vm451, %v446, %v448
      %v453 = vsel %vm451, %v448, %v450
      %456 = vst [vmem:[#allocation2 + $0x150] sm:$0xff] %v452
      %457 = vst [vmem:[#allocation2 + $0x158] sm:$0xff] %v453
      %458 = vrot.lane.b32.xlu0 %v177, 62
      %v459 = vpop.permute.xlu0 %458
      %460 = vrot.lane.b32.xlu0 %v178, 62
      %v461 = vpop.permute.xlu0 %460
      %462 = vrot.lane.b32.xlu0 %v179, 62
      %v463 = vpop.permute.xlu0 %462
      %vm464 = vcmask 506880
      %v465 = vsel %vm464, %v459, %v461
      %v466 = vsel %vm464, %v461, %v463
      %469 = vst [vmem:[#allocation2 + $0x160] sm:$0xff] %v465
      %470 = vst [vmem:[#allocation2 + $0x168] sm:$0xff] %v466
      %471 = vrot.lane.b32.xlu0 %v177, 61
      %v472 = vpop.permute.xlu0 %471
      %473 = vrot.lane.b32.xlu0 %v178, 61
      %v474 = vpop.permute.xlu0 %473
      %475 = vrot.lane.b32.xlu0 %v179, 61
      %v476 = vpop.permute.xlu0 %475
      %vm477 = vcmask 498688
      %v478 = vsel %vm477, %v472, %v474
      %v479 = vsel %vm477, %v474, %v476
      %482 = vst [vmem:[#allocation2 + $0x170] sm:$0xff] %v478
      %483 = vst [vmem:[#allocation2 + $0x178] sm:$0xff] %v479
      %484 = vrot.lane.b32.xlu0 %v177, 60
      %v485 = vpop.permute.xlu0 %484
      %486 = vrot.lane.b32.xlu0 %v178, 60
      %v487 = vpop.permute.xlu0 %486
      %488 = vrot.lane.b32.xlu0 %v179, 60
      %v489 = vpop.permute.xlu0 %488
      %vm490 = vcmask 490496
      %v491 = vsel %vm490, %v485, %v487
      %v492 = vsel %vm490, %v487, %v489
      %495 = vst [vmem:[#allocation2 + $0x180] sm:$0xff] %v491
      %496 = vst [vmem:[#allocation2 + $0x188] sm:$0xff] %v492
      %497 = vst [vmem:[#allocation2 + $0x190] sm:$0xff] 1.0
      %498 = vst [vmem:[#allocation2 + $0x198] sm:$0xff] 1.0
      %v499 = vld [vmem:[%s1] sm:$0xf]
      %v500 = vld [vmem:[#allocation2] sm:$0xff]
      %v501 = vld [vmem:[#allocation2 + $0x8] sm:$0xff]
      %v502 = vld [vmem:[#allocation2 + $0x10] sm:$0xff]
      %v503 = vld [vmem:[#allocation2 + $0x18] sm:$0xff]
      %v504 = vld [vmem:[#allocation2 + $0x20] sm:$0xff]
      %v505 = vld [vmem:[#allocation2 + $0x28] sm:$0xff]
      %v506 = vld [vmem:[#allocation2 + $0x30] sm:$0xff]
      %v507 = vld [vmem:[#allocation2 + $0x38] sm:$0xff]
      %v508 = vld [vmem:[#allocation2 + $0x40] sm:$0xff]
      %v509 = vld [vmem:[#allocation2 + $0x48] sm:$0xff]
      %v510 = vld [vmem:[#allocation2 + $0x50] sm:$0xff]
      %v511 = vld [vmem:[#allocation2 + $0x58] sm:$0xff]
      %v512 = vld [vmem:[#allocation2 + $0x60] sm:$0xff]
      %v513 = vld [vmem:[#allocation2 + $0x68] sm:$0xff]
      %v514 = vld [vmem:[#allocation2 + $0x70] sm:$0xff]
      %v515 = vld [vmem:[#allocation2 + $0x78] sm:$0xff]
      %v516 = vld [vmem:[#allocation2 + $0x80] sm:$0xff]
      %v517 = vld [vmem:[#allocation2 + $0x88] sm:$0xff]
      %v518 = vld [vmem:[#allocation2 + $0x90] sm:$0xff]
      %v519 = vld [vmem:[#allocation2 + $0x98] sm:$0xff]
      %v520 = vld [vmem:[#allocation2 + $0xa0] sm:$0xff]
      %v521 = vld [vmem:[#allocation2 + $0xa8] sm:$0xff]
      %v522 = vld [vmem:[#allocation2 + $0xb0] sm:$0xff]
      %v523 = vld [vmem:[#allocation2 + $0xb8] sm:$0xff]
      %v524 = vld [vmem:[#allocation2 + $0xc0] sm:$0xff]
      %v525 = vld [vmem:[#allocation2 + $0xc8] sm:$0xff]
      %v526 = vld [vmem:[#allocation2 + $0xd0] sm:$0xff]
      %v527 = vld [vmem:[#allocation2 + $0xd8] sm:$0xff]
      %v528 = vld [vmem:[#allocation2 + $0xe0] sm:$0xff]
      %v529 = vld [vmem:[#allocation2 + $0xe8] sm:$0xff]
      %v530 = vld [vmem:[#allocation2 + $0xf0] sm:$0xff]
      %v531 = vld [vmem:[#allocation2 + $0xf8] sm:$0xff]
      %v532 = vld [vmem:[#allocation2 + $0x100] sm:$0xff]
      %v533 = vld [vmem:[#allocation2 + $0x108] sm:$0xff]
      %v534 = vld [vmem:[#allocation2 + $0x110] sm:$0xff]
      %v535 = vld [vmem:[#allocation2 + $0x118] sm:$0xff]
      %v536 = vld [vmem:[#allocation2 + $0x120] sm:$0xff]
      %v537 = vld [vmem:[#allocation2 + $0x128] sm:$0xff]
      %v538 = vld [vmem:[#allocation2 + $0x130] sm:$0xff]
      %v539 = vld [vmem:[#allocation2 + $0x138] sm:$0xff]
      %v540 = vld [vmem:[#allocation2 + $0x140] sm:$0xff]
      %v541 = vld [vmem:[#allocation2 + $0x148] sm:$0xff]
      %v542 = vld [vmem:[#allocation2 + $0x150] sm:$0xff]
      %v543 = vld [vmem:[#allocation2 + $0x158] sm:$0xff]
      %v544 = vld [vmem:[#allocation2 + $0x160] sm:$0xff]
      %v545 = vld [vmem:[#allocation2 + $0x168] sm:$0xff]
      %v546 = vld [vmem:[#allocation2 + $0x170] sm:$0xff]
      %v547 = vld [vmem:[#allocation2 + $0x178] sm:$0xff]
      %v548 = vld [vmem:[#allocation2 + $0x180] sm:$0xff]
      %v549 = vld [vmem:[#allocation2 + $0x188] sm:$0xff]
      %v550 = vld [vmem:[#allocation2 + $0x190] sm:$0xff]
      %v551 = vld [vmem:[#allocation2 + $0x198] sm:$0xff]
      %v554 = vunpack.c.l.s4 1983009808
      %v555 = vunpack.c.0.s8 %v554
      %v556 = vlaneseq
      %v557 = vshrl.u32 %v556, 7
      %v558 = vsub.s32 %v555, %v557
      %v559 = vrot.slane %v499, %v558
      %v560 = vcombine.high %v559, %v559
      %v562 = vsel %vm373, %v560, 0
      %564 = vmatprep.subr.mxu0 %v501
      %565 = vmatpush1.msra.mxu0 %v500
      %566 = vmatprep.subr.mxu0 %v503
      %567 = vmatpush1.msra.mxu0 %v502
      %568 = vmatprep.subr.mxu0 %v505
      %569 = vmatpush1.msra.mxu0 %v504
      %570 = vmatprep.subr.mxu0 %v507
      %571 = vmatpush1.msra.mxu0 %v506
      %572 = vmatprep.subr.mxu0 %v509
      %573 = vmatpush1.msra.mxu0 %v508
      %574 = vmatprep.subr.mxu0 %v511
      %575 = vmatpush1.msra.mxu0 %v510
      %576 = vmatprep.subr.mxu0 %v513
      %577 = vmatpush1.msra.mxu0 %v512
      %578 = vmatprep.subr.mxu0 %v515
      %579 = vmatpush1.msra.mxu0 %v514
      %580 = vmatprep.subr.mxu0 %v517
      %581 = vmatpush1.msra.mxu0 %v516
      %582 = vmatprep.subr.mxu0 %v519
      %583 = vmatpush1.msra.mxu0 %v518
      %584 = vmatprep.subr.mxu0 %v521
      %585 = vmatpush1.msra.mxu0 %v520
      %586 = vmatprep.subr.mxu0 %v523
      %587 = vmatpush1.msra.mxu0 %v522
      %588 = vmatprep.subr.mxu0 %v525
      %589 = vmatpush1.msra.mxu0 %v524
      %590 = vmatprep.subr.mxu0 %v527
      %591 = vmatpush1.msra.mxu0 %v526
      %592 = vmatprep.subr.mxu0 %v529
      %593 = vmatpush1.msra.mxu0 %v528
      %594 = vmatprep.subr.mxu0 %v531
      %595 = vmatpush1.msra.mxu0 %v530
      %596 = vmatprep.subr.mxu0 %v533
      %597 = vmatpush1.msra.mxu0 %v532
      %598 = vmatprep.subr.mxu0 %v535
      %599 = vmatpush1.msra.mxu0 %v534
      %600 = vmatprep.subr.mxu0 %v537
      %601 = vmatpush1.msra.mxu0 %v536
      %602 = vmatprep.subr.mxu0 %v539
      %603 = vmatpush1.msra.mxu0 %v538
      %604 = vmatprep.subr.mxu0 %v541
      %605 = vmatpush1.msra.mxu0 %v540
      %606 = vmatprep.subr.mxu0 %v543
      %607 = vmatpush1.msra.mxu0 %v542
      %608 = vmatprep.subr.mxu0 %v545
      %609 = vmatpush1.msra.mxu0 %v544
      %610 = vmatprep.subr.mxu0 %v547
      %611 = vmatpush1.msra.mxu0 %v546
      %612 = vmatprep.subr.mxu0 %v549
      %613 = vmatpush1.msra.mxu0 %v548
      %614 = vmatprep.subr.mxu0 %v551
      %615 = vmatpush1.msra.mxu0 %v550
      %616 = vmatprep.subr.mxu0 0.0
      %617 = vmatpush1.msra.mxu0 0.0
      %618 = vmatprep.subr.mxu0 0.0
      %619 = vmatpush1.msra.mxu0 0.0
      %620 = vmatprep.subr.mxu0 0.0
      %621 = vmatpush1.msra.mxu0 0.0
      %622 = vmatprep.subr.mxu0 0.0
      %623 = vmatpush1.msra.mxu0 0.0
      %624 = vmatprep.subr.mxu0 0.0
      %625 = vmatpush1.msra.mxu0 0.0
      %626 = vmatprep.subr.mxu0 0.0
      %627 = vmatpush1.msra.mxu0 0.0
      %628 = vmatprep.mubr.f32.mxu0 %v562
      %629 = vmatmul.mubr.f32.gmra.mrb[0].mxu0 %v559
      %v630 = vpop.f32.mrb[0].mxu0
      %v631 = vadd.f32 0.0, %v630
      %v632 = vpop.f32.mrb[0].mxu0
      %v633 = vadd.f32 0.0, %v632
      %634 = vdwg.mxu0
      %v635 = vsub.f32 0.0, %v631
      %v636 = vsub.f32 0.0, %v633
      %v637 = vmul.f32 %v635, 1.442695
      %v638 = vpow.pop %v637
      %v639 = vmul.f32 %v636, 1.442695
      %v640 = vpow.pop %v639
      %v641 = vadd.f32 %v638, 1.0
      %v642 = vadd.f32 %v640, 1.0
      %v643 = vrcp.pop %v641
      %v644 = vrcp.pop %v642
      %v647 = vcombine.low %v643, %v644
      %v649 = vunpack.c.l.s4 1983009808
      %v650 = vunpack.c.0.s8 %v649
      %v651 = vlaneseq
      %v652 = vshrl.u32 %v651, 7
      %v653 = vsub.s32 %v650, %v652
      %v654 = vrot.slane %v647, %v653
      %656 = vst [vmem:[%s143] sm:$0xf] %v654
      %p657 = scmp.lt.s32.totalorder %s13, 1
      %s658 = scalar_select %p657, %s13, 1
      %s659 = smul.addr %s658, 2
      %s660 = smul.addr %s659, 2
      %s661 = scalar_lea.vmem %s2, %s660
      // Predicated region
      $region29: #{neko_lens_fuse_forward.3} parent=27 // pred_check
        %p662 = pneg %p78
      $region30: #{neko_lens_fuse_forward.3} parent=27 // pred_check_branch
        %664 = sbr.rel (%p662) target = $region32
      $region31: #{neko_lens_fuse_forward.3} parent=27 // pred_region
        _
      $region32: #{neko_lens_fuse_forward.3} parent=27 // pred_fallthru
        _
    $region28: #{neko_lens_fuse_forward.3} parent=5 // pred_fallthru
      _
    %p665 = scmp.le.s32.totalorder 2, %s8
    // Predicated region
    $region33: #{neko_lens_fuse_forward.3} parent=5 // pred_check
      %p666 = pneg %p665
    $region34: #{neko_lens_fuse_forward.3} parent=5 // pred_check_branch
      %668 = sbr.rel (%p666) target = $region36
    $region35: #{neko_lens_fuse_forward.3} parent=5 // pred_region
      %s669 = ssub.s32 %s8, 2
      // Predicated region
      $region37: #{neko_lens_fuse_forward.3} parent=35 // pred_check
        %p670 = pneg %p84
      $region38: #{neko_lens_fuse_forward.3} parent=35 // pred_check_branch
        %672 = sbr.rel (%p670) target = $region40
      $region39: #{neko_lens_fuse_forward.3} parent=35 // pred_region
        %p673 = scmp.lt.s32.totalorder %s14, 1
        %s674 = scalar_select %p673, %s14, 1
        %s675 = smul.addr %s674, 2
        %s676 = smul.addr %s675, 2
        %s677 = scalar_lea.vmem %s2, %s676
      $region40: #{neko_lens_fuse_forward.3} parent=35 // pred_fallthru
        _
    $region36: #{neko_lens_fuse_forward.3} parent=5 // pred_fallthru
      _
  $region6: #{neko_lens_fuse_forward.3} parent=0 // loop_footer
    %s12 = sadd.s32 1, %s8
  $region7: #{neko_lens_fuse_forward.3} parent=0 // loop_footer_branch
    %7 = sbr.rel target = $region3
  $region8: #{neko_lens_fuse_forward.3} parent=0 // loop_exit
    _

// kernel: neko_lens_fuse_forward.5
$region0: #{neko_lens_fuse_forward.5}
  #allocation0 [shape = 'u32[]', space=smem, size = 0x4, offset = 0x4, fixed_abs, tag = 'smem constant byte address 0x4 - core index']
  #allocation1 [shape = 'u32[144,128]{1,0:T(1,128)}', space=vmem, size = 0x12000, scoped, tag = 'internal scratch']
  %s0 = inlined_call_operand.vmem [shape: f32[2,2,256], index: 0, kind: input, shape index: {}]
  %s1 = inlined_call_operand.vmem [shape: f32[2,8,256], index: 1, kind: input, shape index: {}]
  %s2 = inlined_call_operand.vmem [shape: f32[2,8,64], index: 2, kind: input, shape index: {}]
  %s3 = inlined_call_operand.vmem [shape: f32[256,128], index: 3, kind: input, shape index: {}]
  %s4 = inlined_call_operand.vmem [shape: f32[2,8,128], index: 4, kind: output, shape index: {}]
  %s5 = sld [smem:[#allocation0]]
  $region53: #{neko_lens_fuse_forward.5} parent=0
    _
  %s7 = ssub.s32 1, %s5
  %s8 = scalar_select 0, %s7, %s5
  loop: start=0, step=1, limit=6
  $region2: #{neko_lens_fuse_forward.5} parent=0 // loop_pre_header
    _
  $region3: #{neko_lens_fuse_forward.5} parent=0 // loop_header
    %s10 = sphi 0, %s14
    %p11 = scmp.ge.s32.totalorder %s10, 6
    %s17 = sphi 0, %s29
    %s18 = sphi 0, %s25
    %s19 = sphi 0, %s17
    %s20 = sphi 0, %s18
    %s21 = sphi 0, %s19
    %s22 = sphi 0, %s20
    %s34 = sphi 0, %s36
    %s37 = sphi 0, %s34
    %s38 = sphi 0, %s37
    %s54 = sphi 0, %s38
    %s60 = sphi 0, %s62
    %s63 = sphi 0, %s60
    %s64 = sphi 0, %s63
    %s80 = sphi 0, %s64
    %s86 = sphi 0, %s88
    %s89 = sphi 0, %s86
    %s90 = sphi 0, %s89
    %s106 = sphi 0, %s90
    %s112 = sphi 0, %s114
    %s115 = sphi 0, %s112
    %s116 = sphi 0, %s115
    %s132 = sphi 0, %s116
    %s138 = sphi 0, %s140
    %s141 = sphi 0, %s138
    %s142 = sphi 0, %s141
    %s158 = sphi 0, %s142
  $region4: #{neko_lens_fuse_forward.5} parent=0 // loop_header_branch
    %13 = sbr.rel (%p11) target = $region8
  $region5: #{neko_lens_fuse_forward.5} parent=0 // loop_body
    %s15 = ssub.s32 %s10, 1
    %s16 = ssub.s32 %s10, 2
    %s23 = sadd.s32 1, %s18
    %p24 = scmp.ge.s32.totalorder %s23, 2
    %s25 = scalar_select %p24, 0, %s23
    %s26 = sadd.s32 1, %s17
    %s27 = scalar_select %p24, %s26, %s17
    %p28 = scmp.ge.s32.totalorder %s27, 2
    %s29 = scalar_select %p28, 0, %s27
    %s30 = ssub.s32 %s17, %s29
    %s31 = ssub.s32 %s18, %s25
    %s32 = sor.u32 %s30, %s31
    %p33 = scmp.eq.s32.totalorder %s32, 0
    %s35 = sadd.s32 %s34, 1
    %s36 = scalar_select %p33, %s34, %s35
    %p39 = pneg %p33
    %p40 = scmp.eq.s32.totalorder %s10, 3
    %p41 = por %p39, %p40
    %p42 = scmp.ne.s32.totalorder %s34, %s37
    %p43 = scmp.eq.s32.totalorder %s10, 0
    %p44 = por %p42, %p43
    %p45 = scmp.ne.s32.totalorder %s34, %s37
    %p46 = scmp.eq.s32.totalorder %s15, 3
    %p47 = por %p45, %p46
    %p48 = scmp.ne.s32.totalorder %s37, %s38
    %p49 = scmp.eq.s32.totalorder %s15, 0
    %p50 = por %p48, %p49
    %p51 = scmp.ne.s32.totalorder %s37, %s38
    %p52 = scmp.eq.s32.totalorder %s16, 3
    %p53 = por %p51, %p52
    %p55 = scmp.ne.s32.totalorder %s38, %s54
    %p56 = scmp.eq.s32.totalorder %s16, 0
    %p57 = por %p55, %p56
    %s58 = ssub.s32 %s17, %s29
    %p59 = scmp.eq.s32.totalorder %s58, 0
    %s61 = sadd.s32 %s60, 1
    %s62 = scalar_select %p59, %s60, %s61
    %p65 = pneg %p59
    %p66 = scmp.eq.s32.totalorder %s10, 3
    %p67 = por %p65, %p66
    %p68 = scmp.ne.s32.totalorder %s60, %s63
    %p69 = scmp.eq.s32.totalorder %s10, 0
    %p70 = por %p68, %p69
    %p71 = scmp.ne.s32.totalorder %s60, %s63
    %p72 = scmp.eq.s32.totalorder %s15, 3
    %p73 = por %p71, %p72
    %p74 = scmp.ne.s32.totalorder %s63, %s64
    %p75 = scmp.eq.s32.totalorder %s15, 0
    %p76 = por %p74, %p75
    %p77 = scmp.ne.s32.totalorder %s63, %s64
    %p78 = scmp.eq.s32.totalorder %s16, 3
    %p79 = por %p77, %p78
    %p81 = scmp.ne.s32.totalorder %s64, %s80
    %p82 = scmp.eq.s32.totalorder %s16, 0
    %p83 = por %p81, %p82
    %s84 = ssub.s32 %s17, %s29
    %p85 = scmp.eq.s32.totalorder %s84, 0
    %s87 = sadd.s32 %s86, 1
    %s88 = scalar_select %p85, %s86, %s87
    %p91 = pneg %p85
    %p92 = scmp.eq.s32.totalorder %s10, 3
    %p93 = por %p91, %p92
    %p94 = scmp.ne.s32.totalorder %s86, %s89
    %p95 = scmp.eq.s32.totalorder %s10, 0
    %p96 = por %p94, %p95
    %p97 = scmp.ne.s32.totalorder %s86, %s89
    %p98 = scmp.eq.s32.totalorder %s15, 3
    %p99 = por %p97, %p98
    %p100 = scmp.ne.s32.totalorder %s89, %s90
    %p101 = scmp.eq.s32.totalorder %s15, 0
    %p102 = por %p100, %p101
    %p103 = scmp.ne.s32.totalorder %s89, %s90
    %p104 = scmp.eq.s32.totalorder %s16, 3
    %p105 = por %p103, %p104
    %p107 = scmp.ne.s32.totalorder %s90, %s106
    %p108 = scmp.eq.s32.totalorder %s16, 0
    %p109 = por %p107, %p108
    %s110 = ssub.s32 %s18, %s25
    %p111 = scmp.eq.s32.totalorder %s110, 0
    %s113 = sadd.s32 %s112, 1
    %s114 = scalar_select %p111, %s112, %s113
    %p117 = pneg %p111
    %p118 = scmp.eq.s32.totalorder %s10, 3
    %p119 = por %p117, %p118
    %p120 = scmp.ne.s32.totalorder %s112, %s115
    %p121 = scmp.eq.s32.totalorder %s10, 0
    %p122 = por %p120, %p121
    %p123 = scmp.ne.s32.totalorder %s112, %s115
    %p124 = scmp.eq.s32.totalorder %s15, 3
    %p125 = por %p123, %p124
    %p126 = scmp.ne.s32.totalorder %s115, %s116
    %p127 = scmp.eq.s32.totalorder %s15, 0
    %p128 = por %p126, %p127
    %p129 = scmp.ne.s32.totalorder %s115, %s116
    %p130 = scmp.eq.s32.totalorder %s16, 3
    %p131 = por %p129, %p130
    %p133 = scmp.ne.s32.totalorder %s116, %s132
    %p134 = scmp.eq.s32.totalorder %s16, 0
    %p135 = por %p133, %p134
    %s136 = ssub.s32 %s17, %s29
    %p137 = scmp.eq.s32.totalorder %s136, 0
    %s139 = sadd.s32 %s138, 1
    %s140 = scalar_select %p137, %s138, %s139
    %p143 = pneg %p137
    %p144 = scmp.eq.s32.totalorder %s10, 3
    %p145 = por %p143, %p144
    %p146 = scmp.ne.s32.totalorder %s138, %s141
    %p147 = scmp.eq.s32.totalorder %s10, 0
    %p148 = por %p146, %p147
    %p149 = scmp.ne.s32.totalorder %s138, %s141
    %p150 = scmp.eq.s32.totalorder %s15, 3
    %p151 = por %p149, %p150
    %p152 = scmp.ne.s32.totalorder %s141, %s142
    %p153 = scmp.eq.s32.totalorder %s15, 0
    %p154 = por %p152, %p153
    %p155 = scmp.ne.s32.totalorder %s141, %s142
    %p156 = scmp.eq.s32.totalorder %s16, 3
    %p157 = por %p155, %p156
    %p159 = scmp.ne.s32.totalorder %s142, %s158
    %p160 = scmp.eq.s32.totalorder %s16, 0
    %p161 = por %p159, %p160
    %p162 = scmp.le.s32.totalorder 1, %s10
    %p163 = scmp.lt.s32.totalorder %s10, 5
    %p164 = pnand %p162, %p163
    %p165 = pneg %p164
    // Predicated region
    $region9: #{neko_lens_fuse_forward.5} parent=5 // pred_check
      _
    $region10: #{neko_lens_fuse_forward.5} parent=5 // pred_check_branch
      %167 = sbr.rel (%p164) target = $region12
    $region11: #{neko_lens_fuse_forward.5} parent=5 // pred_region
      %s168 = ssub.s32 %s10, 1
    $region12: #{neko_lens_fuse_forward.5} parent=5 // pred_fallthru
      _
    %p169 = scmp.lt.s32.totalorder %s10, 4
    // Predicated region
    $region13: #{neko_lens_fuse_forward.5} parent=5 // pred_check
      %p170 = pneg %p169
    $region14: #{neko_lens_fuse_forward.5} parent=5 // pred_check_branch
      %172 = sbr.rel (%p170) target = $region16
    $region15: #{neko_lens_fuse_forward.5} parent=5 // pred_region
      // Predicated region
      $region17: #{neko_lens_fuse_forward.5} parent=15 // pred_check
        %p173 = pneg %p44
      $region18: #{neko_lens_fuse_forward.5} parent=15 // pred_check_branch
        %175 = sbr.rel (%p173) target = $region20
      $region19: #{neko_lens_fuse_forward.5} parent=15 // pred_region
        %p176 = scmp.lt.s32.totalorder %s17, 1
        %s177 = scalar_select %p176, %s17, 1
        %p178 = scmp.lt.s32.totalorder %s18, 1
        %s179 = scalar_select %p178, %s18, 1
        %s180 = smul.addr %s177, 2
        %s181 = sadd.s32 %s179, %s180
        %s182 = smul.addr %s181, 2
        %s183 = scalar_lea.vmem %s0, %s182
      $region20: #{neko_lens_fuse_forward.5} parent=15 // pred_fallthru
        _
      // Predicated region
      $region21: #{neko_lens_fuse_forward.5} parent=15 // pred_check
        %p184 = pneg %p70
      $region22: #{neko_lens_fuse_forward.5} parent=15 // pred_check_branch
        %186 = sbr.rel (%p184) target = $region24
      $region23: #{neko_lens_fuse_forward.5} parent=15 // pred_region
        %p187 = scmp.lt.s32.totalorder %s17, 1
        %s188 = scalar_select %p187, %s17, 1
        %s189 = smul.addr %s188, 2
        %s190 = smul.addr %s189, 8
        %s191 = scalar_lea.vmem %s1, %s190
      $region24: #{neko_lens_fuse_forward.5} parent=15 // pred_fallthru
        _
      // Predicated region
      $region25: #{neko_lens_fuse_forward.5} parent=15 // pred_check
        %p192 = pneg %p96
      $region26: #{neko_lens_fuse_forward.5} parent=15 // pred_check_branch
        %194 = sbr.rel (%p192) target = $region28
      $region27: #{neko_lens_fuse_forward.5} parent=15 // pred_region
        %p195 = scmp.lt.s32.totalorder %s17, 1
        %s196 = scalar_select %p195, %s17, 1
        %s197 = smul.addr %s196, 8
        %s198 = scalar_lea.vmem %s2, %s197
      $region28: #{neko_lens_fuse_forward.5} parent=15 // pred_fallthru
        _
      // Predicated region
      $region29: #{neko_lens_fuse_forward.5} parent=15 // pred_check
        %p199 = pneg %p122
      $region30: #{neko_lens_fuse_forward.5} parent=15 // pred_check_branch
        %201 = sbr.rel (%p199) target = $region32
      $region31: #{neko_lens_fuse_forward.5} parent=15 // pred_region
        %s202 = smul.u32 16, %s18
        %p203 = scmp.lt.s32.totalorder %s202, 31
        %s204 = scalar_select %p203, %s202, 31
        %s205 = smul.addr %s204, 8
        %s206 = scalar_lea.vmem %s3, %s205
        %s207 = smul.u32 16, %s18
      $region32: #{neko_lens_fuse_forward.5} parent=15 // pred_fallthru
        _
    $region16: #{neko_lens_fuse_forward.5} parent=5 // pred_fallthru
      _
    %p208 = scmp.le.s32.totalorder 1, %s10
    %p209 = scmp.lt.s32.totalorder %s10, 5
    %p210 = pnand %p208, %p209
    %p211 = pneg %p210
    // Predicated region
    $region33: #{neko_lens_fuse_forward.5} parent=5 // pred_check
      _
    $region34: #{neko_lens_fuse_forward.5} parent=5 // pred_check_branch
      %213 = sbr.rel (%p210) target = $region36
    $region35: #{neko_lens_fuse_forward.5} parent=5 // pred_region
      %s214 = ssub.s32 %s10, 1
      %p215 = scmp.lt.s32.totalorder %s19, 1
      %s216 = scalar_select %p215, %s19, 1
      %p217 = scmp.lt.s32.totalorder %s20, 1
      %s218 = scalar_select %p217, %s20, 1
      %s219 = smul.addr %s216, 2
      %s220 = sadd.s32 %s218, %s219
      %s221 = smul.addr %s220, 2
      %s222 = scalar_lea.vmem %s0, %s221
      %p223 = pneg %p50
      %p224 = pneg %p47
      %p225 = scmp.lt.s32.totalorder %s19, 1
      %s226 = scalar_select %p225, %s19, 1
      %s227 = smul.addr %s226, 2
      %s228 = smul.addr %s227, 8
      %s229 = scalar_lea.vmem %s1, %s228
      %p230 = pneg %p76
      %p231 = pneg %p73
      %p232 = scmp.lt.s32.totalorder %s19, 1
      %s233 = scalar_select %p232, %s19, 1
      %s234 = smul.addr %s233, 8
      %s235 = scalar_lea.vmem %s2, %s234
      %p236 = pneg %p102
      %p237 = pneg %p99
      %s238 = smul.u32 16, %s20
      %p239 = scmp.lt.s32.totalorder %s238, 31
      %s240 = scalar_select %p239, %s238, 31
      %s241 = smul.addr %s240, 8
      %s242 = scalar_lea.vmem %s3, %s241
      %p243 = pneg %p128
      %p244 = pneg %p125
      %p245 = pneg %p154
      %p246 = pneg %p151
      %p247 = scmp.lt.s32.totalorder %s19, 1
      %s248 = scalar_select %p247, %s19, 1
      %s249 = smul.addr %s248, 8
      %s250 = scalar_lea.vmem %s4, %s249
      %p251 = scmp.lt.s32.totalorder %s19, 1
      %s252 = scalar_select %p251, %s19, 1
      %p253 = scmp.lt.s32.totalorder %s20, 1
      %s254 = scalar_select %p253, %s20, 1
      %s255 = smul.addr %s252, 2
      %s256 = sadd.s32 %s254, %s255
      %s257 = smul.addr %s256, 2
      %s258 = scalar_lea.vmem %s0, %s257
      %p259 = scmp.lt.s32.totalorder %s19, 1
      %s260 = scalar_select %p259, %s19, 1
      %s261 = smul.addr %s260, 2
      %s262 = smul.addr %s261, 8
      %s263 = scalar_lea.vmem %s1, %s262
      %p264 = scmp.lt.s32.totalorder %s19, 1
      %s265 = scalar_select %p264, %s19, 1
      %s266 = smul.addr %s265, 8
      %s267 = scalar_lea.vmem %s2, %s266
      %s268 = smul.u32 16, %s20
      %p269 = scmp.lt.s32.totalorder %s268, 31
      %s270 = scalar_select %p269, %s268, 31
      %s271 = smul.addr %s270, 8
      %s272 = scalar_lea.vmem %s3, %s271
      %s273 = smul.u32 16, %s20
      %p274 = scmp.lt.s32.totalorder %s19, 1
      %s275 = scalar_select %p274, %s19, 1
      %s276 = smul.addr %s275, 8
      %s277 = scalar_lea.vmem %s4, %s276
      %v279 = vld [vmem:[%s258] sm:$0x3]
      %v280 = vld [vmem:[%s263] sm:$0xff]
      %v281 = vld [vmem:[%s263 + $0x8] sm:$0xff]
      %v282 = vadd.f32 %v279, 1.0
      %v283 = vmul.f32 %v282, 16.0
      %v284 = vsub.f32 %v283, 1.0
      %v285 = vmul.f32 %v284, 0.5
      %v286 = vfloor.f32 %v285
      %v287 = vadd.f32 %v286, 1.0
      %v288 = vsub.f32 %v285, %v286
      %v289 = vsub.f32 1.0, %v288
      %v290 = vlaneseq
      %v291 = vshrl.u32 %v290, 7
      %v292 = vadd.s32 %v291, 8
      %v293 = vadd.s32 %v291, 16
      %v294 = vadd.s32 %v291, 24
      %v295 = vadd.s32 %v291, 32
      %v296 = vadd.s32 %v291, 40
      %v297 = vadd.s32 %v291, 48
      %v298 = vadd.s32 %v291, 56
      %v299 = vadd.s32 %v291, 64
      %v300 = vadd.s32 %v291, 72
      %v301 = vadd.s32 %v291, 80
      %v302 = vadd.s32 %v291, 88
      %v303 = vadd.s32 %v291, 96
      %v304 = vadd.s32 %v291, 104
      %v305 = vadd.s32 %v291, 112
      %v306 = vadd.s32 %v291, 120
      %v307 = vadd.s32 %v291, 128
      %v308 = vadd.s32 %v291, 136
      %v309 = vadd.s32 %v291, 144
      %v310 = vadd.s32 %v291, 152
      %v311 = vadd.s32 %v291, 160
      %v312 = vadd.s32 %v291, 168
      %v313 = vadd.s32 %v291, 176
      %v314 = vadd.s32 %v291, 184
      %v315 = vadd.s32 %v291, 192
      %v316 = vadd.s32 %v291, 200
      %v317 = vadd.s32 %v291, 208
      %v318 = vadd.s32 %v291, 216
      %v319 = vadd.s32 %v291, 224
      %v320 = vadd.s32 %v291, 232
      %v321 = vadd.s32 %v291, 240
      %v322 = vadd.s32 %v291, 248
      %v323 = vcvt.s32.f32 %v291
      %v324 = vcvt.s32.f32 %v292
      %v325 = vcvt.s32.f32 %v293
      %v326 = vcvt.s32.f32 %v294
      %v327 = vcvt.s32.f32 %v295
      %v328 = vcvt.s32.f32 %v296
      %v329 = vcvt.s32.f32 %v297
      %v330 = vcvt.s32.f32 %v298
      %v331 = vcvt.s32.f32 %v299
      %v332 = vcvt.s32.f32 %v300
      %v333 = vcvt.s32.f32 %v301
      %v334 = vcvt.s32.f32 %v302
      %v335 = vcvt.s32.f32 %v303
      %v336 = vcvt.s32.f32 %v304
      %v337 = vcvt.s32.f32 %v305
      %v338 = vcvt.s32.f32 %v306
      %v339 = vcvt.s32.f32 %v307
      %v340 = vcvt.s32.f32 %v308
      %v341 = vcvt.s32.f32 %v309
      %v342 = vcvt.s32.f32 %v310
      %v343 = vcvt.s32.f32 %v311
      %v344 = vcvt.s32.f32 %v312
      %v345 = vcvt.s32.f32 %v313
      %v346 = vcvt.s32.f32 %v314
      %v347 = vcvt.s32.f32 %v315
      %v348 = vcvt.s32.f32 %v316
      %v349 = vcvt.s32.f32 %v317
      %v350 = vcvt.s32.f32 %v318
      %v351 = vcvt.s32.f32 %v319
      %v352 = vcvt.s32.f32 %v320
      %v353 = vcvt.s32.f32 %v321
      %v354 = vcvt.s32.f32 %v322
      %v356 = vrot.slane %v289, 7
      %v358 = vmul.f32 %v289, %v356
      %vm359 = vcmp.ge.f32.partialorder %v286, 0.0
      %vm360 = vcmp.le.f32.partialorder %v286, 15.0
      %vm361 = vmand %vm359, %vm360
      %v362 = vsel %vm359, 1, 0
      %v363 = vrot.slane %v362, 1
      %vm364 = vcmp.ne.s32.totalorder %v363, 0
      %vm365 = vmand %vm361, %vm364
      %v366 = vsel %vm360, 1, 0
      %v367 = vrot.slane %v366, 1
      %vm368 = vcmp.ne.s32.totalorder %v367, 0
      %vm369 = vmand %vm365, %vm368
      %v371 = vrot.slane %v358, 1
      %v373 = vsel %vm369, %v371, 0.0
      %v374 = vmul.f32 %v286, 16.0
      %v376 = vrot.slane %v286, 7
      %v378 = vadd.f32 %v374, %v376
      %v379 = vlaneseq
      %v380 = vshrl.u32 %v379, 7
      %v381 = vsub.s32 1, %v380
      %v382 = vrot.slane %v378, %v381
      %vm383 = vcmp.eq.f32.partialorder %v323, %v382
      %vm384 = vcmp.eq.f32.partialorder %v324, %v382
      %vm385 = vcmp.eq.f32.partialorder %v325, %v382
      %vm386 = vcmp.eq.f32.partialorder %v326, %v382
      %vm387 = vcmp.eq.f32.partialorder %v327, %v382
      %vm388 = vcmp.eq.f32.partialorder %v328, %v382
      %vm389 = vcmp.eq.f32.partialorder %v329, %v382
      %vm390 = vcmp.eq.f32.partialorder %v330, %v382
      %vm391 = vcmp.eq.f32.partialorder %v331, %v382
      %vm392 = vcmp.eq.f32.partialorder %v332, %v382
      %vm393 = vcmp.eq.f32.partialorder %v333, %v382
      %vm394 = vcmp.eq.f32.partialorder %v334, %v382
      %vm395 = vcmp.eq.f32.partialorder %v335, %v382
      %vm396 = vcmp.eq.f32.partialorder %v336, %v382
      %vm397 = vcmp.eq.f32.partialorder %v337, %v382
      %vm398 = vcmp.eq.f32.partialorder %v338, %v382
      %vm399 = vcmp.eq.f32.partialorder %v339, %v382
      %vm400 = vcmp.eq.f32.partialorder %v340, %v382
      %vm401 = vcmp.eq.f32.partialorder %v341, %v382
      %vm402 = vcmp.eq.f32.partialorder %v342, %v382
      %vm403 = vcmp.eq.f32.partialorder %v343, %v382
      %vm404 = vcmp.eq.f32.partialorder %v344, %v382
      %vm405 = vcmp.eq.f32.partialorder %v345, %v382
      %vm406 = vcmp.eq.f32.partialorder %v346, %v382
      %vm407 = vcmp.eq.f32.partialorder %v347, %v382
      %vm408 = vcmp.eq.f32.partialorder %v348, %v382
      %vm409 = vcmp.eq.f32.partialorder %v349, %v382
      %vm410 = vcmp.eq.f32.partialorder %v350, %v382
      %vm411 = vcmp.eq.f32.partialorder %v351, %v382
      %vm412 = vcmp.eq.f32.partialorder %v352, %v382
      %vm413 = vcmp.eq.f32.partialorder %v353, %v382
      %vm414 = vcmp.eq.f32.partialorder %v354, %v382
      %v415 = vlaneseq
      %v416 = vshrl.u32 %v415, 7
      %v417 = vsub.s32 0, %v416
      %v418 = vrot.slane %v373, %v417
      %v419 = vsel %vm383, %v418, 0.0
      %v420 = vsel %vm384, %v418, 0.0
      %v421 = vsel %vm385, %v418, 0.0
      %v422 = vsel %vm386, %v418, 0.0
      %v423 = vsel %vm387, %v418, 0.0
      %v424 = vsel %vm388, %v418, 0.0
      %v425 = vsel %vm389, %v418, 0.0
      %v426 = vsel %vm390, %v418, 0.0
      %v427 = vsel %vm391, %v418, 0.0
      %v428 = vsel %vm392, %v418, 0.0
      %v429 = vsel %vm393, %v418, 0.0
      %v430 = vsel %vm394, %v418, 0.0
      %v431 = vsel %vm395, %v418, 0.0
      %v432 = vsel %vm396, %v418, 0.0
      %v433 = vsel %vm397, %v418, 0.0
      %v434 = vsel %vm398, %v418, 0.0
      %v435 = vsel %vm399, %v418, 0.0
      %v436 = vsel %vm400, %v418, 0.0
      %v437 = vsel %vm401, %v418, 0.0
      %v438 = vsel %vm402, %v418, 0.0
      %v439 = vsel %vm403, %v418, 0.0
      %v440 = vsel %vm404, %v418, 0.0
      %v441 = vsel %vm405, %v418, 0.0
      %v442 = vsel %vm406, %v418, 0.0
      %v443 = vsel %vm407, %v418, 0.0
      %v444 = vsel %vm408, %v418, 0.0
      %v445 = vsel %vm409, %v418, 0.0
      %v446 = vsel %vm410, %v418, 0.0
      %v447 = vsel %vm411, %v418, 0.0
      %v448 = vsel %vm412, %v418, 0.0
      %v449 = vsel %vm413, %v418, 0.0
      %v450 = vsel %vm414, %v418, 0.0
      %v452 = vrot.slane %v288, 7
      %v454 = vmul.f32 %v289, %v452
      %vm455 = vcmp.ge.f32.partialorder %v287, 0.0
      %vm456 = vcmp.le.f32.partialorder %v287, 15.0
      %vm457 = vmand %vm455, %vm456
      %vm458 = vmand %vm457, %vm364
      %vm459 = vmand %vm458, %vm368
      %v461 = vrot.slane %v454, 1
      %v463 = vsel %vm459, %v461, 0.0
      %v465 = vrot.slane %v287, 7
      %v467 = vadd.f32 %v374, %v465
      %v468 = vlaneseq
      %v469 = vshrl.u32 %v468, 7
      %v470 = vsub.s32 1, %v469
      %v471 = vrot.slane %v467, %v470
      %vm472 = vcmp.eq.f32.partialorder %v323, %v471
      %vm473 = vcmp.eq.f32.partialorder %v324, %v471
      %vm474 = vcmp.eq.f32.partialorder %v325, %v471
      %vm475 = vcmp.eq.f32.partialorder %v326, %v471
      %vm476 = vcmp.eq.f32.partialorder %v327, %v471
      %vm477 = vcmp.eq.f32.partialorder %v328, %v471
      %vm478 = vcmp.eq.f32.partialorder %v329, %v471
      %vm479 = vcmp.eq.f32.partialorder %v330, %v471
      %vm480 = vcmp.eq.f32.partialorder %v331, %v471
      %vm481 = vcmp.eq.f32.partialorder %v332, %v471
      %vm482 = vcmp.eq.f32.partialorder %v333, %v471
      %vm483 = vcmp.eq.f32.partialorder %v334, %v471
      %vm484 = vcmp.eq.f32.partialorder %v335, %v471
      %vm485 = vcmp.eq.f32.partialorder %v336, %v471
      %vm486 = vcmp.eq.f32.partialorder %v337, %v471
      %vm487 = vcmp.eq.f32.partialorder %v338, %v471
      %vm488 = vcmp.eq.f32.partialorder %v339, %v471
      %vm489 = vcmp.eq.f32.partialorder %v340, %v471
      %vm490 = vcmp.eq.f32.partialorder %v341, %v471
      %vm491 = vcmp.eq.f32.partialorder %v342, %v471
      %vm492 = vcmp.eq.f32.partialorder %v343, %v471
      %vm493 = vcmp.eq.f32.partialorder %v344, %v471
      %vm494 = vcmp.eq.f32.partialorder %v345, %v471
      %vm495 = vcmp.eq.f32.partialorder %v346, %v471
      %vm496 = vcmp.eq.f32.partialorder %v347, %v471
      %vm497 = vcmp.eq.f32.partialorder %v348, %v471
      %vm498 = vcmp.eq.f32.partialorder %v349, %v471
      %vm499 = vcmp.eq.f32.partialorder %v350, %v471
      %vm500 = vcmp.eq.f32.partialorder %v351, %v471
      %vm501 = vcmp.eq.f32.partialorder %v352, %v471
      %vm502 = vcmp.eq.f32.partialorder %v353, %v471
      %vm503 = vcmp.eq.f32.partialorder %v354, %v471
      %v504 = vlaneseq
      %v505 = vshrl.u32 %v504, 7
      %v506 = vsub.s32 0, %v505
      %v507 = vrot.slane %v463, %v506
      %v508 = vsel %vm472, %v507, 0.0
      %v509 = vsel %vm473, %v507, 0.0
      %v510 = vsel %vm474, %v507, 0.0
      %v511 = vsel %vm475, %v507, 0.0
      %v512 = vsel %vm476, %v507, 0.0
      %v513 = vsel %vm477, %v507, 0.0
      %v514 = vsel %vm478, %v507, 0.0
      %v515 = vsel %vm479, %v507, 0.0
      %v516 = vsel %vm480, %v507, 0.0
      %v517 = vsel %vm481, %v507, 0.0
      %v518 = vsel %vm482, %v507, 0.0
      %v519 = vsel %vm483, %v507, 0.0
      %v520 = vsel %vm484, %v507, 0.0
      %v521 = vsel %vm485, %v507, 0.0
      %v522 = vsel %vm486, %v507, 0.0
      %v523 = vsel %vm487, %v507, 0.0
      %v524 = vsel %vm488, %v507, 0.0
      %v525 = vsel %vm489, %v507, 0.0
      %v526 = vsel %vm490, %v507, 0.0
      %v527 = vsel %vm491, %v507, 0.0
      %v528 = vsel %vm492, %v507, 0.0
      %v529 = vsel %vm493, %v507, 0.0
      %v530 = vsel %vm494, %v507, 0.0
      %v531 = vsel %vm495, %v507, 0.0
      %v532 = vsel %vm496, %v507, 0.0
      %v533 = vsel %vm497, %v507, 0.0
      %v534 = vsel %vm498, %v507, 0.0
      %v535 = vsel %vm499, %v507, 0.0
      %v536 = vsel %vm500, %v507, 0.0
      %v537 = vsel %vm501, %v507, 0.0
      %v538 = vsel %vm502, %v507, 0.0
      %v539 = vsel %vm503, %v507, 0.0
      %v540 = vadd.f32 %v419, %v508
      %v541 = vadd.f32 %v420, %v509
      %v542 = vadd.f32 %v421, %v510
      %v543 = vadd.f32 %v422, %v511
      %v544 = vadd.f32 %v423, %v512
      %v545 = vadd.f32 %v424, %v513
      %v546 = vadd.f32 %v425, %v514
      %v547 = vadd.f32 %v426, %v515
      %v548 = vadd.f32 %v427, %v516
      %v549 = vadd.f32 %v428, %v517
      %v550 = vadd.f32 %v429, %v518
      %v551 = vadd.f32 %v430, %v519
      %v552 = vadd.f32 %v431, %v520
      %v553 = vadd.f32 %v432, %v521
      %v554 = vadd.f32 %v433, %v522
      %v555 = vadd.f32 %v434, %v523
      %v556 = vadd.f32 %v435, %v524
      %v557 = vadd.f32 %v436, %v525
      %v558 = vadd.f32 %v437, %v526
      %v559 = vadd.f32 %v438, %v527
      %v560 = vadd.f32 %v439, %v528
      %v561 = vadd.f32 %v440, %v529
      %v562 = vadd.f32 %v441, %v530
      %v563 = vadd.f32 %v442, %v531
      %v564 = vadd.f32 %v443, %v532
      %v565 = vadd.f32 %v444, %v533
      %v566 = vadd.f32 %v445, %v534
      %v567 = vadd.f32 %v446, %v535
      %v568 = vadd.f32 %v447, %v536
      %v569 = vadd.f32 %v448, %v537
      %v570 = vadd.f32 %v449, %v538
      %v571 = vadd.f32 %v450, %v539
      %v572 = vmul.f32 %v288, %v356
      %v573 = vsel %vm455, 1, 0
      %v574 = vrot.slane %v573, 1
      %vm575 = vcmp.ne.s32.totalorder %v574, 0
      %vm576 = vmand %vm361, %vm575
      %v577 = vsel %vm456, 1, 0
      %v578 = vrot.slane %v577, 1
      %vm579 = vcmp.ne.s32.totalorder %v578, 0
      %vm580 = vmand %vm576, %vm579
      %v582 = vrot.slane %v572, 1
      %v584 = vsel %vm580, %v582, 0.0
      %v585 = vmul.f32 %v287, 16.0
      %v586 = vadd.f32 %v585, %v376
      %v587 = vlaneseq
      %v588 = vshrl.u32 %v587, 7
      %v589 = vsub.s32 1, %v588
      %v590 = vrot.slane %v586, %v589
      %vm591 = vcmp.eq.f32.partialorder %v323, %v590
      %vm592 = vcmp.eq.f32.partialorder %v324, %v590
      %vm593 = vcmp.eq.f32.partialorder %v325, %v590
      %vm594 = vcmp.eq.f32.partialorder %v326, %v590
      %vm595 = vcmp.eq.f32.partialorder %v327, %v590
      %vm596 = vcmp.eq.f32.partialorder %v328, %v590
      %vm597 = vcmp.eq.f32.partialorder %v329, %v590
      %vm598 = vcmp.eq.f32.partialorder %v330, %v590
      %vm599 = vcmp.eq.f32.partialorder %v331, %v590
      %vm600 = vcmp.eq.f32.partialorder %v332, %v590
      %vm601 = vcmp.eq.f32.partialorder %v333, %v590
      %vm602 = vcmp.eq.f32.partialorder %v334, %v590
      %vm603 = vcmp.eq.f32.partialorder %v335, %v590
      %vm604 = vcmp.eq.f32.partialorder %v336, %v590
      %vm605 = vcmp.eq.f32.partialorder %v337, %v590
      %vm606 = vcmp.eq.f32.partialorder %v338, %v590
      %vm607 = vcmp.eq.f32.partialorder %v339, %v590
      %vm608 = vcmp.eq.f32.partialorder %v340, %v590
      %vm609 = vcmp.eq.f32.partialorder %v341, %v590
      %vm610 = vcmp.eq.f32.partialorder %v342, %v590
      %vm611 = vcmp.eq.f32.partialorder %v343, %v590
      %vm612 = vcmp.eq.f32.partialorder %v344, %v590
      %vm613 = vcmp.eq.f32.partialorder %v345, %v590
      %vm614 = vcmp.eq.f32.partialorder %v346, %v590
      %vm615 = vcmp.eq.f32.partialorder %v347, %v590
      %vm616 = vcmp.eq.f32.partialorder %v348, %v590
      %vm617 = vcmp.eq.f32.partialorder %v349, %v590
      %vm618 = vcmp.eq.f32.partialorder %v350, %v590
      %vm619 = vcmp.eq.f32.partialorder %v351, %v590
      %vm620 = vcmp.eq.f32.partialorder %v352, %v590
      %vm621 = vcmp.eq.f32.partialorder %v353, %v590
      %vm622 = vcmp.eq.f32.partialorder %v354, %v590
      %v623 = vlaneseq
      %v624 = vshrl.u32 %v623, 7
      %v625 = vsub.s32 0, %v624
      %v626 = vrot.slane %v584, %v625
      %v627 = vsel %vm591, %v626, 0.0
      %v628 = vsel %vm592, %v626, 0.0
      %v629 = vsel %vm593, %v626, 0.0
      %v630 = vsel %vm594, %v626, 0.0
      %v631 = vsel %vm595, %v626, 0.0
      %v632 = vsel %vm596, %v626, 0.0
      %v633 = vsel %vm597, %v626, 0.0
      %v634 = vsel %vm598, %v626, 0.0
      %v635 = vsel %vm599, %v626, 0.0
      %v636 = vsel %vm600, %v626, 0.0
      %v637 = vsel %vm601, %v626, 0.0
      %v638 = vsel %vm602, %v626, 0.0
      %v639 = vsel %vm603, %v626, 0.0
      %v640 = vsel %vm604, %v626, 0.0
      %v641 = vsel %vm605, %v626, 0.0
      %v642 = vsel %vm606, %v626, 0.0
      %v643 = vsel %vm607, %v626, 0.0
      %v644 = vsel %vm608, %v626, 0.0
      %v645 = vsel %vm609, %v626, 0.0
      %v646 = vsel %vm610, %v626, 0.0
      %v647 = vsel %vm611, %v626, 0.0
      %v648 = vsel %vm612, %v626, 0.0
      %v649 = vsel %vm613, %v626, 0.0
      %v650 = vsel %vm614, %v626, 0.0
      %v651 = vsel %vm615, %v626, 0.0
      %v652 = vsel %vm616, %v626, 0.0
      %v653 = vsel %vm617, %v626, 0.0
      %v654 = vsel %vm618, %v626, 0.0
      %v655 = vsel %vm619, %v626, 0.0
      %v656 = vsel %vm620, %v626, 0.0
      %v657 = vsel %vm621, %v626, 0.0
      %v658 = vsel %vm622, %v626, 0.0
      %v659 = vadd.f32 %v540, %v627
      %v660 = vadd.f32 %v541, %v628
      %v661 = vadd.f32 %v542, %v629
      %v662 = vadd.f32 %v543, %v630
      %v663 = vadd.f32 %v544, %v631
      %v664 = vadd.f32 %v545, %v632
      %v665 = vadd.f32 %v546, %v633
      %v666 = vadd.f32 %v547, %v634
      %v667 = vadd.f32 %v548, %v635
      %v668 = vadd.f32 %v549, %v636
      %v669 = vadd.f32 %v550, %v637
      %v670 = vadd.f32 %v551, %v638
      %v671 = vadd.f32 %v552, %v639
      %v672 = vadd.f32 %v553, %v640
      %v673 = vadd.f32 %v554, %v641
      %v674 = vadd.f32 %v555, %v642
      %v675 = vadd.f32 %v556, %v643
      %v676 = vadd.f32 %v557, %v644
      %v677 = vadd.f32 %v558, %v645
      %v678 = vadd.f32 %v559, %v646
      %v679 = vadd.f32 %v560, %v647
      %v680 = vadd.f32 %v561, %v648
      %v681 = vadd.f32 %v562, %v649
      %v682 = vadd.f32 %v563, %v650
      %v683 = vadd.f32 %v564, %v651
      %v684 = vadd.f32 %v565, %v652
      %v685 = vadd.f32 %v566, %v653
      %v686 = vadd.f32 %v567, %v654
      %v687 = vadd.f32 %v568, %v655
      %v688 = vadd.f32 %v569, %v656
      %v689 = vadd.f32 %v570, %v657
      %v690 = vadd.f32 %v571, %v658
      %v691 = vmul.f32 %v288, %v452
      %vm692 = vmand %vm457, %vm575
      %vm693 = vmand %vm692, %vm579
      %v695 = vrot.slane %v691, 1
      %v697 = vsel %vm693, %v695, 0.0
      %v698 = vadd.f32 %v585, %v465
      %v699 = vlaneseq
      %v700 = vshrl.u32 %v699, 7
      %v701 = vsub.s32 1, %v700
      %v702 = vrot.slane %v698, %v701
      %vm703 = vcmp.eq.f32.partialorder %v323, %v702
      %vm704 = vcmp.eq.f32.partialorder %v324, %v702
      %vm705 = vcmp.eq.f32.partialorder %v325, %v702
      %vm706 = vcmp.eq.f32.partialorder %v326, %v702
      %vm707 = vcmp.eq.f32.partialorder %v327, %v702
      %vm708 = vcmp.eq.f32.partialorder %v328, %v702
      %vm709 = vcmp.eq.f32.partialorder %v329, %v702
      %vm710 = vcmp.eq.f32.partialorder %v330, %v702
      %vm711 = vcmp.eq.f32.partialorder %v331, %v702
      %vm712 = vcmp.eq.f32.partialorder %v332, %v702
      %vm713 = vcmp.eq.f32.partialorder %v333, %v702
      %vm714 = vcmp.eq.f32.partialorder %v334, %v702
      %vm715 = vcmp.eq.f32.partialorder %v335, %v702
      %vm716 = vcmp.eq.f32.partialorder %v336, %v702
      %vm717 = vcmp.eq.f32.partialorder %v337, %v702
      %vm718 = vcmp.eq.f32.partialorder %v338, %v702
      %vm719 = vcmp.eq.f32.partialorder %v339, %v702
      %vm720 = vcmp.eq.f32.partialorder %v340, %v702
      %vm721 = vcmp.eq.f32.partialorder %v341, %v702
      %vm722 = vcmp.eq.f32.partialorder %v342, %v702
      %vm723 = vcmp.eq.f32.partialorder %v343, %v702
      %vm724 = vcmp.eq.f32.partialorder %v344, %v702
      %vm725 = vcmp.eq.f32.partialorder %v345, %v702
      %vm726 = vcmp.eq.f32.partialorder %v346, %v702
      %vm727 = vcmp.eq.f32.partialorder %v347, %v702
      %vm728 = vcmp.eq.f32.partialorder %v348, %v702
      %vm729 = vcmp.eq.f32.partialorder %v349, %v702
      %vm730 = vcmp.eq.f32.partialorder %v350, %v702
      %vm731 = vcmp.eq.f32.partialorder %v351, %v702
      %vm732 = vcmp.eq.f32.partialorder %v352, %v702
      %vm733 = vcmp.eq.f32.partialorder %v353, %v702
      %vm734 = vcmp.eq.f32.partialorder %v354, %v702
      %v735 = vlaneseq
      %v736 = vshrl.u32 %v735, 7
      %v737 = vsub.s32 0, %v736
      %v738 = vrot.slane %v697, %v737
      %v739 = vsel %vm703, %v738, 0.0
      %v740 = vsel %vm704, %v738, 0.0
      %v741 = vsel %vm705, %v738, 0.0
      %v742 = vsel %vm706, %v738, 0.0
      %v743 = vsel %vm707, %v738, 0.0
      %v744 = vsel %vm708, %v738, 0.0
      %v745 = vsel %vm709, %v738, 0.0
      %v746 = vsel %vm710, %v738, 0.0
      %v747 = vsel %vm711, %v738, 0.0
      %v748 = vsel %vm712, %v738, 0.0
      %v749 = vsel %vm713, %v738, 0.0
      %v750 = vsel %vm714, %v738, 0.0
      %v751 = vsel %vm715, %v738, 0.0
      %v752 = vsel %vm716, %v738, 0.0
      %v753 = vsel %vm717, %v738, 0.0
      %v754 = vsel %vm718, %v738, 0.0
      %v755 = vsel %vm719, %v738, 0.0
      %v756 = vsel %vm720, %v738, 0.0
      %v757 = vsel %vm721, %v738, 0.0
      %v758 = vsel %vm722, %v738, 0.0
      %v759 = vsel %vm723, %v738, 0.0
      %v760 = vsel %vm724, %v738, 0.0
      %v761 = vsel %vm725, %v738, 0.0
      %v762 = vsel %vm726, %v738, 0.0
      %v763 = vsel %vm727, %v738, 0.0
      %v764 = vsel %vm728, %v738, 0.0
      %v765 = vsel %vm729, %v738, 0.0
      %v766 = vsel %vm730, %v738, 0.0
      %v767 = vsel %vm731, %v738, 0.0
      %v768 = vsel %vm732, %v738, 0.0
      %v769 = vsel %vm733, %v738, 0.0
      %v770 = vsel %vm734, %v738, 0.0
      %v771 = vadd.f32 %v659, %v739
      %v772 = vadd.f32 %v660, %v740
      %v773 = vadd.f32 %v661, %v741
      %v774 = vadd.f32 %v662, %v742
      %v775 = vadd.f32 %v663, %v743
      %v776 = vadd.f32 %v664, %v744
      %v777 = vadd.f32 %v665, %v745
      %v778 = vadd.f32 %v666, %v746
      %v779 = vadd.f32 %v667, %v747
      %v780 = vadd.f32 %v668, %v748
      %v781 = vadd.f32 %v669, %v749
      %v782 = vadd.f32 %v670, %v750
      %v783 = vadd.f32 %v671, %v751
      %v784 = vadd.f32 %v672, %v752
      %v785 = vadd.f32 %v673, %v753
      %v786 = vadd.f32 %v674, %v754
      %v787 = vadd.f32 %v675, %v755
      %v788 = vadd.f32 %v676, %v756
      %v789 = vadd.f32 %v677, %v757
      %v790 = vadd.f32 %v678, %v758
      %v791 = vadd.f32 %v679, %v759
      %v792 = vadd.f32 %v680, %v760
      %v793 = vadd.f32 %v681, %v761
      %v794 = vadd.f32 %v682, %v762
      %v795 = vadd.f32 %v683, %v763
      %v796 = vadd.f32 %v684, %v764
      %v797 = vadd.f32 %v685, %v765
      %v798 = vadd.f32 %v686, %v766
      %v799 = vadd.f32 %v687, %v767
      %v800 = vadd.f32 %v688, %v768
      %v801 = vadd.f32 %v689, %v769
      %v802 = vadd.f32 %v690, %v770
      %v803 = vpack.c.bf16 %v280, %v280
      %v804 = vpack.c.bf16 %v281, %v281
      %v805 = vpack.c.bf16 %v772, %v771
      %v806 = vpack.c.bf16 %v774, %v773
      %v807 = vpack.c.bf16 %v776, %v775
      %v808 = vpack.c.bf16 %v778, %v777
      %v809 = vpack.c.bf16 %v780, %v779
      %v810 = vpack.c.bf16 %v782, %v781
      %v811 = vpack.c.bf16 %v784, %v783
      %v812 = vpack.c.bf16 %v786, %v785
      %v813 = vpack.c.bf16 %v788, %v787
      %v814 = vpack.c.bf16 %v790, %v789
      %v815 = vpack.c.bf16 %v792, %v791
      %v816 = vpack.c.bf16 %v794, %v793
      %v817 = vpack.c.bf16 %v796, %v795
      %v818 = vpack.c.bf16 %v798, %v797
      %v819 = vpack.c.bf16 %v800, %v799
      %v820 = vpack.c.bf16 %v802, %v801
      %v821 = vld [vmem:[%s267] sm:$0xff]
      %v822 = vmul.f32 %v282, 8.0
      %v823 = vsub.f32 %v822, 1.0
      %v824 = vmul.f32 %v823, 0.5
      %v825 = vfloor.f32 %v824
      %v826 = vadd.f32 %v825, 1.0
      %v827 = vsub.f32 %v824, %v825
      %v828 = vsub.f32 1.0, %v827
      %v830 = vrot.slane %v828, 7
      %v832 = vmul.f32 %v828, %v830
      %vm833 = vcmp.ge.f32.partialorder %v825, 0.0
      %vm834 = vcmp.le.f32.partialorder %v825, 7.0
      %vm835 = vmand %vm833, %vm834
      %v836 = vsel %vm833, 1, 0
      %v837 = vrot.slane %v836, 1
      %vm838 = vcmp.ne.s32.totalorder %v837, 0
      %vm839 = vmand %vm835, %vm838
      %v840 = vsel %vm834, 1, 0
      %v841 = vrot.slane %v840, 1
      %vm842 = vcmp.ne.s32.totalorder %v841, 0
      %vm843 = vmand %vm839, %vm842
      %v845 = vrot.slane %v832, 1
      %v847 = vsel %vm843, %v845, 0.0
      %v848 = vmul.f32 %v825, 8.0
      %v850 = vrot.slane %v825, 7
      %v852 = vadd.f32 %v848, %v850
      %v853 = vlaneseq
      %v854 = vshrl.u32 %v853, 7
      %v855 = vsub.s32 1, %v854
      %v856 = vrot.slane %v852, %v855
      %vm857 = vcmp.eq.f32.partialorder %v323, %v856
      %vm858 = vcmp.eq.f32.partialorder %v324, %v856
      %vm859 = vcmp.eq.f32.partialorder %v325, %v856
      %vm860 = vcmp.eq.f32.partialorder %v326, %v856
      %vm861 = vcmp.eq.f32.partialorder %v327, %v856
      %vm862 = vcmp.eq.f32.partialorder %v328, %v856
      %vm863 = vcmp.eq.f32.partialorder %v329, %v856
      %vm864 = vcmp.eq.f32.partialorder %v330, %v856
      %v865 = vlaneseq
      %v866 = vshrl.u32 %v865, 7
      %v867 = vsub.s32 0, %v866
      %v868 = vrot.slane %v847, %v867
      %v869 = vsel %vm857, %v868, 0.0
      %v870 = vsel %vm858, %v868, 0.0
      %v871 = vsel %vm859, %v868, 0.0
      %v872 = vsel %vm860, %v868, 0.0
      %v873 = vsel %vm861, %v868, 0.0
      %v874 = vsel %vm862, %v868, 0.0
      %v875 = vsel %vm863, %v868, 0.0
      %v876 = vsel %vm864, %v868, 0.0
      %v878 = vrot.slane %v827, 7
      %v880 = vmul.f32 %v828, %v878
      %vm881 = vcmp.ge.f32.partialorder %v826, 0.0
      %vm882 = vcmp.le.f32.partialorder %v826, 7.0
      %vm883 = vmand %vm881, %vm882
      %vm884 = vmand %vm883, %vm838
      %vm885 = vmand %vm884, %vm842
      %v887 = vrot.slane %v880, 1
      %v889 = vsel %vm885, %v887, 0.0
      %v891 = vrot.slane %v826, 7
      %v893 = vadd.f32 %v848, %v891
      %v894 = vlaneseq
      %v895 = vshrl.u32 %v894, 7
      %v896 = vsub.s32 1, %v895
      %v897 = vrot.slane %v893, %v896
      %vm898 = vcmp.eq.f32.partialorder %v323, %v897
      %vm899 = vcmp.eq.f32.partialorder %v324, %v897
      %vm900 = vcmp.eq.f32.partialorder %v325, %v897
      %vm901 = vcmp.eq.f32.partialorder %v326, %v897
      %vm902 = vcmp.eq.f32.partialorder %v327, %v897
      %vm903 = vcmp.eq.f32.partialorder %v328, %v897
      %vm904 = vcmp.eq.f32.partialorder %v329, %v897
      %vm905 = vcmp.eq.f32.partialorder %v330, %v897
      %v906 = vlaneseq
      %v907 = vshrl.u32 %v906, 7
      %v908 = vsub.s32 0, %v907
      %v909 = vrot.slane %v889, %v908
      %v910 = vsel %vm898, %v909, 0.0
      %v911 = vsel %vm899, %v909, 0.0
      %v912 = vsel %vm900, %v909, 0.0
      %v913 = vsel %vm901, %v909, 0.0
      %v914 = vsel %vm902, %v909, 0.0
      %v915 = vsel %vm903, %v909, 0.0
      %v916 = vsel %vm904, %v909, 0.0
      %v917 = vsel %vm905, %v909, 0.0
      %v918 = vadd.f32 %v869, %v910
      %v919 = vadd.f32 %v870, %v911
      %v920 = vadd.f32 %v871, %v912
      %v921 = vadd.f32 %v872, %v913
      %v922 = vadd.f32 %v873, %v914
      %v923 = vadd.f32 %v874, %v915
      %v924 = vadd.f32 %v875, %v916
      %v925 = vadd.f32 %v876, %v917
      %v926 = vmul.f32 %v827, %v830
      %v927 = vsel %vm881, 1, 0
      %v928 = vrot.slane %v927, 1
      %vm929 = vcmp.ne.s32.totalorder %v928, 0
      %vm930 = vmand %vm835, %vm929
      %v931 = vsel %vm882, 1, 0
      %v932 = vrot.slane %v931, 1
      %vm933 = vcmp.ne.s32.totalorder %v932, 0
      %vm934 = vmand %vm930, %vm933
      %v936 = vrot.slane %v926, 1
      %v938 = vsel %vm934, %v936, 0.0
      %v939 = vmul.f32 %v826, 8.0
      %v940 = vadd.f32 %v939, %v850
      %v941 = vlaneseq
      %v942 = vshrl.u32 %v941, 7
      %v943 = vsub.s32 1, %v942
      %v944 = vrot.slane %v940, %v943
      %vm945 = vcmp.eq.f32.partialorder %v323, %v944
      %vm946 = vcmp.eq.f32.partialorder %v324, %v944
      %vm947 = vcmp.eq.f32.partialorder %v325, %v944
      %vm948 = vcmp.eq.f32.partialorder %v326, %v944
      %vm949 = vcmp.eq.f32.partialorder %v327, %v944
      %vm950 = vcmp.eq.f32.partialorder %v328, %v944
      %vm951 = vcmp.eq.f32.partialorder %v329, %v944
      %vm952 = vcmp.eq.f32.partialorder %v330, %v944
      %v953 = vlaneseq
      %v954 = vshrl.u32 %v953, 7
      %v955 = vsub.s32 0, %v954
      %v956 = vrot.slane %v938, %v955
      %v957 = vsel %vm945, %v956, 0.0
      %v958 = vsel %vm946, %v956, 0.0
      %v959 = vsel %vm947, %v956, 0.0
      %v960 = vsel %vm948, %v956, 0.0
      %v961 = vsel %vm949, %v956, 0.0
      %v962 = vsel %vm950, %v956, 0.0
      %v963 = vsel %vm951, %v956, 0.0
      %v964 = vsel %vm952, %v956, 0.0
      %v965 = vadd.f32 %v918, %v957
      %v966 = vadd.f32 %v919, %v958
      %v967 = vadd.f32 %v920, %v959
      %v968 = vadd.f32 %v921, %v960
      %v969 = vadd.f32 %v922, %v961
      %v970 = vadd.f32 %v923, %v962
      %v971 = vadd.f32 %v924, %v963
      %v972 = vadd.f32 %v925, %v964
      %v973 = vmul.f32 %v827, %v878
      %vm974 = vmand %vm883, %vm929
      %vm975 = vmand %vm974, %vm933
      %v977 = vrot.slane %v973, 1
      %v979 = vsel %vm975, %v977, 0.0
      %v980 = vadd.f32 %v939, %v891
      %v981 = vlaneseq
      %v982 = vshrl.u32 %v981, 7
      %v983 = vsub.s32 1, %v982
      %v984 = vrot.slane %v980, %v983
      %vm985 = vcmp.eq.f32.partialorder %v323, %v984
      %vm986 = vcmp.eq.f32.partialorder %v324, %v984
      %vm987 = vcmp.eq.f32.partialorder %v325, %v984
      %vm988 = vcmp.eq.f32.partialorder %v326, %v984
      %vm989 = vcmp.eq.f32.partialorder %v327, %v984
      %vm990 = vcmp.eq.f32.partialorder %v328, %v984
      %vm991 = vcmp.eq.f32.partialorder %v329, %v984
      %vm992 = vcmp.eq.f32.partialorder %v330, %v984
      %v993 = vlaneseq
      %v994 = vshrl.u32 %v993, 7
      %v995 = vsub.s32 0, %v994
      %v996 = vrot.slane %v979, %v995
      %v997 = vsel %vm985, %v996, 0.0
      %v998 = vsel %vm986, %v996, 0.0
      %v999 = vsel %vm987, %v996, 0.0
      %v1000 = vsel %vm988, %v996, 0.0
      %v1001 = vsel %vm989, %v996, 0.0
      %v1002 = vsel %vm990, %v996, 0.0
      %v1003 = vsel %vm991, %v996, 0.0
      %v1004 = vsel %vm992, %v996, 0.0
      %v1005 = vadd.f32 %v965, %v997
      %v1006 = vadd.f32 %v966, %v998
      %v1007 = vadd.f32 %v967, %v999
      %v1008 = vadd.f32 %v968, %v1000
      %v1009 = vadd.f32 %v969, %v1001
      %v1010 = vadd.f32 %v970, %v1002
      %v1011 = vadd.f32 %v971, %v1003
      %v1012 = vadd.f32 %v972, %v1004
      %v1013 = vpack.c.bf16 %v821, %v821
      %v1014 = vpack.c.bf16 %v1006, %v1005
      %v1015 = vpack.c.bf16 %v1008, %v1007
      %v1016 = vpack.c.bf16 %v1010, %v1009
      %v1017 = vpack.c.bf16 %v1012, %v1011
      %vm1018 = vcmask 523264
      %v1020 = vsel %vm1018, %v1013, 0
      %1022 = vmatprep.subr.bf16.mxu0 0
      %1023 = vmatpush1.bf16.msra.mxu0 %v1014
      %1024 = vmatprep.subr.bf16.mxu0 0
      %1025 = vmatpush1.bf16.msra.mxu0 %v1015
      %1026 = vmatprep.subr.bf16.mxu0 0
      %1027 = vmatpush1.bf16.msra.mxu0 %v1016
      %1028 = vmatprep.subr.bf16.mxu0 0
      %1029 = vmatpush1.bf16.msra.mxu0 %v1017
      %1030 = vmatprep.subr.bf16.mxu0 0
      %1031 = vmatpush1.bf16.msra.mxu0 0
      %1032 = vmatprep.subr.bf16.mxu0 0
      %1033 = vmatpush1.bf16.msra.mxu0 0
      %1034 = vmatprep.subr.bf16.mxu0 0
      %1035 = vmatpush1.bf16.msra.mxu0 0
      %1036 = vmatprep.subr.bf16.mxu0 0
      %1037 = vmatpush1.bf16.msra.mxu0 0
      %1038 = vmatprep.subr.bf16.mxu0 0
      %1039 = vmatpush1.bf16.msra.mxu0 0
      %1040 = vmatprep.subr.bf16.mxu0 0
      %1041 = vmatpush1.bf16.msra.mxu0 0
      %1042 = vmatprep.subr.bf16.mxu0 0
      %1043 = vmatpush1.bf16.msra.mxu0 0
      %1044 = vmatprep.subr.bf16.mxu0 0
      %1045 = vmatpush1.bf16.msra.mxu0 0
      %1046 = vmatprep.subr.bf16.mxu0 0
      %1047 = vmatpush1.bf16.msra.mxu0 0
      %1048 = vmatprep.subr.bf16.mxu0 0
      %1049 = vmatpush1.bf16.msra.mxu0 0
      %1050 = vmatprep.subr.bf16.mxu0 0
      %1051 = vmatpush1.bf16.msra.mxu0 0
      %1052 = vmatprep.subr.bf16.mxu0 0
      %1053 = vmatpush1.bf16.msra.mxu0 0
      %1054 = vmatprep.mubr.bf16.mxu0 0
      %1055 = vmatmul.mubr.bf16.gmra.mrb[0].mxu0 %v1020
      %v1056 = vpop.f32.mrb[0].mxu0
      %v1057 = vadd.f32 0.0, %v1056
      %v1058 = vpop.f32.mrb[0].mxu0
      %v1059 = vpop.f32.mrb[0].mxu0
      %v1060 = vpop.f32.mrb[0].mxu0
      %1061 = vdwg.mxu0
      %1062 = vmatprep.subr.bf16.mxu0 0
      %1063 = vmatpush1.bf16.msra.mxu0 %v805
      %1064 = vmatprep.subr.bf16.mxu0 0
      %1065 = vmatpush1.bf16.msra.mxu0 %v806
      %1066 = vmatprep.subr.bf16.mxu0 0
      %1067 = vmatpush1.bf16.msra.mxu0 %v807
      %1068 = vmatprep.subr.bf16.mxu0 0
      %1069 = vmatpush1.bf16.msra.mxu0 %v808
      %1070 = vmatprep.subr.bf16.mxu0 0
      %1071 = vmatpush1.bf16.msra.mxu0 %v809
      %1072 = vmatprep.subr.bf16.mxu0 0
      %1073 = vmatpush1.bf16.msra.mxu0 %v810
      %1074 = vmatprep.subr.bf16.mxu0 0
      %1075 = vmatpush1.bf16.msra.mxu0 %v811
      %1076 = vmatprep.subr.bf16.mxu0 0
      %1077 = vmatpush1.bf16.msra.mxu0 %v812
      %1078 = vmatprep.subr.bf16.mxu0 0
      %1079 = vmatpush1.bf16.msra.mxu0 %v813
      %1080 = vmatprep.subr.bf16.mxu0 0
      %1081 = vmatpush1.bf16.msra.mxu0 %v814
      %1082 = vmatprep.subr.bf16.mxu0 0
      %1083 = vmatpush1.bf16.msra.mxu0 %v815
      %1084 = vmatprep.subr.bf16.mxu0 0
      %1085 = vmatpush1.bf16.msra.mxu0 %v816
      %1086 = vmatprep.subr.bf16.mxu0 0
      %1087 = vmatpush1.bf16.msra.mxu0 %v817
      %1088 = vmatprep.subr.bf16.mxu0 0
      %1089 = vmatpush1.bf16.msra.mxu0 %v818
      %1090 = vmatprep.subr.bf16.mxu0 0
      %1091 = vmatpush1.bf16.msra.mxu0 %v819
      %1092 = vmatprep.subr.bf16.mxu0 0
      %1093 = vmatpush1.bf16.msra.mxu0 %v820
      %1094 = vmatprep.mubr.bf16.mxu0 %v804
      %1095 = vmatmul.mubr.bf16.gmra.mrb[0].mxu0 %v803
      %v1096 = vpop.f32.mrb[0].mxu0
      %v1097 = vadd.f32 %v1057, %v1096
      %v1098 = vpop.f32.mrb[0].mxu0
      %v1099 = vpop.f32.mrb[0].mxu0
      %v1100 = vpop.f32.mrb[0].mxu0
      %1101 = vdwg.mxu0
      %v1102 = vpack.c.bf16 %v1097, %v1097
      %v1103 = vld [vmem:[%s272] sm:$0xff]
      %v1104 = vld [vmem:[%s272 + $0x8] sm:$0xff]
      %v1105 = vld [vmem:[%s272 + $0x10] sm:$0xff]
      %v1106 = vld [vmem:[%s272 + $0x18] sm:$0xff]
      %v1107 = vld [vmem:[%s272 + $0x20] sm:$0xff]
      %v1108 = vld [vmem:[%s272 + $0x28] sm:$0xff]
      %v1109 = vld [vmem:[%s272 + $0x30] sm:$0xff]
      %v1110 = vld [vmem:[%s272 + $0x38] sm:$0xff]
      %v1111 = vld [vmem:[%s272 + $0x40] sm:$0xff]
      %v1112 = vld [vmem:[%s272 + $0x48] sm:$0xff]
      %v1113 = vld [vmem:[%s272 + $0x50] sm:$0xff]
      %v1114 = vld [vmem:[%s272 + $0x58] sm:$0xff]
      %v1115 = vld [vmem:[%s272 + $0x60] sm:$0xff]
      %v1116 = vld [vmem:[%s272 + $0x68] sm:$0xff]
      %v1117 = vld [vmem:[%s272 + $0x70] sm:$0xff]
      %v1118 = vld [vmem:[%s272 + $0x78] sm:$0xff]
      %v1119 = vpack.c.bf16 %v1104, %v1103
      %v1120 = vpack.c.bf16 %v1106, %v1105
      %v1121 = vpack.c.bf16 %v1108, %v1107
      %v1122 = vpack.c.bf16 %v1110, %v1109
      %v1123 = vpack.c.bf16 %v1112, %v1111
      %v1124 = vpack.c.bf16 %v1114, %v1113
      %v1125 = vpack.c.bf16 %v1116, %v1115
      %v1126 = vpack.c.bf16 %v1118, %v1117
      %1127 = vmatprep.subr.bf16.mxu0 0
      %1128 = vmatpush1.bf16.msra.mxu0 %v1119
      %1129 = vmatprep.subr.bf16.mxu0 0
      %1130 = vmatpush1.bf16.msra.mxu0 %v1120
      %1131 = vmatprep.subr.bf16.mxu0 0
      %1132 = vmatpush1.bf16.msra.mxu0 %v1121
      %1133 = vmatprep.subr.bf16.mxu0 0
      %1134 = vmatpush1.bf16.msra.mxu0 %v1122
      %1135 = vmatprep.subr.bf16.mxu0 0
      %1136 = vmatpush1.bf16.msra.mxu0 %v1123
      %1137 = vmatprep.subr.bf16.mxu0 0
      %1138 = vmatpush1.bf16.msra.mxu0 %v1124
      %1139 = vmatprep.subr.bf16.mxu0 0
      %1140 = vmatpush1.bf16.msra.mxu0 %v1125
      %1141 = vmatprep.subr.bf16.mxu0 0
      %1142 = vmatpush1.bf16.msra.mxu0 %v1126
      %1143 = vmatprep.subr.bf16.mxu0 0
      %1144 = vmatpush1.bf16.msra.mxu0 0
      %1145 = vmatprep.subr.bf16.mxu0 0
      %1146 = vmatpush1.bf16.msra.mxu0 0
      %1147 = vmatprep.subr.bf16.mxu0 0
      %1148 = vmatpush1.bf16.msra.mxu0 0
      %1149 = vmatprep.subr.bf16.mxu0 0
      %1150 = vmatpush1.bf16.msra.mxu0 0
      %1151 = vmatprep.subr.bf16.mxu0 0
      %1152 = vmatpush1.bf16.msra.mxu0 0
      %1153 = vmatprep.subr.bf16.mxu0 0
      %1154 = vmatpush1.bf16.msra.mxu0 0
      %1155 = vmatprep.subr.bf16.mxu0 0
      %1156 = vmatpush1.bf16.msra.mxu0 0
      %1157 = vmatprep.subr.bf16.mxu0 0
      %1158 = vmatpush1.bf16.msra.mxu0 0
      %1159 = vmatprep.mubr.bf16.mxu0 0
      %1160 = vmatmul.mubr.bf16.gmra.mrb[0].mxu0 %v1102
      %v1161 = vpop.f32.mrb[0].mxu0
      %v1162 = vadd.f32 0.0, %v1161
      %v1163 = vpop.f32.mrb[0].mxu0
      %v1164 = vpop.f32.mrb[0].mxu0
      %v1165 = vpop.f32.mrb[0].mxu0
      %1166 = vdwg.mxu0
      %p1167 = scmp.eq.s32.totalorder %s20, 0
      // Predicated region
      $region37: #{neko_lens_fuse_forward.5} parent=35 // pred_check
        %p1168 = pneg %p1167
      $region38: #{neko_lens_fuse_forward.5} parent=35 // pred_check_branch
        %1170 = sbr.rel (%p1168) target = $region40
      $region39: #{neko_lens_fuse_forward.5} parent=35 // pred_region
        %1171 = vst [vmem:[%s277] sm:$0xff] 0.0
      $region40: #{neko_lens_fuse_forward.5} parent=35 // pred_fallthru
        _
      %v1172 = vld [vmem:[%s277] sm:$0xff]
      %v1173 = vadd.f32 %v1172, %v1162
      %1174 = vst [vmem:[%s277] sm:$0xff] %v1173
      %p1175 = scmp.lt.s32.totalorder %s19, 1
      %s1176 = scalar_select %p1175, %s19, 1
      %s1177 = smul.addr %s1176, 8
      %s1178 = scalar_lea.vmem %s4, %s1177
      // Predicated region
      $region41: #{neko_lens_fuse_forward.5} parent=35 // pred_check
        %p1179 = pneg %p151
      $region42: #{neko_lens_fuse_forward.5} parent=35 // pred_check_branch
        %1181 = sbr.rel (%p1179) target = $region44
      $region43: #{neko_lens_fuse_forward.5} parent=35 // pred_region
        _
      $region44: #{neko_lens_fuse_forward.5} parent=35 // pred_fallthru
        _
    $region36: #{neko_lens_fuse_forward.5} parent=5 // pred_fallthru
      _
    %p1182 = scmp.le.s32.totalorder 2, %s10
    // Predicated region
    $region45: #{neko_lens_fuse_forward.5} parent=5 // pred_check
      %p1183 = pneg %p1182
    $region46: #{neko_lens_fuse_forward.5} parent=5 // pred_check_branch
      %1185 = sbr.rel (%p1183) target = $region48
    $region47: #{neko_lens_fuse_forward.5} parent=5 // pred_region
      %s1186 = ssub.s32 %s10, 2
      // Predicated region
      $region49: #{neko_lens_fuse_forward.5} parent=47 // pred_check
        %p1187 = pneg %p157
      $region50: #{neko_lens_fuse_forward.5} parent=47 // pred_check_branch
        %1189 = sbr.rel (%p1187) target = $region52
      $region51: #{neko_lens_fuse_forward.5} parent=47 // pred_region
        %p1190 = scmp.lt.s32.totalorder %s21, 1
        %s1191 = scalar_select %p1190, %s21, 1
        %s1192 = smul.addr %s1191, 8
        %s1193 = scalar_lea.vmem %s4, %s1192
      $region52: #{neko_lens_fuse_forward.5} parent=47 // pred_fallthru
        _
    $region48: #{neko_lens_fuse_forward.5} parent=5 // pred_fallthru
      _
  $region6: #{neko_lens_fuse_forward.5} parent=0 // loop_footer
    %s14 = sadd.s32 1, %s10
  $region7: #{neko_lens_fuse_forward.5} parent=0 // loop_footer_branch
    %9 = sbr.rel target = $region3
  $region8: #{neko_lens_fuse_forward.5} parent=0 // loop_exit
    _

</llo_original>
